<compile_context>
chip_gen: v7x
topology: tpu7x:2x2x1
jax: 0.10.0
libtpu: 0.0.40
codegen_flags: <defaults>
</compile_context>

<pallas_src>
import jax
import jax.numpy as jnp
from jax import lax
from jax.experimental import pallas as pl
from jax.experimental.pallas import tpu as pltpu

# ----------------------------- model config ---------------------------------
VOCAB = 64
VPAD = 128                      # vocab padded to one full lane width
HIDDEN = 32
N_HEAD = 4
HEAD_DIM = HIDDEN // N_HEAD
N_LAYER = 2
MAX_POS = 16
INTER = 4 * HIDDEN
LN_EPS = 1e-5
NEG = -1e30                     # finite additive mask value


# ------------------------------ fused kernel ---------------------------------
def _make_kernel(batch, seq):
    S = seq
    inv_denom = 1.0 / float(batch * (seq - 1))

    def kernel(ids_ref,        # (1, S, 1)  int32
               kbias_ref,      # (1, 1, S)  f32   key-padding additive bias
               emb_ref,        # (VPAD + MAX_POS, H)  [wte_pad ; wpe]
               wqkv_ref,       # (L, NH, H, 3*Dh)     head-major q|k|v
               wo_ref,         # (L, NH, Dh, H)       head-major out proj
               wmlp_ref,       # (L, 2H, I)           [w_fc ; w_proj^T]
               vec_ref,        # (6L+2, H)            ln/bias vectors
               bfc_ref,        # (L, I)               fc bias
               logits_ref,     # (1, S, VPAD)  out
               loss_ref):      # (1, 1, VPAD)  out (partial loss, broadcast)
        f32 = jnp.float32

        def layer_norm(h, g, b):
            mu = jnp.mean(h, axis=-1, keepdims=True)
            var = jnp.mean(jnp.square(h - mu), axis=-1, keepdims=True)
            return (h - mu) * lax.rsqrt(var + LN_EPS) * g + b

        def gelu_new(h):
            c = 0.7978845608028654  # sqrt(2/pi)
            return 0.5 * h * (1.0 + jnp.tanh(c * (h + 0.044715 * h * h * h)))

        vecs = vec_ref[...]                       # (6L+2, H)
        bfc = bfc_ref[...]                        # (L, I)
        wte_pad = emb_ref[0:VPAD, :]              # (VPAD, H), rows >= VOCAB are 0

        # ---- embeddings (one-hot matmul on the MXU, static wpe row slice) ----
        ids_col = ids_ref[...].reshape(S, 1)                         # (S, 1)
        vocab_lane = lax.broadcasted_iota(jnp.int32, (S, VPAD), 1)
        tok_oh = (vocab_lane == ids_col).astype(f32)                 # (S, VPAD)
        x = jnp.dot(tok_oh, wte_pad, preferred_element_type=f32)     # (S, H)
        x = x + emb_ref[VPAD:VPAD + S, :]                            # + wpe[:S]

        # ---- additive attention bias: causal + key padding (shared) ---------
        ri = lax.broadcasted_iota(jnp.int32, (S, S), 0)
        ci = lax.broadcasted_iota(jnp.int32, (S, S), 1)
        causal = jnp.where(ci <= ri, 0.0, NEG).astype(f32)           # (S, S)
        bias = causal[None, :, :] + kbias_ref[...]                   # (1, S, S)

        # ---- transformer blocks ---------------------------------------------
        for l in range(N_LAYER):
            r = 6 * l
            ln1_g, ln1_b = vecs[r:r + 1, :], vecs[r + 1:r + 2, :]
            b_o = vecs[r + 2:r + 3, :]
            ln2_g, ln2_b = vecs[r + 3:r + 4, :], vecs[r + 4:r + 5, :]
            b_proj = vecs[r + 5:r + 6, :]

            # -- causal self-attention (head-batched, no qkv bias) ------------
            a_in = layer_norm(x, ln1_g, ln1_b)                       # (S, H)
            a_b = jnp.broadcast_to(a_in, (N_HEAD, S, HIDDEN))        # (NH,S,H)
            qkv = lax.dot_general(a_b, wqkv_ref[l],
                                  (((2,), (1,)), ((0,), (0,))),
                                  preferred_element_type=f32)        # (NH,S,3Dh)
            q = qkv[:, :, 0:HEAD_DIM]
            k = qkv[:, :, HEAD_DIM:2 * HEAD_DIM]
            v = qkv[:, :, 2 * HEAD_DIM:3 * HEAD_DIM]
            # GPT-Neo: NO 1/sqrt(head_dim) scaling.
            sc = lax.dot_general(q, k, (((2,), (2,)), ((0,), (0,))),
                                 preferred_element_type=f32)         # (NH,S,S)
            sc = sc + bias
            sc = sc - jnp.max(sc, axis=-1, keepdims=True)
            p = jnp.exp(sc)
            p = p / jnp.sum(p, axis=-1, keepdims=True)               # exact
            ctx = lax.dot_general(p, v, (((2,), (1,)), ((0,), (0,))),
                                  preferred_element_type=f32)        # (NH,S,Dh)
            proj = lax.dot_general(ctx, wo_ref[l],
                                   (((2,), (1,)), ((0,), (0,))),
                                   preferred_element_type=f32)       # (NH,S,H)
            x = x + jnp.sum(proj, axis=0) + b_o

            # -- MLP (gelu_new) ------------------------------------------------
            m_in = layer_norm(x, ln2_g, ln2_b)
            h1 = jnp.dot(m_in, wmlp_ref[l, 0:HIDDEN, :],
                         preferred_element_type=f32) + bfc[l:l + 1, :]
            h1 = gelu_new(h1)
            x = x + lax.dot_general(h1, wmlp_ref[l, HIDDEN:2 * HIDDEN, :],
                                    (((1,), (1,)), ((), ())),
                                    preferred_element_type=f32) + b_proj

        # ---- final LN + tied lm_head (transposed-B contraction on wte) -------
        rf = 6 * N_LAYER
        xf = layer_norm(x, vecs[rf:rf + 1, :], vecs[rf + 1:rf + 2, :])
        logits = lax.dot_general(xf, wte_pad, (((1,), (1,)), ((), ())),
                                 preferred_element_type=f32)         # (S, VPAD)
        logits_ref[...] = logits[None, :, :]                         # lane-dense

        # ---- shifted cross-entropy partial sum (labels = input_ids) ----------
        pad_bias = jnp.where(vocab_lane < VOCAB, 0.0, NEG).astype(f32)
        zl = logits + pad_bias
        m = jnp.max(zl, axis=-1, keepdims=True)
        lse = jnp.log(jnp.sum(jnp.exp(zl - m), axis=-1, keepdims=True)) + m

        # shift_mat[j, t] = 1 iff t == j+1  -> lbl_oh[j] = tok_oh[j+1], last=0
        shift_mat = (ci == ri + 1).astype(f32)                       # (S, S)
        lbl_oh = jnp.dot(shift_mat, tok_oh, preferred_element_type=f32)
        valid = (lax.broadcasted_iota(jnp.int32, (S, 1), 0) < (S - 1)).astype(f32)

        lse_sum = jnp.sum(lse * valid, axis=0, keepdims=True)        # (1, 1)
        lbl_sum = jnp.sum(jnp.sum(logits * lbl_oh, axis=1, keepdims=True),
                          axis=0, keepdims=True)                     # (1, 1)
        part = (lse_sum - lbl_sum) * inv_denom                       # (1, 1)
        loss_ref[...] = jnp.broadcast_to(part[None, :, :], (1, 1, VPAD))

    return kernel


def _full_spec(shape):
    nd = len(shape)
    return pl.BlockSpec(shape, lambda i, _nd=nd: (0,) * _nd)


# ------------------------------ parameters -----------------------------------
def init_params(key):
    def nrm(k, shape, scale=0.02):
        return scale * jax.random.normal(k, shape, dtype=jnp.float32)

    ks = jax.random.split(key, 8)
    L = N_LAYER
    return {
        "wte": nrm(ks[0], (VOCAB, HIDDEN)),
        "wpe": nrm(ks[1], (MAX_POS, HIDDEN)),
        "ln1_g": jnp.ones((L, HIDDEN), jnp.float32),
        "ln1_b": jnp.zeros((L, HIDDEN), jnp.float32),
        "w_q": nrm(ks[2], (L, HIDDEN, HIDDEN)),     # no qkv bias in GPT-Neo
        "w_k": nrm(ks[3], (L, HIDDEN, HIDDEN)),
        "w_v": nrm(ks[4], (L, HIDDEN, HIDDEN)),
        "w_o": nrm(ks[5], (L, HIDDEN, HIDDEN)),
        "b_o": jnp.zeros((L, HIDDEN), jnp.float32),
        "ln2_g": jnp.ones((L, HIDDEN), jnp.float32),
        "ln2_b": jnp.zeros((L, HIDDEN), jnp.float32),
        "w_fc": nrm(ks[6], (L, HIDDEN, INTER)),
        "b_fc": jnp.zeros((L, INTER), jnp.float32),
        "w_proj": nrm(ks[7], (L, INTER, HIDDEN)),
        "b_proj": jnp.zeros((L, HIDDEN), jnp.float32),
        "lnf_g": jnp.ones((HIDDEN,), jnp.float32),
        "lnf_b": jnp.zeros((HIDDEN,), jnp.float32),
    }


def pack_params(p):
    """One-time repack of natural params into the kernel's 6 packed slabs."""
    L = N_LAYER
    wte_pad = jnp.zeros((VPAD, HIDDEN), jnp.float32).at[:VOCAB].set(p["wte"])
    emb = jnp.concatenate([wte_pad, p["wpe"]], axis=0)           # (VPAD+MAX_POS, H)

    def heads_last(w):   # (L,H,H) -> (L,NH,H,Dh): split the OUTPUT dim per head
        return w.reshape(L, HIDDEN, N_HEAD, HEAD_DIM).transpose(0, 2, 1, 3)

    w_qkv_h = jnp.concatenate([heads_last(p["w_q"]),
                               heads_last(p["w_k"]),
                               heads_last(p["w_v"])], axis=-1)   # (L,NH,H,3Dh)
    w_o_h = p["w_o"].reshape(L, N_HEAD, HEAD_DIM, HIDDEN)        # (L,NH,Dh,H)
    w_mlp = jnp.concatenate([p["w_fc"],
                             p["w_proj"].transpose(0, 2, 1)], axis=1)  # (L,2H,I)

    rows = []
    for l in range(L):
        rows += [p["ln1_g"][l], p["ln1_b"][l], p["b_o"][l],
                 p["ln2_g"][l], p["ln2_b"][l], p["b_proj"][l]]
    rows += [p["lnf_g"], p["lnf_b"]]
    vecs = jnp.stack(rows, axis=0)                               # (6L+2, H)

    return {"emb": emb, "w_qkv_h": w_qkv_h, "w_o_h": w_o_h,
            "w_mlp": w_mlp, "vecs": vecs, "b_fc": p["b_fc"]}


# ------------------------------ forward pass ---------------------------------
def forward(packed, input_ids, attention_mask, steer_values):
    # steer_values is intentionally unused (matches the PyTorch forward).
    del steer_values
    b, s = input_ids.shape
    assert 1 <= s <= MAX_POS and s % 8 == 0

    ids = input_ids.reshape(b, s, 1).astype(jnp.int32)
    kbias = ((attention_mask.astype(jnp.float32) - 1.0) * (-NEG)).reshape(b, 1, s)

    args = [ids, kbias, packed["emb"], packed["w_qkv_h"], packed["w_o_h"],
            packed["w_mlp"], packed["vecs"], packed["b_fc"]]

    in_specs = [
        pl.BlockSpec((1, s, 1), lambda i: (i, 0, 0)),
        pl.BlockSpec((1, 1, s), lambda i: (i, 0, 0)),
        _full_spec(packed["emb"].shape),
        _full_spec(packed["w_qkv_h"].shape),
        _full_spec(packed["w_o_h"].shape),
        _full_spec(packed["w_mlp"].shape),
        _full_spec(packed["vecs"].shape),
        _full_spec(packed["b_fc"].shape),
    ]
    out_specs = (
        pl.BlockSpec((1, s, VPAD), lambda i: (i, 0, 0)),
        pl.BlockSpec((1, 1, VPAD), lambda i: (i, 0, 0)),
    )
    out_shape = (
        jax.ShapeDtypeStruct((b, s, VPAD), jnp.float32),
        jax.ShapeDtypeStruct((b, 1, VPAD), jnp.float32),
    )

    # Advisory cost estimate so XLA schedules the tiny glue ops around the call.
    per_layer = (2 * N_HEAD * s * HIDDEN * 3 * HEAD_DIM          # qkv
                 + 2 * N_HEAD * s * s * HEAD_DIM * 2             # scores + ctx
                 + 2 * N_HEAD * s * HEAD_DIM * HIDDEN            # out proj
                 + 2 * s * HIDDEN * INTER * 2)                   # fc + proj
    flops = b * (2 * s * VPAD * HIDDEN + N_LAYER * per_layer
                 + 2 * s * s * VPAD + 2 * s * HIDDEN * VPAD)
    transc = b * (N_LAYER * (N_HEAD * s * s + s * INTER) + s * VPAD + s)
    bytes_acc = (sum(int(a.size) * a.dtype.itemsize for a in args)
                 + b * s * VPAD * 4 + b * VPAD * 4)
    cost = pl.CostEstimate(flops=flops, transcendentals=transc,
                           bytes_accessed=bytes_acc)

    logits_pad, loss_part = pl.pallas_call(
        _make_kernel(b, s),
        grid=(b,),
        out_shape=out_shape,
        in_specs=in_specs,
        out_specs=out_specs,
        compiler_params=pltpu.CompilerParams(
            dimension_semantics=("parallel",)),
        cost_estimate=cost,
    )(*args)

    loss = jnp.sum(loss_part[:, 0, 0])            # partials already /(B*(S-1))
    logits = logits_pad[:, :, :VOCAB]             # strip the lane padding
    return {"loss": loss, "logits": logits}


# ---------------------------------- main --------------------------------------
if __name__ == "__main__":
    B, S = 2, 8
    root = jax.random.PRNGKey(0)
    k_params, k_ids = jax.random.split(root)

    params = init_params(k_params)
    packed = pack_params(params)

    input_ids = jax.random.randint(k_ids, (B, S), 0, VOCAB, dtype=jnp.int32)
    attention_mask = jnp.ones((B, S), jnp.int32).at[1, -2:].set(0)
    steer_values = jnp.zeros((B, 1), jnp.float32)   # accepted, unused

    fwd = jax.jit(forward)
    out = fwd(packed, input_ids, attention_mask, steer_values)
    jax.block_until_ready((out["loss"], out["logits"]))
    print("KERNEL_OK")
</pallas_src>

<mosaic_0001>
module attributes {stable_mosaic.version = 11 : i64} {
  func.func @kernel(%arg0: i32, %arg1: memref<1x8x1xi32, #tpu.memory_space<vmem>>, %arg2: memref<1x1x8xf32, #tpu.memory_space<vmem>>, %arg3: memref<144x32xf32, #tpu.memory_space<vmem>>, %arg4: memref<2x4x32x24xf32, #tpu.memory_space<vmem>>, %arg5: memref<2x4x8x32xf32, #tpu.memory_space<vmem>>, %arg6: memref<2x64x128xf32, #tpu.memory_space<vmem>>, %arg7: memref<14x32xf32, #tpu.memory_space<vmem>>, %arg8: memref<2x128xf32, #tpu.memory_space<vmem>>, %arg9: memref<1x8x128xf32, #tpu.memory_space<vmem>>, %arg10: memref<1x1x128xf32, #tpu.memory_space<vmem>>) attributes {dimension_semantics = [#tpu.dimension_semantics<parallel>], iteration_bounds = array<i64: 2>, scalar_prefetch = 0 : i64, scratch_operands = 0 : i64, tpu.core_type = #tpu.core_type<tc>, window_params = [{transform_indices = @transform_0, window_bounds = array<i64: 1, 8, 1>}, {transform_indices = @transform_1, window_bounds = array<i64: 1, 1, 8>}, {pipeline_mode = #tpu.pipeline_mode<synchronous>, transform_indices = @transform_2, window_bounds = array<i64: 144, 32>}, {pipeline_mode = #tpu.pipeline_mode<synchronous>, transform_indices = @transform_3, window_bounds = array<i64: 2, 4, 32, 24>}, {pipeline_mode = #tpu.pipeline_mode<synchronous>, transform_indices = @transform_4, window_bounds = array<i64: 2, 4, 8, 32>}, {pipeline_mode = #tpu.pipeline_mode<synchronous>, transform_indices = @transform_5, window_bounds = array<i64: 2, 64, 128>}, {pipeline_mode = #tpu.pipeline_mode<synchronous>, transform_indices = @transform_6, window_bounds = array<i64: 14, 32>}, {pipeline_mode = #tpu.pipeline_mode<synchronous>, transform_indices = @transform_7, window_bounds = array<i64: 2, 128>}, {transform_indices = @transform_8, window_bounds = array<i64: 1, 8, 128>}, {transform_indices = @transform_9, window_bounds = array<i64: 1, 1, 128>}]} {
    %c0 = arith.constant 0 : index
    %c0_0 = arith.constant 0 : index
    %0 = vector.load %arg7[%c0, %c0_0] : memref<14x32xf32, #tpu.memory_space<vmem>>, vector<14x32xf32>
    %c0_1 = arith.constant 0 : index
    %c0_2 = arith.constant 0 : index
    %1 = vector.load %arg8[%c0_1, %c0_2] : memref<2x128xf32, #tpu.memory_space<vmem>>, vector<2x128xf32>
    %c0_3 = arith.constant 0 : index
    %c0_4 = arith.constant 0 : index
    %2 = vector.load %arg3[%c0_3, %c0_4] : memref<144x32xf32, #tpu.memory_space<vmem>>, vector<128x32xf32>
    %c0_5 = arith.constant 0 : index
    %c0_6 = arith.constant 0 : index
    %c0_7 = arith.constant 0 : index
    %3 = vector.load %arg1[%c0_5, %c0_6, %c0_7] : memref<1x8x1xi32, #tpu.memory_space<vmem>>, vector<1x8x1xi32>
    %4 = vector.shape_cast %3 : vector<1x8x1xi32> to vector<8x1xi32>
    %5 = tpu.iota {dimensions = array<i32: 1>} : vector<8x128xi32>
    %6 = vector.broadcast %4 : vector<8x1xi32> to vector<8x128xi32>
    %7 = arith.cmpi eq, %5, %6 : vector<8x128xi32>
    %8 = arith.extui %7 : vector<8x128xi1> to vector<8x128xi32>
    %9 = arith.sitofp %8 : vector<8x128xi32> to vector<8x128xf32>
    %cst = arith.constant dense<0.000000e+00> : vector<8x32xf32>
    %10 = tpu.matmul %9, %2, %cst {dimension_numbers = #tpu.dot_dimension_numbers<[1], [0], [0], [1], [0, 0, 1, 1], [], []>} : vector<8x128xf32>, vector<128x32xf32>, vector<8x32xf32> -> vector<8x32xf32>
    %c128 = arith.constant 128 : index
    %c0_8 = arith.constant 0 : index
    %11 = vector.load %arg3[%c128, %c0_8] : memref<144x32xf32, #tpu.memory_space<vmem>>, vector<8x32xf32>
    %12 = arith.addf %10, %11 : vector<8x32xf32>
    %13 = tpu.iota {dimensions = array<i32: 0>} : vector<8x8xi32>
    %14 = tpu.iota {dimensions = array<i32: 1>} : vector<8x8xi32>
    %15 = arith.cmpi sle, %14, %13 : vector<8x8xi32>
    %cst_9 = arith.constant 0.000000e+00 : f32
    %cst_10 = arith.constant -1.000000e+30 : f32
    %16 = vector.broadcast %cst_9 : f32 to vector<8x8xf32>
    %17 = vector.broadcast %cst_10 : f32 to vector<8x8xf32>
    %18 = arith.select %15, %16, %17 : vector<8x8xi1>, vector<8x8xf32>
    %19 = vector.shape_cast %18 : vector<8x8xf32> to vector<1x8x8xf32>
    %c0_11 = arith.constant 0 : index
    %c0_12 = arith.constant 0 : index
    %c0_13 = arith.constant 0 : index
    %20 = vector.load %arg2[%c0_11, %c0_12, %c0_13] : memref<1x1x8xf32, #tpu.memory_space<vmem>>, vector<1x1x8xf32>
    %21 = vector.broadcast %20 : vector<1x1x8xf32> to vector<1x8x8xf32>
    %22 = arith.addf %19, %21 : vector<1x8x8xf32>
    %23 = vector.extract_strided_slice %0 {offsets = [0, 0], sizes = [1, 32], strides = [1, 1]} : vector<14x32xf32> to vector<1x32xf32>
    %24 = vector.extract_strided_slice %0 {offsets = [1, 0], sizes = [1, 32], strides = [1, 1]} : vector<14x32xf32> to vector<1x32xf32>
    %25 = vector.extract_strided_slice %0 {offsets = [2, 0], sizes = [1, 32], strides = [1, 1]} : vector<14x32xf32> to vector<1x32xf32>
    %26 = vector.extract_strided_slice %0 {offsets = [3, 0], sizes = [1, 32], strides = [1, 1]} : vector<14x32xf32> to vector<1x32xf32>
    %27 = vector.extract_strided_slice %0 {offsets = [4, 0], sizes = [1, 32], strides = [1, 1]} : vector<14x32xf32> to vector<1x32xf32>
    %28 = vector.extract_strided_slice %0 {offsets = [5, 0], sizes = [1, 32], strides = [1, 1]} : vector<14x32xf32> to vector<1x32xf32>
    %cst_14 = arith.constant dense<0.000000e+00> : vector<8xf32>
    %29 = vector.multi_reduction <add>, %12, %cst_14 [1] : vector<8x32xf32> to vector<8xf32>
    %30 = vector.shape_cast %29 : vector<8xf32> to vector<8x1xf32>
    %cst_15 = arith.constant 3.200000e+01 : f32
    %31 = vector.broadcast %cst_15 : f32 to vector<8x1xf32>
    %32 = arith.divf %30, %31 : vector<8x1xf32>
    %33 = vector.broadcast %32 : vector<8x1xf32> to vector<8x32xf32>
    %34 = arith.subf %12, %33 : vector<8x32xf32>
    %35 = arith.mulf %34, %34 : vector<8x32xf32>
    %cst_16 = arith.constant dense<0.000000e+00> : vector<8xf32>
    %36 = vector.multi_reduction <add>, %35, %cst_16 [1] : vector<8x32xf32> to vector<8xf32>
    %37 = vector.shape_cast %36 : vector<8xf32> to vector<8x1xf32>
    %cst_17 = arith.constant 3.200000e+01 : f32
    %38 = vector.broadcast %cst_17 : f32 to vector<8x1xf32>
    %39 = arith.divf %37, %38 : vector<8x1xf32>
    %40 = vector.broadcast %32 : vector<8x1xf32> to vector<8x32xf32>
    %41 = arith.subf %12, %40 : vector<8x32xf32>
    %cst_18 = arith.constant 9.99999974E-6 : f32
    %42 = vector.broadcast %cst_18 : f32 to vector<8x1xf32>
    %43 = arith.addf %39, %42 : vector<8x1xf32>
    %44 = math.rsqrt %43 : vector<8x1xf32>
    %45 = vector.broadcast %44 : vector<8x1xf32> to vector<8x32xf32>
    %46 = arith.mulf %41, %45 : vector<8x32xf32>
    %47 = vector.broadcast %23 : vector<1x32xf32> to vector<8x32xf32>
    %48 = arith.mulf %46, %47 : vector<8x32xf32>
    %49 = vector.broadcast %24 : vector<1x32xf32> to vector<8x32xf32>
    %50 = arith.addf %48, %49 : vector<8x32xf32>
    %51 = vector.shape_cast %50 : vector<8x32xf32> to vector<1x8x32xf32>
    %52 = vector.broadcast %51 : vector<1x8x32xf32> to vector<4x8x32xf32>
    %c0_19 = arith.constant 0 : index
    %c0_20 = arith.constant 0 : index
    %c0_21 = arith.constant 0 : index
    %c0_22 = arith.constant 0 : index
    %53 = vector.load %arg4[%c0_19, %c0_20, %c0_21, %c0_22] : memref<2x4x32x24xf32, #tpu.memory_space<vmem>>, vector<1x4x32x24xf32>
    %54 = vector.shape_cast %53 : vector<1x4x32x24xf32> to vector<4x32x24xf32>
    %cst_23 = arith.constant dense<0.000000e+00> : vector<4x8x24xf32>
    %55 = tpu.matmul %52, %54, %cst_23 {dimension_numbers = #tpu.dot_dimension_numbers<[2], [1], [1], [2], [0, 0, 0, 1, 1, 2], [0], [0]>} : vector<4x8x32xf32>, vector<4x32x24xf32>, vector<4x8x24xf32> -> vector<4x8x24xf32>
    %56 = vector.extract_strided_slice %55 {offsets = [0, 0, 0], sizes = [4, 8, 8], strides = [1, 1, 1]} : vector<4x8x24xf32> to vector<4x8x8xf32>
    %57 = vector.extract_strided_slice %55 {offsets = [0, 0, 8], sizes = [4, 8, 8], strides = [1, 1, 1]} : vector<4x8x24xf32> to vector<4x8x8xf32>
    %58 = vector.extract_strided_slice %55 {offsets = [0, 0, 16], sizes = [4, 8, 8], strides = [1, 1, 1]} : vector<4x8x24xf32> to vector<4x8x8xf32>
    %cst_24 = arith.constant dense<0.000000e+00> : vector<4x8x8xf32>
    %59 = tpu.matmul %56, %57, %cst_24 {dimension_numbers = #tpu.dot_dimension_numbers<[2], [2], [1], [1], [0, 0, 0, 1, 1, 1], [0], [0]>} : vector<4x8x8xf32>, vector<4x8x8xf32>, vector<4x8x8xf32> -> vector<4x8x8xf32>
    %60 = vector.broadcast %22 : vector<1x8x8xf32> to vector<4x8x8xf32>
    %61 = arith.addf %59, %60 : vector<4x8x8xf32>
    %cst_25 = arith.constant dense<0xFF800000> : vector<4x8xf32>
    %62 = vector.multi_reduction <maximumf>, %61, %cst_25 [2] : vector<4x8x8xf32> to vector<4x8xf32>
    %63 = vector.shape_cast %62 : vector<4x8xf32> to vector<4x8x1xf32>
    %64 = vector.broadcast %63 : vector<4x8x1xf32> to vector<4x8x8xf32>
    %65 = arith.subf %61, %64 : vector<4x8x8xf32>
    %66 = math.exp %65 : vector<4x8x8xf32>
    %cst_26 = arith.constant dense<0.000000e+00> : vector<4x8xf32>
    %67 = vector.multi_reduction <add>, %66, %cst_26 [2] : vector<4x8x8xf32> to vector<4x8xf32>
    %68 = vector.shape_cast %67 : vector<4x8xf32> to vector<4x8x1xf32>
    %69 = vector.broadcast %68 : vector<4x8x1xf32> to vector<4x8x8xf32>
    %70 = arith.divf %66, %69 : vector<4x8x8xf32>
    %cst_27 = arith.constant dense<0.000000e+00> : vector<4x8x8xf32>
    %71 = tpu.matmul %70, %58, %cst_27 {dimension_numbers = #tpu.dot_dimension_numbers<[2], [1], [1], [2], [0, 0, 0, 1, 1, 2], [0], [0]>} : vector<4x8x8xf32>, vector<4x8x8xf32>, vector<4x8x8xf32> -> vector<4x8x8xf32>
    %c0_28 = arith.constant 0 : index
    %c0_29 = arith.constant 0 : index
    %c0_30 = arith.constant 0 : index
    %c0_31 = arith.constant 0 : index
    %72 = vector.load %arg5[%c0_28, %c0_29, %c0_30, %c0_31] : memref<2x4x8x32xf32, #tpu.memory_space<vmem>>, vector<1x4x8x32xf32>
    %73 = vector.shape_cast %72 : vector<1x4x8x32xf32> to vector<4x8x32xf32>
    %cst_32 = arith.constant dense<0.000000e+00> : vector<4x8x32xf32>
    %74 = tpu.matmul %71, %73, %cst_32 {dimension_numbers = #tpu.dot_dimension_numbers<[2], [1], [1], [2], [0, 0, 0, 1, 1, 2], [0], [0]>} : vector<4x8x8xf32>, vector<4x8x32xf32>, vector<4x8x32xf32> -> vector<4x8x32xf32>
    %cst_33 = arith.constant dense<0.000000e+00> : vector<8x32xf32>
    %75 = vector.multi_reduction <add>, %74, %cst_33 [0] : vector<4x8x32xf32> to vector<8x32xf32>
    %76 = arith.addf %12, %75 : vector<8x32xf32>
    %77 = vector.broadcast %25 : vector<1x32xf32> to vector<8x32xf32>
    %78 = arith.addf %76, %77 : vector<8x32xf32>
    %cst_34 = arith.constant dense<0.000000e+00> : vector<8xf32>
    %79 = vector.multi_reduction <add>, %78, %cst_34 [1] : vector<8x32xf32> to vector<8xf32>
    %80 = vector.shape_cast %79 : vector<8xf32> to vector<8x1xf32>
    %cst_35 = arith.constant 3.200000e+01 : f32
    %81 = vector.broadcast %cst_35 : f32 to vector<8x1xf32>
    %82 = arith.divf %80, %81 : vector<8x1xf32>
    %83 = vector.broadcast %82 : vector<8x1xf32> to vector<8x32xf32>
    %84 = arith.subf %78, %83 : vector<8x32xf32>
    %85 = arith.mulf %84, %84 : vector<8x32xf32>
    %cst_36 = arith.constant dense<0.000000e+00> : vector<8xf32>
    %86 = vector.multi_reduction <add>, %85, %cst_36 [1] : vector<8x32xf32> to vector<8xf32>
    %87 = vector.shape_cast %86 : vector<8xf32> to vector<8x1xf32>
    %cst_37 = arith.constant 3.200000e+01 : f32
    %88 = vector.broadcast %cst_37 : f32 to vector<8x1xf32>
    %89 = arith.divf %87, %88 : vector<8x1xf32>
    %90 = vector.broadcast %82 : vector<8x1xf32> to vector<8x32xf32>
    %91 = arith.subf %78, %90 : vector<8x32xf32>
    %cst_38 = arith.constant 9.99999974E-6 : f32
    %92 = vector.broadcast %cst_38 : f32 to vector<8x1xf32>
    %93 = arith.addf %89, %92 : vector<8x1xf32>
    %94 = math.rsqrt %93 : vector<8x1xf32>
    %95 = vector.broadcast %94 : vector<8x1xf32> to vector<8x32xf32>
    %96 = arith.mulf %91, %95 : vector<8x32xf32>
    %97 = vector.broadcast %26 : vector<1x32xf32> to vector<8x32xf32>
    %98 = arith.mulf %96, %97 : vector<8x32xf32>
    %99 = vector.broadcast %27 : vector<1x32xf32> to vector<8x32xf32>
    %100 = arith.addf %98, %99 : vector<8x32xf32>
    %c0_39 = arith.constant 0 : index
    %c0_40 = arith.constant 0 : index
    %c0_41 = arith.constant 0 : index
    %101 = vector.load %arg6[%c0_39, %c0_40, %c0_41] : memref<2x64x128xf32, #tpu.memory_space<vmem>>, vector<1x32x128xf32>
    %102 = vector.shape_cast %101 : vector<1x32x128xf32> to vector<32x128xf32>
    %cst_42 = arith.constant dense<0.000000e+00> : vector<8x128xf32>
    %103 = tpu.matmul %100, %102, %cst_42 {dimension_numbers = #tpu.dot_dimension_numbers<[1], [0], [0], [1], [0, 0, 1, 1], [], []>} : vector<8x32xf32>, vector<32x128xf32>, vector<8x128xf32> -> vector<8x128xf32>
    %104 = vector.extract_strided_slice %1 {offsets = [0, 0], sizes = [1, 128], strides = [1, 1]} : vector<2x128xf32> to vector<1x128xf32>
    %105 = vector.broadcast %104 : vector<1x128xf32> to vector<8x128xf32>
    %106 = arith.addf %103, %105 : vector<8x128xf32>
    %cst_43 = arith.constant 5.000000e-01 : f32
    %107 = vector.broadcast %cst_43 : f32 to vector<8x128xf32>
    %108 = arith.mulf %107, %106 : vector<8x128xf32>
    %cst_44 = arith.constant 4.471500e-02 : f32
    %109 = vector.broadcast %cst_44 : f32 to vector<8x128xf32>
    %110 = arith.mulf %109, %106 : vector<8x128xf32>
    %111 = arith.mulf %110, %106 : vector<8x128xf32>
    %112 = arith.mulf %111, %106 : vector<8x128xf32>
    %113 = arith.addf %106, %112 : vector<8x128xf32>
    %cst_45 = arith.constant 0.797884583 : f32
    %114 = vector.broadcast %cst_45 : f32 to vector<8x128xf32>
    %115 = arith.mulf %114, %113 : vector<8x128xf32>
    %116 = math.tanh %115 : vector<8x128xf32>
    %cst_46 = arith.constant 1.000000e+00 : f32
    %117 = vector.broadcast %cst_46 : f32 to vector<8x128xf32>
    %118 = arith.addf %117, %116 : vector<8x128xf32>
    %119 = arith.mulf %108, %118 : vector<8x128xf32>
    %c0_47 = arith.constant 0 : index
    %c32 = arith.constant 32 : index
    %c0_48 = arith.constant 0 : index
    %120 = vector.load %arg6[%c0_47, %c32, %c0_48] : memref<2x64x128xf32, #tpu.memory_space<vmem>>, vector<1x32x128xf32>
    %121 = vector.shape_cast %120 : vector<1x32x128xf32> to vector<32x128xf32>
    %cst_49 = arith.constant dense<0.000000e+00> : vector<8x32xf32>
    %122 = tpu.matmul %119, %121, %cst_49 {dimension_numbers = #tpu.dot_dimension_numbers<[1], [1], [0], [0], [0, 0, 1, 0], [], []>} : vector<8x128xf32>, vector<32x128xf32>, vector<8x32xf32> -> vector<8x32xf32>
    %123 = arith.addf %78, %122 : vector<8x32xf32>
    %124 = vector.broadcast %28 : vector<1x32xf32> to vector<8x32xf32>
    %125 = arith.addf %123, %124 : vector<8x32xf32>
    %126 = vector.extract_strided_slice %0 {offsets = [6, 0], sizes = [1, 32], strides = [1, 1]} : vector<14x32xf32> to vector<1x32xf32>
    %127 = vector.extract_strided_slice %0 {offsets = [7, 0], sizes = [1, 32], strides = [1, 1]} : vector<14x32xf32> to vector<1x32xf32>
    %128 = vector.extract_strided_slice %0 {offsets = [8, 0], sizes = [1, 32], strides = [1, 1]} : vector<14x32xf32> to vector<1x32xf32>
    %129 = vector.extract_strided_slice %0 {offsets = [9, 0], sizes = [1, 32], strides = [1, 1]} : vector<14x32xf32> to vector<1x32xf32>
    %130 = vector.extract_strided_slice %0 {offsets = [10, 0], sizes = [1, 32], strides = [1, 1]} : vector<14x32xf32> to vector<1x32xf32>
    %131 = vector.extract_strided_slice %0 {offsets = [11, 0], sizes = [1, 32], strides = [1, 1]} : vector<14x32xf32> to vector<1x32xf32>
    %cst_50 = arith.constant dense<0.000000e+00> : vector<8xf32>
    %132 = vector.multi_reduction <add>, %125, %cst_50 [1] : vector<8x32xf32> to vector<8xf32>
    %133 = vector.shape_cast %132 : vector<8xf32> to vector<8x1xf32>
    %cst_51 = arith.constant 3.200000e+01 : f32
    %134 = vector.broadcast %cst_51 : f32 to vector<8x1xf32>
    %135 = arith.divf %133, %134 : vector<8x1xf32>
    %136 = vector.broadcast %135 : vector<8x1xf32> to vector<8x32xf32>
    %137 = arith.subf %125, %136 : vector<8x32xf32>
    %138 = arith.mulf %137, %137 : vector<8x32xf32>
    %cst_52 = arith.constant dense<0.000000e+00> : vector<8xf32>
    %139 = vector.multi_reduction <add>, %138, %cst_52 [1] : vector<8x32xf32> to vector<8xf32>
    %140 = vector.shape_cast %139 : vector<8xf32> to vector<8x1xf32>
    %cst_53 = arith.constant 3.200000e+01 : f32
    %141 = vector.broadcast %cst_53 : f32 to vector<8x1xf32>
    %142 = arith.divf %140, %141 : vector<8x1xf32>
    %143 = vector.broadcast %135 : vector<8x1xf32> to vector<8x32xf32>
    %144 = arith.subf %125, %143 : vector<8x32xf32>
    %cst_54 = arith.constant 9.99999974E-6 : f32
    %145 = vector.broadcast %cst_54 : f32 to vector<8x1xf32>
    %146 = arith.addf %142, %145 : vector<8x1xf32>
    %147 = math.rsqrt %146 : vector<8x1xf32>
    %148 = vector.broadcast %147 : vector<8x1xf32> to vector<8x32xf32>
    %149 = arith.mulf %144, %148 : vector<8x32xf32>
    %150 = vector.broadcast %126 : vector<1x32xf32> to vector<8x32xf32>
    %151 = arith.mulf %149, %150 : vector<8x32xf32>
    %152 = vector.broadcast %127 : vector<1x32xf32> to vector<8x32xf32>
    %153 = arith.addf %151, %152 : vector<8x32xf32>
    %154 = vector.shape_cast %153 : vector<8x32xf32> to vector<1x8x32xf32>
    %155 = vector.broadcast %154 : vector<1x8x32xf32> to vector<4x8x32xf32>
    %c1 = arith.constant 1 : index
    %c0_55 = arith.constant 0 : index
    %c0_56 = arith.constant 0 : index
    %c0_57 = arith.constant 0 : index
    %156 = vector.load %arg4[%c1, %c0_55, %c0_56, %c0_57] : memref<2x4x32x24xf32, #tpu.memory_space<vmem>>, vector<1x4x32x24xf32>
    %157 = vector.shape_cast %156 : vector<1x4x32x24xf32> to vector<4x32x24xf32>
    %cst_58 = arith.constant dense<0.000000e+00> : vector<4x8x24xf32>
    %158 = tpu.matmul %155, %157, %cst_58 {dimension_numbers = #tpu.dot_dimension_numbers<[2], [1], [1], [2], [0, 0, 0, 1, 1, 2], [0], [0]>} : vector<4x8x32xf32>, vector<4x32x24xf32>, vector<4x8x24xf32> -> vector<4x8x24xf32>
    %159 = vector.extract_strided_slice %158 {offsets = [0, 0, 0], sizes = [4, 8, 8], strides = [1, 1, 1]} : vector<4x8x24xf32> to vector<4x8x8xf32>
    %160 = vector.extract_strided_slice %158 {offsets = [0, 0, 8], sizes = [4, 8, 8], strides = [1, 1, 1]} : vector<4x8x24xf32> to vector<4x8x8xf32>
    %161 = vector.extract_strided_slice %158 {offsets = [0, 0, 16], sizes = [4, 8, 8], strides = [1, 1, 1]} : vector<4x8x24xf32> to vector<4x8x8xf32>
    %cst_59 = arith.constant dense<0.000000e+00> : vector<4x8x8xf32>
    %162 = tpu.matmul %159, %160, %cst_59 {dimension_numbers = #tpu.dot_dimension_numbers<[2], [2], [1], [1], [0, 0, 0, 1, 1, 1], [0], [0]>} : vector<4x8x8xf32>, vector<4x8x8xf32>, vector<4x8x8xf32> -> vector<4x8x8xf32>
    %163 = vector.broadcast %22 : vector<1x8x8xf32> to vector<4x8x8xf32>
    %164 = arith.addf %162, %163 : vector<4x8x8xf32>
    %cst_60 = arith.constant dense<0xFF800000> : vector<4x8xf32>
    %165 = vector.multi_reduction <maximumf>, %164, %cst_60 [2] : vector<4x8x8xf32> to vector<4x8xf32>
    %166 = vector.shape_cast %165 : vector<4x8xf32> to vector<4x8x1xf32>
    %167 = vector.broadcast %166 : vector<4x8x1xf32> to vector<4x8x8xf32>
    %168 = arith.subf %164, %167 : vector<4x8x8xf32>
    %169 = math.exp %168 : vector<4x8x8xf32>
    %cst_61 = arith.constant dense<0.000000e+00> : vector<4x8xf32>
    %170 = vector.multi_reduction <add>, %169, %cst_61 [2] : vector<4x8x8xf32> to vector<4x8xf32>
    %171 = vector.shape_cast %170 : vector<4x8xf32> to vector<4x8x1xf32>
    %172 = vector.broadcast %171 : vector<4x8x1xf32> to vector<4x8x8xf32>
    %173 = arith.divf %169, %172 : vector<4x8x8xf32>
    %cst_62 = arith.constant dense<0.000000e+00> : vector<4x8x8xf32>
    %174 = tpu.matmul %173, %161, %cst_62 {dimension_numbers = #tpu.dot_dimension_numbers<[2], [1], [1], [2], [0, 0, 0, 1, 1, 2], [0], [0]>} : vector<4x8x8xf32>, vector<4x8x8xf32>, vector<4x8x8xf32> -> vector<4x8x8xf32>
    %c1_63 = arith.constant 1 : index
    %c0_64 = arith.constant 0 : index
    %c0_65 = arith.constant 0 : index
    %c0_66 = arith.constant 0 : index
    %175 = vector.load %arg5[%c1_63, %c0_64, %c0_65, %c0_66] : memref<2x4x8x32xf32, #tpu.memory_space<vmem>>, vector<1x4x8x32xf32>
    %176 = vector.shape_cast %175 : vector<1x4x8x32xf32> to vector<4x8x32xf32>
    %cst_67 = arith.constant dense<0.000000e+00> : vector<4x8x32xf32>
    %177 = tpu.matmul %174, %176, %cst_67 {dimension_numbers = #tpu.dot_dimension_numbers<[2], [1], [1], [2], [0, 0, 0, 1, 1, 2], [0], [0]>} : vector<4x8x8xf32>, vector<4x8x32xf32>, vector<4x8x32xf32> -> vector<4x8x32xf32>
    %cst_68 = arith.constant dense<0.000000e+00> : vector<8x32xf32>
    %178 = vector.multi_reduction <add>, %177, %cst_68 [0] : vector<4x8x32xf32> to vector<8x32xf32>
    %179 = arith.addf %125, %178 : vector<8x32xf32>
    %180 = vector.broadcast %128 : vector<1x32xf32> to vector<8x32xf32>
    %181 = arith.addf %179, %180 : vector<8x32xf32>
    %cst_69 = arith.constant dense<0.000000e+00> : vector<8xf32>
    %182 = vector.multi_reduction <add>, %181, %cst_69 [1] : vector<8x32xf32> to vector<8xf32>
    %183 = vector.shape_cast %182 : vector<8xf32> to vector<8x1xf32>
    %cst_70 = arith.constant 3.200000e+01 : f32
    %184 = vector.broadcast %cst_70 : f32 to vector<8x1xf32>
    %185 = arith.divf %183, %184 : vector<8x1xf32>
    %186 = vector.broadcast %185 : vector<8x1xf32> to vector<8x32xf32>
    %187 = arith.subf %181, %186 : vector<8x32xf32>
    %188 = arith.mulf %187, %187 : vector<8x32xf32>
    %cst_71 = arith.constant dense<0.000000e+00> : vector<8xf32>
    %189 = vector.multi_reduction <add>, %188, %cst_71 [1] : vector<8x32xf32> to vector<8xf32>
    %190 = vector.shape_cast %189 : vector<8xf32> to vector<8x1xf32>
    %cst_72 = arith.constant 3.200000e+01 : f32
    %191 = vector.broadcast %cst_72 : f32 to vector<8x1xf32>
    %192 = arith.divf %190, %191 : vector<8x1xf32>
    %193 = vector.broadcast %185 : vector<8x1xf32> to vector<8x32xf32>
    %194 = arith.subf %181, %193 : vector<8x32xf32>
    %cst_73 = arith.constant 9.99999974E-6 : f32
    %195 = vector.broadcast %cst_73 : f32 to vector<8x1xf32>
    %196 = arith.addf %192, %195 : vector<8x1xf32>
    %197 = math.rsqrt %196 : vector<8x1xf32>
    %198 = vector.broadcast %197 : vector<8x1xf32> to vector<8x32xf32>
    %199 = arith.mulf %194, %198 : vector<8x32xf32>
    %200 = vector.broadcast %129 : vector<1x32xf32> to vector<8x32xf32>
    %201 = arith.mulf %199, %200 : vector<8x32xf32>
    %202 = vector.broadcast %130 : vector<1x32xf32> to vector<8x32xf32>
    %203 = arith.addf %201, %202 : vector<8x32xf32>
    %c1_74 = arith.constant 1 : index
    %c0_75 = arith.constant 0 : index
    %c0_76 = arith.constant 0 : index
    %204 = vector.load %arg6[%c1_74, %c0_75, %c0_76] : memref<2x64x128xf32, #tpu.memory_space<vmem>>, vector<1x32x128xf32>
    %205 = vector.shape_cast %204 : vector<1x32x128xf32> to vector<32x128xf32>
    %cst_77 = arith.constant dense<0.000000e+00> : vector<8x128xf32>
    %206 = tpu.matmul %203, %205, %cst_77 {dimension_numbers = #tpu.dot_dimension_numbers<[1], [0], [0], [1], [0, 0, 1, 1], [], []>} : vector<8x32xf32>, vector<32x128xf32>, vector<8x128xf32> -> vector<8x128xf32>
    %207 = vector.extract_strided_slice %1 {offsets = [1, 0], sizes = [1, 128], strides = [1, 1]} : vector<2x128xf32> to vector<1x128xf32>
    %208 = vector.broadcast %207 : vector<1x128xf32> to vector<8x128xf32>
    %209 = arith.addf %206, %208 : vector<8x128xf32>
    %cst_78 = arith.constant 5.000000e-01 : f32
    %210 = vector.broadcast %cst_78 : f32 to vector<8x128xf32>
    %211 = arith.mulf %210, %209 : vector<8x128xf32>
    %cst_79 = arith.constant 4.471500e-02 : f32
    %212 = vector.broadcast %cst_79 : f32 to vector<8x128xf32>
    %213 = arith.mulf %212, %209 : vector<8x128xf32>
    %214 = arith.mulf %213, %209 : vector<8x128xf32>
    %215 = arith.mulf %214, %209 : vector<8x128xf32>
    %216 = arith.addf %209, %215 : vector<8x128xf32>
    %cst_80 = arith.constant 0.797884583 : f32
    %217 = vector.broadcast %cst_80 : f32 to vector<8x128xf32>
    %218 = arith.mulf %217, %216 : vector<8x128xf32>
    %219 = math.tanh %218 : vector<8x128xf32>
    %cst_81 = arith.constant 1.000000e+00 : f32
    %220 = vector.broadcast %cst_81 : f32 to vector<8x128xf32>
    %221 = arith.addf %220, %219 : vector<8x128xf32>
    %222 = arith.mulf %211, %221 : vector<8x128xf32>
    %c1_82 = arith.constant 1 : index
    %c32_83 = arith.constant 32 : index
    %c0_84 = arith.constant 0 : index
    %223 = vector.load %arg6[%c1_82, %c32_83, %c0_84] : memref<2x64x128xf32, #tpu.memory_space<vmem>>, vector<1x32x128xf32>
    %224 = vector.shape_cast %223 : vector<1x32x128xf32> to vector<32x128xf32>
    %cst_85 = arith.constant dense<0.000000e+00> : vector<8x32xf32>
    %225 = tpu.matmul %222, %224, %cst_85 {dimension_numbers = #tpu.dot_dimension_numbers<[1], [1], [0], [0], [0, 0, 1, 0], [], []>} : vector<8x128xf32>, vector<32x128xf32>, vector<8x32xf32> -> vector<8x32xf32>
    %226 = arith.addf %181, %225 : vector<8x32xf32>
    %227 = vector.broadcast %131 : vector<1x32xf32> to vector<8x32xf32>
    %228 = arith.addf %226, %227 : vector<8x32xf32>
    %229 = vector.extract_strided_slice %0 {offsets = [12, 0], sizes = [1, 32], strides = [1, 1]} : vector<14x32xf32> to vector<1x32xf32>
    %230 = vector.extract_strided_slice %0 {offsets = [13, 0], sizes = [1, 32], strides = [1, 1]} : vector<14x32xf32> to vector<1x32xf32>
    %cst_86 = arith.constant dense<0.000000e+00> : vector<8xf32>
    %231 = vector.multi_reduction <add>, %228, %cst_86 [1] : vector<8x32xf32> to vector<8xf32>
    %232 = vector.shape_cast %231 : vector<8xf32> to vector<8x1xf32>
    %cst_87 = arith.constant 3.200000e+01 : f32
    %233 = vector.broadcast %cst_87 : f32 to vector<8x1xf32>
    %234 = arith.divf %232, %233 : vector<8x1xf32>
    %235 = vector.broadcast %234 : vector<8x1xf32> to vector<8x32xf32>
    %236 = arith.subf %228, %235 : vector<8x32xf32>
    %237 = arith.mulf %236, %236 : vector<8x32xf32>
    %cst_88 = arith.constant dense<0.000000e+00> : vector<8xf32>
    %238 = vector.multi_reduction <add>, %237, %cst_88 [1] : vector<8x32xf32> to vector<8xf32>
    %239 = vector.shape_cast %238 : vector<8xf32> to vector<8x1xf32>
    %cst_89 = arith.constant 3.200000e+01 : f32
    %240 = vector.broadcast %cst_89 : f32 to vector<8x1xf32>
    %241 = arith.divf %239, %240 : vector<8x1xf32>
    %242 = vector.broadcast %234 : vector<8x1xf32> to vector<8x32xf32>
    %243 = arith.subf %228, %242 : vector<8x32xf32>
    %cst_90 = arith.constant 9.99999974E-6 : f32
    %244 = vector.broadcast %cst_90 : f32 to vector<8x1xf32>
    %245 = arith.addf %241, %244 : vector<8x1xf32>
    %246 = math.rsqrt %245 : vector<8x1xf32>
    %247 = vector.broadcast %246 : vector<8x1xf32> to vector<8x32xf32>
    %248 = arith.mulf %243, %247 : vector<8x32xf32>
    %249 = vector.broadcast %229 : vector<1x32xf32> to vector<8x32xf32>
    %250 = arith.mulf %248, %249 : vector<8x32xf32>
    %251 = vector.broadcast %230 : vector<1x32xf32> to vector<8x32xf32>
    %252 = arith.addf %250, %251 : vector<8x32xf32>
    %cst_91 = arith.constant dense<0.000000e+00> : vector<8x128xf32>
    %253 = tpu.matmul %252, %2, %cst_91 {dimension_numbers = #tpu.dot_dimension_numbers<[1], [1], [0], [0], [0, 0, 1, 0], [], []>} : vector<8x32xf32>, vector<128x32xf32>, vector<8x128xf32> -> vector<8x128xf32>
    %254 = vector.shape_cast %253 : vector<8x128xf32> to vector<1x8x128xf32>
    %c0_92 = arith.constant 0 : index
    %c0_93 = arith.constant 0 : index
    %c0_94 = arith.constant 0 : index
    %255 = vector.load %arg9[%c0_92, %c0_93, %c0_94] : memref<1x8x128xf32, #tpu.memory_space<vmem>>, vector<1x8x128xf32>
    tpu.vector_store %arg9[%c0_92, %c0_93, %c0_94], %254 {strides = array<i32>} : memref<1x8x128xf32, #tpu.memory_space<vmem>>, vector<1x8x128xf32>,
    %c64_i32 = arith.constant 64 : i32
    %256 = vector.broadcast %c64_i32 : i32 to vector<8x128xi32>
    %257 = arith.cmpi slt, %5, %256 : vector<8x128xi32>
    %cst_95 = arith.constant 0.000000e+00 : f32
    %cst_96 = arith.constant -1.000000e+30 : f32
    %258 = vector.broadcast %cst_95 : f32 to vector<8x128xf32>
    %259 = vector.broadcast %cst_96 : f32 to vector<8x128xf32>
    %260 = arith.select %257, %258, %259 : vector<8x128xi1>, vector<8x128xf32>
    %261 = arith.addf %253, %260 : vector<8x128xf32>
    %cst_97 = arith.constant dense<0xFF800000> : vector<8xf32>
    %262 = vector.multi_reduction <maximumf>, %261, %cst_97 [1] : vector<8x128xf32> to vector<8xf32>
    %263 = vector.shape_cast %262 : vector<8xf32> to vector<8x1xf32>
    %264 = vector.broadcast %263 : vector<8x1xf32> to vector<8x128xf32>
    %265 = arith.subf %261, %264 : vector<8x128xf32>
    %266 = math.exp %265 : vector<8x128xf32>
    %cst_98 = arith.constant dense<0.000000e+00> : vector<8xf32>
    %267 = vector.multi_reduction <add>, %266, %cst_98 [1] : vector<8x128xf32> to vector<8xf32>
    %268 = vector.shape_cast %267 : vector<8xf32> to vector<8x1xf32>
    %269 = math.log %268 : vector<8x1xf32>
    %270 = arith.addf %269, %263 : vector<8x1xf32>
    %c1_i32 = arith.constant 1 : i32
    %271 = vector.broadcast %c1_i32 : i32 to vector<8x8xi32>
    %272 = arith.addi %13, %271 : vector<8x8xi32>
    %273 = arith.cmpi eq, %14, %272 : vector<8x8xi32>
    %274 = arith.extui %273 : vector<8x8xi1> to vector<8x8xi32>
    %275 = arith.sitofp %274 : vector<8x8xi32> to vector<8x8xf32>
    %cst_99 = arith.constant dense<0.000000e+00> : vector<8x128xf32>
    %276 = tpu.matmul %275, %9, %cst_99 {dimension_numbers = #tpu.dot_dimension_numbers<[1], [0], [0], [1], [0, 0, 1, 1], [], []>} : vector<8x8xf32>, vector<8x128xf32>, vector<8x128xf32> -> vector<8x128xf32>
    %277 = tpu.iota {dimensions = array<i32: 0>} : vector<8x1xi32>
    %c7_i32 = arith.constant 7 : i32
    %278 = vector.broadcast %c7_i32 : i32 to vector<8x1xi32>
    %279 = arith.cmpi slt, %277, %278 : vector<8x1xi32>
    %280 = arith.extui %279 : vector<8x1xi1> to vector<8x1xi32>
    %281 = arith.sitofp %280 : vector<8x1xi32> to vector<8x1xf32>
    %282 = arith.mulf %270, %281 : vector<8x1xf32>
    %cst_100 = arith.constant dense<0.000000e+00> : vector<1xf32>
    %283 = vector.multi_reduction <add>, %282, %cst_100 [0] : vector<8x1xf32> to vector<1xf32>
    %284 = vector.shape_cast %283 : vector<1xf32> to vector<1x1xf32>
    %285 = arith.mulf %253, %276 : vector<8x128xf32>
    %cst_101 = arith.constant dense<0.000000e+00> : vector<8xf32>
    %286 = vector.multi_reduction <add>, %285, %cst_101 [1] : vector<8x128xf32> to vector<8xf32>
    %287 = vector.shape_cast %286 : vector<8xf32> to vector<8x1xf32>
    %cst_102 = arith.constant dense<0.000000e+00> : vector<1xf32>
    %288 = vector.multi_reduction <add>, %287, %cst_102 [0] : vector<8x1xf32> to vector<1xf32>
    %289 = vector.shape_cast %288 : vector<1xf32> to vector<1x1xf32>
    %290 = arith.subf %284, %289 : vector<1x1xf32>
    %cst_103 = arith.constant 0.0714285746 : f32
    %291 = vector.broadcast %cst_103 : f32 to vector<1x1xf32>
    %292 = arith.mulf %290, %291 : vector<1x1xf32>
    %293 = vector.shape_cast %292 : vector<1x1xf32> to vector<1x1x1xf32>
    %294 = vector.shape_cast %293 : vector<1x1x1xf32> to vector<1x1x1xf32>
    %295 = vector.broadcast %294 : vector<1x1x1xf32> to vector<1x1x128xf32>
    %c0_104 = arith.constant 0 : index
    %c0_105 = arith.constant 0 : index
    %c0_106 = arith.constant 0 : index
    %296 = vector.load %arg10[%c0_104, %c0_105, %c0_106] : memref<1x1x128xf32, #tpu.memory_space<vmem>>, vector<1x1x128xf32>
    tpu.vector_store %arg10[%c0_104, %c0_105, %c0_106], %295 {strides = array<i32>} : memref<1x1x128xf32, #tpu.memory_space<vmem>>, vector<1x1x128xf32>,
    return
  }
  func.func @transform_0(%arg0: i32) -> (i32, i32, i32) {
    %c0_i32 = arith.constant 0 : i32
    %c0_i32_0 = arith.constant 0 : i32
    %c0_i32_1 = arith.constant 0 : i32
    return %arg0, %c0_i32, %c0_i32_0 : i32, i32, i32
  }
  func.func @transform_1(%arg0: i32) -> (i32, i32, i32) {
    %c0_i32 = arith.constant 0 : i32
    %c0_i32_0 = arith.constant 0 : i32
    %c0_i32_1 = arith.constant 0 : i32
    return %arg0, %c0_i32, %c0_i32_0 : i32, i32, i32
  }
  func.func @transform_2(%arg0: i32) -> (i32, i32) {
    %c0_i32 = arith.constant 0 : i32
    %c0_i32_0 = arith.constant 0 : i32
    %c0_i32_1 = arith.constant 0 : i32
    return %c0_i32, %c0_i32_0 : i32, i32
  }
  func.func @transform_3(%arg0: i32) -> (i32, i32, i32, i32) {
    %c0_i32 = arith.constant 0 : i32
    %c0_i32_0 = arith.constant 0 : i32
    %c0_i32_1 = arith.constant 0 : i32
    %c0_i32_2 = arith.constant 0 : i32
    %c0_i32_3 = arith.constant 0 : i32
    return %c0_i32, %c0_i32_0, %c0_i32_1, %c0_i32_2 : i32, i32, i32, i32
  }
  func.func @transform_4(%arg0: i32) -> (i32, i32, i32, i32) {
    %c0_i32 = arith.constant 0 : i32
    %c0_i32_0 = arith.constant 0 : i32
    %c0_i32_1 = arith.constant 0 : i32
    %c0_i32_2 = arith.constant 0 : i32
    %c0_i32_3 = arith.constant 0 : i32
    return %c0_i32, %c0_i32_0, %c0_i32_1, %c0_i32_2 : i32, i32, i32, i32
  }
  func.func @transform_5(%arg0: i32) -> (i32, i32, i32) {
    %c0_i32 = arith.constant 0 : i32
    %c0_i32_0 = arith.constant 0 : i32
    %c0_i32_1 = arith.constant 0 : i32
    %c0_i32_2 = arith.constant 0 : i32
    return %c0_i32, %c0_i32_0, %c0_i32_1 : i32, i32, i32
  }
  func.func @transform_6(%arg0: i32) -> (i32, i32) {
    %c0_i32 = arith.constant 0 : i32
    %c0_i32_0 = arith.constant 0 : i32
    %c0_i32_1 = arith.constant 0 : i32
    return %c0_i32, %c0_i32_0 : i32, i32
  }
  func.func @transform_7(%arg0: i32) -> (i32, i32) {
    %c0_i32 = arith.constant 0 : i32
    %c0_i32_0 = arith.constant 0 : i32
    %c0_i32_1 = arith.constant 0 : i32
    return %c0_i32, %c0_i32_0 : i32, i32
  }
  func.func @transform_8(%arg0: i32) -> (i32, i32, i32) {
    %c0_i32 = arith.constant 0 : i32
    %c0_i32_0 = arith.constant 0 : i32
    %c0_i32_1 = arith.constant 0 : i32
    return %arg0, %c0_i32, %c0_i32_0 : i32, i32, i32
  }
  func.func @transform_9(%arg0: i32) -> (i32, i32, i32) {
    %c0_i32 = arith.constant 0 : i32
    %c0_i32_0 = arith.constant 0 : i32
    %c0_i32_1 = arith.constant 0 : i32
    return %arg0, %c0_i32, %c0_i32_0 : i32, i32, i32
  }
}

</mosaic_0001>

<llo_original>
// kernel: forward.1
$region0: #{forward.1}
  #allocation0 [shape = 'u32[]', space=smem, size = 0x4, offset = 0x4, fixed_abs, tag = 'smem constant byte address 0x4 - core index']
  #allocation1 [shape = 'u32[144,128]{1,0:T(1,128)}', space=vmem, size = 0x12000, scoped, tag = 'internal scratch']
  %s0 = inlined_call_operand.vmem [shape: s32[2,8,1], index: 0, kind: input, shape index: {}]
  %s1 = inlined_call_operand.vmem [shape: f32[2,1,8], index: 1, kind: input, shape index: {}]
  %s2 = inlined_call_operand.vmem [shape: f32[144,32], index: 2, kind: input, shape index: {}]
  %s3 = inlined_call_operand.vmem [shape: f32[2,4,32,24], index: 3, kind: input, shape index: {}]
  %s4 = inlined_call_operand.vmem [shape: f32[2,4,8,32], index: 4, kind: input, shape index: {}]
  %s5 = inlined_call_operand.vmem [shape: f32[2,64,128], index: 5, kind: input, shape index: {}]
  %s6 = inlined_call_operand.vmem [shape: f32[14,32], index: 6, kind: input, shape index: {}]
  %s7 = inlined_call_operand.vmem [shape: f32[2,128], index: 7, kind: input, shape index: {}]
  %s8 = inlined_call_operand.hbm [shape: f32[2,8,128], index: 8, kind: output, shape index: {0}]
  %s9 = inlined_call_operand.vmem [shape: f32[2,1,128], index: 9, kind: output, shape index: {1}]
  %10 = xla_tuple %s8, %s9
  %s11 = sld [smem:[#allocation0]]
  $region73: #{forward.1} parent=0
    _
  %s13 = ssub.s32 1, %s11
  %s14 = scalar_select 0, %s13, %s11
  $region1: #{forward.1} parent=0
    #allocation2 [shape = 'u8[8192]{0}', space=vmem, size = 0x2000, scoped, tag = 'output window, operand 0']
    #allocation3 [shape = 's32[2]{0}', space=sflag, size = 0x8, scoped, tag = 'scoped memory for forward.1']
    %15 = vsyncpa [#allocation3], 0
    %s16 = scalar_lea.sflag [#allocation3], 1
    %17 = vsyncpa %s16, 0
    loop: start=0, step=1, limit=4
    $region2: #{forward.1} parent=1 // loop_pre_header
      _
    $region3: #{forward.1} parent=1 // loop_header
      %s19 = sphi 0, %s23
      %p20 = scmp.ge.s32.totalorder %s19, 4
      %s29 = sphi 0, %s31
      %s32 = sphi 0, %s29
      %s33 = sphi 0, %s32
      %s49 = sphi 0, %s33
      %s55 = sphi 0, %s57
      %s58 = sphi 0, %s55
      %s59 = sphi 0, %s58
      %s75 = sphi 0, %s59
      %s79 = sphi 0, %s79
      %s81 = sphi 0, %s79
      %s82 = sphi 0, %s81
      %s96 = sphi 0, %s82
      %s100 = sphi 0, %s100
      %s102 = sphi 0, %s100
      %s103 = sphi 0, %s102
      %s117 = sphi 0, %s103
      %s121 = sphi 0, %s121
      %s123 = sphi 0, %s121
      %s124 = sphi 0, %s123
      %s138 = sphi 0, %s124
      %s142 = sphi 0, %s142
      %s144 = sphi 0, %s142
      %s145 = sphi 0, %s144
      %s159 = sphi 0, %s145
      %s163 = sphi 0, %s163
      %s165 = sphi 0, %s163
      %s166 = sphi 0, %s165
      %s180 = sphi 0, %s166
      %s184 = sphi 0, %s184
      %s186 = sphi 0, %s184
      %s187 = sphi 0, %s186
      %s201 = sphi 0, %s187
      %s207 = sphi 0, %s209
      %s210 = sphi 0, %s207
      %s211 = sphi 0, %s210
      %s227 = sphi 0, %s211
      %s233 = sphi 0, %s235
      %s236 = sphi 0, %s233
      %s237 = sphi 0, %s236
      %s253 = sphi 0, %s237
    $region4: #{forward.1} parent=1 // loop_header_branch
      %22 = sbr.rel (%p20) target = $region8
    $region5: #{forward.1} parent=1 // loop_body
      %s24 = ssub.s32 %s19, 1
      %s25 = ssub.s32 %s19, 2
      %s26 = sadd.s32 %s19, 1
      %s27 = ssub.s32 %s19, %s26
      %p28 = scmp.eq.s32.totalorder %s27, 0
      %s30 = sadd.s32 %s29, 1
      %s31 = scalar_select %p28, %s29, %s30
      %p34 = pneg %p28
      %p35 = scmp.eq.s32.totalorder %s19, 1
      %p36 = por %p34, %p35
      %p37 = scmp.ne.s32.totalorder %s29, %s32
      %p38 = scmp.eq.s32.totalorder %s19, 0
      %p39 = por %p37, %p38
      %p40 = scmp.ne.s32.totalorder %s29, %s32
      %p41 = scmp.eq.s32.totalorder %s24, 1
      %p42 = por %p40, %p41
      %p43 = scmp.ne.s32.totalorder %s32, %s33
      %p44 = scmp.eq.s32.totalorder %s24, 0
      %p45 = por %p43, %p44
      %p46 = scmp.ne.s32.totalorder %s32, %s33
      %p47 = scmp.eq.s32.totalorder %s25, 1
      %p48 = por %p46, %p47
      %p50 = scmp.ne.s32.totalorder %s33, %s49
      %p51 = scmp.eq.s32.totalorder %s25, 0
      %p52 = por %p50, %p51
      %s53 = ssub.s32 %s19, %s26
      %p54 = scmp.eq.s32.totalorder %s53, 0
      %s56 = sadd.s32 %s55, 1
      %s57 = scalar_select %p54, %s55, %s56
      %p60 = pneg %p54
      %p61 = scmp.eq.s32.totalorder %s19, 1
      %p62 = por %p60, %p61
      %p63 = scmp.ne.s32.totalorder %s55, %s58
      %p64 = scmp.eq.s32.totalorder %s19, 0
      %p65 = por %p63, %p64
      %p66 = scmp.ne.s32.totalorder %s55, %s58
      %p67 = scmp.eq.s32.totalorder %s24, 1
      %p68 = por %p66, %p67
      %p69 = scmp.ne.s32.totalorder %s58, %s59
      %p70 = scmp.eq.s32.totalorder %s24, 0
      %p71 = por %p69, %p70
      %p72 = scmp.ne.s32.totalorder %s58, %s59
      %p73 = scmp.eq.s32.totalorder %s25, 1
      %p74 = por %p72, %p73
      %p76 = scmp.ne.s32.totalorder %s59, %s75
      %p77 = scmp.eq.s32.totalorder %s25, 0
      %p78 = por %p76, %p77
      %s80 = sadd.s32 %s79, 1
      %p83 = scmp.eq.s32.totalorder %s19, 1
      %p84 = scmp.ne.s32.totalorder %s79, %s81
      %p85 = scmp.eq.s32.totalorder %s19, 0
      %p86 = por %p84, %p85
      %p87 = scmp.ne.s32.totalorder %s79, %s81
      %p88 = scmp.eq.s32.totalorder %s24, 1
      %p89 = por %p87, %p88
      %p90 = scmp.ne.s32.totalorder %s81, %s82
      %p91 = scmp.eq.s32.totalorder %s24, 0
      %p92 = por %p90, %p91
      %p93 = scmp.ne.s32.totalorder %s81, %s82
      %p94 = scmp.eq.s32.totalorder %s25, 1
      %p95 = por %p93, %p94
      %p97 = scmp.ne.s32.totalorder %s82, %s96
      %p98 = scmp.eq.s32.totalorder %s25, 0
      %p99 = por %p97, %p98
      %s101 = sadd.s32 %s100, 1
      %p104 = scmp.eq.s32.totalorder %s19, 1
      %p105 = scmp.ne.s32.totalorder %s100, %s102
      %p106 = scmp.eq.s32.totalorder %s19, 0
      %p107 = por %p105, %p106
      %p108 = scmp.ne.s32.totalorder %s100, %s102
      %p109 = scmp.eq.s32.totalorder %s24, 1
      %p110 = por %p108, %p109
      %p111 = scmp.ne.s32.totalorder %s102, %s103
      %p112 = scmp.eq.s32.totalorder %s24, 0
      %p113 = por %p111, %p112
      %p114 = scmp.ne.s32.totalorder %s102, %s103
      %p115 = scmp.eq.s32.totalorder %s25, 1
      %p116 = por %p114, %p115
      %p118 = scmp.ne.s32.totalorder %s103, %s117
      %p119 = scmp.eq.s32.totalorder %s25, 0
      %p120 = por %p118, %p119
      %s122 = sadd.s32 %s121, 1
      %p125 = scmp.eq.s32.totalorder %s19, 1
      %p126 = scmp.ne.s32.totalorder %s121, %s123
      %p127 = scmp.eq.s32.totalorder %s19, 0
      %p128 = por %p126, %p127
      %p129 = scmp.ne.s32.totalorder %s121, %s123
      %p130 = scmp.eq.s32.totalorder %s24, 1
      %p131 = por %p129, %p130
      %p132 = scmp.ne.s32.totalorder %s123, %s124
      %p133 = scmp.eq.s32.totalorder %s24, 0
      %p134 = por %p132, %p133
      %p135 = scmp.ne.s32.totalorder %s123, %s124
      %p136 = scmp.eq.s32.totalorder %s25, 1
      %p137 = por %p135, %p136
      %p139 = scmp.ne.s32.totalorder %s124, %s138
      %p140 = scmp.eq.s32.totalorder %s25, 0
      %p141 = por %p139, %p140
      %s143 = sadd.s32 %s142, 1
      %p146 = scmp.eq.s32.totalorder %s19, 1
      %p147 = scmp.ne.s32.totalorder %s142, %s144
      %p148 = scmp.eq.s32.totalorder %s19, 0
      %p149 = por %p147, %p148
      %p150 = scmp.ne.s32.totalorder %s142, %s144
      %p151 = scmp.eq.s32.totalorder %s24, 1
      %p152 = por %p150, %p151
      %p153 = scmp.ne.s32.totalorder %s144, %s145
      %p154 = scmp.eq.s32.totalorder %s24, 0
      %p155 = por %p153, %p154
      %p156 = scmp.ne.s32.totalorder %s144, %s145
      %p157 = scmp.eq.s32.totalorder %s25, 1
      %p158 = por %p156, %p157
      %p160 = scmp.ne.s32.totalorder %s145, %s159
      %p161 = scmp.eq.s32.totalorder %s25, 0
      %p162 = por %p160, %p161
      %s164 = sadd.s32 %s163, 1
      %p167 = scmp.eq.s32.totalorder %s19, 1
      %p168 = scmp.ne.s32.totalorder %s163, %s165
      %p169 = scmp.eq.s32.totalorder %s19, 0
      %p170 = por %p168, %p169
      %p171 = scmp.ne.s32.totalorder %s163, %s165
      %p172 = scmp.eq.s32.totalorder %s24, 1
      %p173 = por %p171, %p172
      %p174 = scmp.ne.s32.totalorder %s165, %s166
      %p175 = scmp.eq.s32.totalorder %s24, 0
      %p176 = por %p174, %p175
      %p177 = scmp.ne.s32.totalorder %s165, %s166
      %p178 = scmp.eq.s32.totalorder %s25, 1
      %p179 = por %p177, %p178
      %p181 = scmp.ne.s32.totalorder %s166, %s180
      %p182 = scmp.eq.s32.totalorder %s25, 0
      %p183 = por %p181, %p182
      %s185 = sadd.s32 %s184, 1
      %p188 = scmp.eq.s32.totalorder %s19, 1
      %p189 = scmp.ne.s32.totalorder %s184, %s186
      %p190 = scmp.eq.s32.totalorder %s19, 0
      %p191 = por %p189, %p190
      %p192 = scmp.ne.s32.totalorder %s184, %s186
      %p193 = scmp.eq.s32.totalorder %s24, 1
      %p194 = por %p192, %p193
      %p195 = scmp.ne.s32.totalorder %s186, %s187
      %p196 = scmp.eq.s32.totalorder %s24, 0
      %p197 = por %p195, %p196
      %p198 = scmp.ne.s32.totalorder %s186, %s187
      %p199 = scmp.eq.s32.totalorder %s25, 1
      %p200 = por %p198, %p199
      %p202 = scmp.ne.s32.totalorder %s187, %s201
      %p203 = scmp.eq.s32.totalorder %s25, 0
      %p204 = por %p202, %p203
      %s205 = ssub.s32 %s19, %s26
      %p206 = scmp.eq.s32.totalorder %s205, 0
      %s208 = sadd.s32 %s207, 1
      %s209 = scalar_select %p206, %s207, %s208
      %p212 = pneg %p206
      %p213 = scmp.eq.s32.totalorder %s19, 1
      %p214 = por %p212, %p213
      %p215 = scmp.ne.s32.totalorder %s207, %s210
      %p216 = scmp.eq.s32.totalorder %s19, 0
      %p217 = por %p215, %p216
      %p218 = scmp.ne.s32.totalorder %s207, %s210
      %p219 = scmp.eq.s32.totalorder %s24, 1
      %p220 = por %p218, %p219
      %p221 = scmp.ne.s32.totalorder %s210, %s211
      %p222 = scmp.eq.s32.totalorder %s24, 0
      %p223 = por %p221, %p222
      %p224 = scmp.ne.s32.totalorder %s210, %s211
      %p225 = scmp.eq.s32.totalorder %s25, 1
      %p226 = por %p224, %p225
      %p228 = scmp.ne.s32.totalorder %s211, %s227
      %p229 = scmp.eq.s32.totalorder %s25, 0
      %p230 = por %p228, %p229
      %s231 = ssub.s32 %s19, %s26
      %p232 = scmp.eq.s32.totalorder %s231, 0
      %s234 = sadd.s32 %s233, 1
      %s235 = scalar_select %p232, %s233, %s234
      %p238 = pneg %p232
      %p239 = scmp.eq.s32.totalorder %s19, 1
      %p240 = por %p238, %p239
      %p241 = scmp.ne.s32.totalorder %s233, %s236
      %p242 = scmp.eq.s32.totalorder %s19, 0
      %p243 = por %p241, %p242
      %p244 = scmp.ne.s32.totalorder %s233, %s236
      %p245 = scmp.eq.s32.totalorder %s24, 1
      %p246 = por %p244, %p245
      %p247 = scmp.ne.s32.totalorder %s236, %s237
      %p248 = scmp.eq.s32.totalorder %s24, 0
      %p249 = por %p247, %p248
      %p250 = scmp.ne.s32.totalorder %s236, %s237
      %p251 = scmp.eq.s32.totalorder %s25, 1
      %p252 = por %p250, %p251
      %p254 = scmp.ne.s32.totalorder %s237, %s253
      %p255 = scmp.eq.s32.totalorder %s25, 0
      %p256 = por %p254, %p255
      %p257 = scmp.le.s32.totalorder 1, %s19
      %p258 = scmp.lt.s32.totalorder %s19, 3
      %p259 = pnand %p257, %p258
      %p260 = pneg %p259
      // Predicated region
      $region9: #{forward.1} parent=5 // pred_check
        _
      $region10: #{forward.1} parent=5 // pred_check_branch
        %262 = sbr.rel (%p259) target = $region12
      $region11: #{forward.1} parent=5 // pred_region
        %s263 = ssub.s32 %s19, 1
        // Predicated region
        $region13: #{forward.1} parent=11 // pred_check
          %p264 = pneg %p92
        $region14: #{forward.1} parent=11 // pred_check_branch
          %266 = sbr.rel (%p264) target = $region16
        $region15: #{forward.1} parent=11 // pred_region
          _
        $region16: #{forward.1} parent=11 // pred_fallthru
          _
        // Predicated region
        $region17: #{forward.1} parent=11 // pred_check
          %p267 = pneg %p113
        $region18: #{forward.1} parent=11 // pred_check_branch
          %269 = sbr.rel (%p267) target = $region20
        $region19: #{forward.1} parent=11 // pred_region
          _
        $region20: #{forward.1} parent=11 // pred_fallthru
          _
        // Predicated region
        $region21: #{forward.1} parent=11 // pred_check
          %p270 = pneg %p134
        $region22: #{forward.1} parent=11 // pred_check_branch
          %272 = sbr.rel (%p270) target = $region24
        $region23: #{forward.1} parent=11 // pred_region
          _
        $region24: #{forward.1} parent=11 // pred_fallthru
          _
        // Predicated region
        $region25: #{forward.1} parent=11 // pred_check
          %p273 = pneg %p155
        $region26: #{forward.1} parent=11 // pred_check_branch
          %275 = sbr.rel (%p273) target = $region28
        $region27: #{forward.1} parent=11 // pred_region
          _
        $region28: #{forward.1} parent=11 // pred_fallthru
          _
        // Predicated region
        $region29: #{forward.1} parent=11 // pred_check
          %p276 = pneg %p176
        $region30: #{forward.1} parent=11 // pred_check_branch
          %278 = sbr.rel (%p276) target = $region32
        $region31: #{forward.1} parent=11 // pred_region
          _
        $region32: #{forward.1} parent=11 // pred_fallthru
          _
        // Predicated region
        $region33: #{forward.1} parent=11 // pred_check
          %p279 = pneg %p197
        $region34: #{forward.1} parent=11 // pred_check_branch
          %281 = sbr.rel (%p279) target = $region36
        $region35: #{forward.1} parent=11 // pred_region
          _
        $region36: #{forward.1} parent=11 // pred_fallthru
          _
      $region12: #{forward.1} parent=5 // pred_fallthru
        _
      %p282 = scmp.lt.s32.totalorder %s19, 2
      // Predicated region
      $region37: #{forward.1} parent=5 // pred_check
        %p283 = pneg %p282
      $region38: #{forward.1} parent=5 // pred_check_branch
        %285 = sbr.rel (%p283) target = $region40
      $region39: #{forward.1} parent=5 // pred_region
        // Predicated region
        $region41: #{forward.1} parent=39 // pred_check
          %p286 = pneg %p39
        $region42: #{forward.1} parent=39 // pred_check_branch
          %288 = sbr.rel (%p286) target = $region44
        $region43: #{forward.1} parent=39 // pred_region
          %p289 = scmp.lt.s32.totalorder %s19, 1
          %s290 = scalar_select %p289, %s19, 1
          %s291 = smul.addr %s290, 8
          %s292 = scalar_lea.vmem %s0, %s291
        $region44: #{forward.1} parent=39 // pred_fallthru
          _
        // Predicated region
        $region45: #{forward.1} parent=39 // pred_check
          %p293 = pneg %p65
        $region46: #{forward.1} parent=39 // pred_check_branch
          %295 = sbr.rel (%p293) target = $region48
        $region47: #{forward.1} parent=39 // pred_region
          %p296 = scmp.lt.s32.totalorder %s19, 1
          %s297 = scalar_select %p296, %s19, 1
          %s298 = scalar_lea.vmem %s1, %s297
        $region48: #{forward.1} parent=39 // pred_fallthru
          _
      $region40: #{forward.1} parent=5 // pred_fallthru
        _
      %p299 = scmp.le.s32.totalorder 1, %s19
      %p300 = scmp.lt.s32.totalorder %s19, 3
      %p301 = pnand %p299, %p300
      %p302 = pneg %p301
      // Predicated region
      $region49: #{forward.1} parent=5 // pred_check
        _
      $region50: #{forward.1} parent=5 // pred_check_branch
        %304 = sbr.rel (%p301) target = $region52
      $region51: #{forward.1} parent=5 // pred_region
        %s305 = ssub.s32 %s19, 1
        %p306 = scmp.lt.s32.totalorder %s24, 1
        %s307 = scalar_select %p306, %s24, 1
        %s308 = smul.addr %s307, 8
        %s309 = scalar_lea.vmem %s0, %s308
        %p310 = pneg %p45
        %p311 = pneg %p42
        %p312 = scmp.lt.s32.totalorder %s24, 1
        %s313 = scalar_select %p312, %s24, 1
        %s314 = scalar_lea.vmem %s1, %s313
        %p315 = pneg %p71
        %p316 = pneg %p68
        %p317 = pneg %p92
        %p318 = pneg %p89
        %p319 = pneg %p113
        %p320 = pneg %p110
        %p321 = pneg %p134
        %p322 = pneg %p131
        %p323 = pneg %p155
        %p324 = pneg %p152
        %p325 = pneg %p176
        %p326 = pneg %p173
        %p327 = pneg %p197
        %p328 = pneg %p194
        %p329 = pneg %p223
        %p330 = pneg %p220
        %s331 = sand.u32 %s210, 1
        %s332 = scalar_lea.sflag [#allocation3], %s331
        %s333 = sand.u32 %s210, 1
        %s334 = smul.addr %s333, 8
        %s335 = scalar_lea.vmem [#allocation2], %s334
        %p336 = pneg %p249
        %p337 = pneg %p246
        %p338 = scmp.lt.s32.totalorder %s24, 1
        %s339 = scalar_select %p338, %s24, 1
        %s340 = scalar_lea.vmem %s9, %s339
        %p341 = scmp.lt.s32.totalorder %s24, 1
        %s342 = scalar_select %p341, %s24, 1
        %s343 = smul.addr %s342, 8
        %s344 = scalar_lea.vmem %s0, %s343
        %p345 = scmp.lt.s32.totalorder %s24, 1
        %s346 = scalar_select %p345, %s24, 1
        %s347 = scalar_lea.vmem %s1, %s346
        %p348 = scmp.lt.s32.totalorder %s24, 1
        %s349 = scalar_select %p348, %s24, 1
        %s350 = scalar_lea.vmem %s9, %s349
        %v351 = vld [vmem:[%s6] sm:$0xff]
        %v352 = vld [vmem:[%s6 + $0x8] sm:$0x3f]
        %v353 = vld [vmem:[%s7] sm:$0x3]
        %v354 = vld [vmem:[%s2] sm:$0xff]
        %v355 = vld [vmem:[%s2 + $0x8] sm:$0xff]
        %v356 = vld [vmem:[%s2 + $0x10] sm:$0xff]
        %v357 = vld [vmem:[%s2 + $0x18] sm:$0xff]
        %v358 = vld [vmem:[%s2 + $0x20] sm:$0xff]
        %v359 = vld [vmem:[%s2 + $0x28] sm:$0xff]
        %v360 = vld [vmem:[%s2 + $0x30] sm:$0xff]
        %v361 = vld [vmem:[%s2 + $0x38] sm:$0xff]
        %v362 = vld [vmem:[%s2 + $0x40] sm:$0xff]
        %v363 = vld [vmem:[%s2 + $0x48] sm:$0xff]
        %v364 = vld [vmem:[%s2 + $0x50] sm:$0xff]
        %v365 = vld [vmem:[%s2 + $0x58] sm:$0xff]
        %v366 = vld [vmem:[%s2 + $0x60] sm:$0xff]
        %v367 = vld [vmem:[%s2 + $0x68] sm:$0xff]
        %v368 = vld [vmem:[%s2 + $0x70] sm:$0xff]
        %v369 = vld [vmem:[%s2 + $0x78] sm:$0xff]
        %v370 = vld [vmem:[%s344] sm:$0xff]
        %v371 = vlaneseq
        %v372 = vand.u32 %v371, 127
        %373 = vset.pattern.permute.xlu0 0
        %374 = vperm.xlu0 %373, %v370
        %v375 = vpop.permute.xlu0 %374
        %vm376 = vcmp.eq.s32.totalorder %v372, %v375
        %v377 = vsel %vm376, 1, 0
        %v378 = vcvt.s32.f32 %v377
        %v379 = vld [vmem:[%s2 + $0x80] sm:$0xff]
        %380 = vmatprep.subr.mxu0 0.0
        %381 = vmatpush1.msra.mxu0 %v354
        %382 = vmatprep.subr.mxu0 0.0
        %383 = vmatpush1.msra.mxu0 %v355
        %384 = vmatprep.subr.mxu0 0.0
        %385 = vmatpush1.msra.mxu0 %v356
        %386 = vmatprep.subr.mxu0 0.0
        %387 = vmatpush1.msra.mxu0 %v357
        %388 = vmatprep.subr.mxu0 0.0
        %389 = vmatpush1.msra.mxu0 %v358
        %390 = vmatprep.subr.mxu0 0.0
        %391 = vmatpush1.msra.mxu0 %v359
        %392 = vmatprep.subr.mxu0 0.0
        %393 = vmatpush1.msra.mxu0 %v360
        %394 = vmatprep.subr.mxu0 0.0
        %395 = vmatpush1.msra.mxu0 %v361
        %396 = vmatprep.subr.mxu0 0.0
        %397 = vmatpush1.msra.mxu0 %v362
        %398 = vmatprep.subr.mxu0 0.0
        %399 = vmatpush1.msra.mxu0 %v363
        %400 = vmatprep.subr.mxu0 0.0
        %401 = vmatpush1.msra.mxu0 %v364
        %402 = vmatprep.subr.mxu0 0.0
        %403 = vmatpush1.msra.mxu0 %v365
        %404 = vmatprep.subr.mxu0 0.0
        %405 = vmatpush1.msra.mxu0 %v366
        %406 = vmatprep.subr.mxu0 0.0
        %407 = vmatpush1.msra.mxu0 %v367
        %408 = vmatprep.subr.mxu0 0.0
        %409 = vmatpush1.msra.mxu0 %v368
        %410 = vmatprep.subr.mxu0 0.0
        %411 = vmatpush1.msra.mxu0 %v369
        %412 = vmatprep.subr.mxu0 0.0
        %413 = vmatpush1.msra.mxu0 0.0
        %414 = vmatprep.subr.mxu0 0.0
        %415 = vmatpush1.msra.mxu0 0.0
        %416 = vmatprep.subr.mxu0 0.0
        %417 = vmatpush1.msra.mxu0 0.0
        %418 = vmatprep.subr.mxu0 0.0
        %419 = vmatpush1.msra.mxu0 0.0
        %420 = vmatprep.subr.mxu0 0.0
        %421 = vmatpush1.msra.mxu0 0.0
        %422 = vmatprep.subr.mxu0 0.0
        %423 = vmatpush1.msra.mxu0 0.0
        %424 = vmatprep.subr.mxu0 0.0
        %425 = vmatpush1.msra.mxu0 0.0
        %426 = vmatprep.subr.mxu0 0.0
        %427 = vmatpush1.msra.mxu0 0.0
        %428 = vmatprep.subr.mxu0 0.0
        %429 = vmatpush1.msra.mxu0 0.0
        %430 = vmatprep.subr.mxu0 0.0
        %431 = vmatpush1.msra.mxu0 0.0
        %432 = vmatprep.subr.mxu0 0.0
        %433 = vmatpush1.msra.mxu0 0.0
        %434 = vmatprep.subr.mxu0 0.0
        %435 = vmatpush1.msra.mxu0 0.0
        %436 = vmatprep.subr.mxu0 0.0
        %437 = vmatpush1.msra.mxu0 0.0
        %438 = vmatprep.subr.mxu0 0.0
        %439 = vmatpush1.msra.mxu0 0.0
        %440 = vmatprep.subr.mxu0 0.0
        %441 = vmatpush1.msra.mxu0 0.0
        %442 = vmatprep.subr.mxu0 0.0
        %443 = vmatpush1.msra.mxu0 0.0
        %444 = vmatprep.mubr.f32.mxu0 0.0
        %445 = vmatmul.mubr.f32.gmra.mrb[0].mxu0 %v378
        %v446 = vpop.f32.mrb[0].mxu0
        %v447 = vadd.f32 %v379, %v446
        %v448 = vpop.f32.mrb[0].mxu0
        %449 = vdwg.mxu0
        %v450 = vlaneseq
        %v451 = vshrl.u32 %v450, 7
        %vm452 = vcmp.le.s32.totalorder %v372, %v451
        %v453 = vsel %vm452, 0.0, -1e+30
        %v454 = vld [vmem:[%s347] sm:$0x1]
        %v456 = vlaneseq
        %v457 = vshrl.u32 %v456, 7
        %v458 = vsub.s32 0, %v457
        %v459 = vrot.slane %v454, %v458
        %v461 = vadd.f32 %v453, %v459
        %vm462 = vcmask 261120
        %v463 = vsel %vm462, %v447, 0.0
        %464 = vadd.xlane.f32.xlu0 %v463
        %v465 = vpop.xlane.xlu0 %464
        %v466 = vrcp.pop 32.0
        %v467 = vmul.f32 %v465, %v466
        %v468 = vsub.f32 %v447, %v467
        %v469 = vmul.f32 %v468, %v468
        %v470 = vsel %vm462, %v469, 0.0
        %471 = vadd.xlane.f32.xlu0 %v470
        %v472 = vpop.xlane.xlu0 %471
        %v473 = vmul.f32 %v472, %v466
        %v474 = vadd.f32 %v473, 1e-05
        %v475 = vrsqrt.pop %v474
        %v476 = vmul.f32 %v468, %v475
        %v477 = vlaneseq
        %v478 = vshrl.u32 %v477, 7
        %v479 = vsub.s32 0, %v478
        %v480 = vrot.slane %v351, %v479
        %v481 = vmul.f32 %v476, %v480
        %v482 = vlaneseq
        %v483 = vshrl.u32 %v482, 7
        %v484 = vsub.s32 1, %v483
        %v485 = vrot.slane %v351, %v484
        %v486 = vadd.f32 %v481, %v485
        %v487 = vld [vmem:[%s3] sm:$0xff]
        %v488 = vld [vmem:[%s3 + $0x8] sm:$0xff]
        %v489 = vld [vmem:[%s3 + $0x10] sm:$0xff]
        %v490 = vld [vmem:[%s3 + $0x18] sm:$0xff]
        %v491 = vld [vmem:[%s3 + $0x20] sm:$0xff]
        %v492 = vld [vmem:[%s3 + $0x28] sm:$0xff]
        %v493 = vld [vmem:[%s3 + $0x30] sm:$0xff]
        %v494 = vld [vmem:[%s3 + $0x38] sm:$0xff]
        %v495 = vld [vmem:[%s3 + $0x40] sm:$0xff]
        %v496 = vld [vmem:[%s3 + $0x48] sm:$0xff]
        %v497 = vld [vmem:[%s3 + $0x50] sm:$0xff]
        %v498 = vld [vmem:[%s3 + $0x58] sm:$0xff]
        %v499 = vld [vmem:[%s3 + $0x60] sm:$0xff]
        %v500 = vld [vmem:[%s3 + $0x68] sm:$0xff]
        %v501 = vld [vmem:[%s3 + $0x70] sm:$0xff]
        %v502 = vld [vmem:[%s3 + $0x78] sm:$0xff]
        %v504 = vsel %vm462, %v486, 0
        %506 = vmatprep.subr.mxu0 0.0
        %507 = vmatpush1.msra.mxu0 %v487
        %508 = vmatprep.subr.mxu0 0.0
        %509 = vmatpush1.msra.mxu0 %v488
        %510 = vmatprep.subr.mxu0 0.0
        %511 = vmatpush1.msra.mxu0 %v489
        %512 = vmatprep.subr.mxu0 0.0
        %513 = vmatpush1.msra.mxu0 %v490
        %514 = vmatprep.subr.mxu0 0.0
        %515 = vmatpush1.msra.mxu0 0.0
        %516 = vmatprep.subr.mxu0 0.0
        %517 = vmatpush1.msra.mxu0 0.0
        %518 = vmatprep.subr.mxu0 0.0
        %519 = vmatpush1.msra.mxu0 0.0
        %520 = vmatprep.subr.mxu0 0.0
        %521 = vmatpush1.msra.mxu0 0.0
        %522 = vmatprep.subr.mxu0 0.0
        %523 = vmatpush1.msra.mxu0 0.0
        %524 = vmatprep.subr.mxu0 0.0
        %525 = vmatpush1.msra.mxu0 0.0
        %526 = vmatprep.subr.mxu0 0.0
        %527 = vmatpush1.msra.mxu0 0.0
        %528 = vmatprep.subr.mxu0 0.0
        %529 = vmatpush1.msra.mxu0 0.0
        %530 = vmatprep.subr.mxu0 0.0
        %531 = vmatpush1.msra.mxu0 0.0
        %532 = vmatprep.subr.mxu0 0.0
        %533 = vmatpush1.msra.mxu0 0.0
        %534 = vmatprep.subr.mxu0 0.0
        %535 = vmatpush1.msra.mxu0 0.0
        %536 = vmatprep.subr.mxu0 0.0
        %537 = vmatpush1.msra.mxu0 0.0
        %538 = vmatprep.subr.mxu0 0.0
        %539 = vmatpush1.msra.mxu0 0.0
        %540 = vmatprep.subr.mxu0 0.0
        %541 = vmatpush1.msra.mxu0 0.0
        %542 = vmatprep.subr.mxu0 0.0
        %543 = vmatpush1.msra.mxu0 0.0
        %544 = vmatprep.subr.mxu0 0.0
        %545 = vmatpush1.msra.mxu0 0.0
        %546 = vmatprep.subr.mxu0 0.0
        %547 = vmatpush1.msra.mxu0 0.0
        %548 = vmatprep.subr.mxu0 0.0
        %549 = vmatpush1.msra.mxu0 0.0
        %550 = vmatprep.subr.mxu0 0.0
        %551 = vmatpush1.msra.mxu0 0.0
        %552 = vmatprep.subr.mxu0 0.0
        %553 = vmatpush1.msra.mxu0 0.0
        %554 = vmatprep.subr.mxu0 0.0
        %555 = vmatpush1.msra.mxu0 0.0
        %556 = vmatprep.subr.mxu0 0.0
        %557 = vmatpush1.msra.mxu0 0.0
        %558 = vmatprep.subr.mxu0 0.0
        %559 = vmatpush1.msra.mxu0 0.0
        %560 = vmatprep.subr.mxu0 0.0
        %561 = vmatpush1.msra.mxu0 0.0
        %562 = vmatprep.subr.mxu0 0.0
        %563 = vmatpush1.msra.mxu0 0.0
        %564 = vmatprep.subr.mxu0 0.0
        %565 = vmatpush1.msra.mxu0 0.0
        %566 = vmatprep.subr.mxu0 0.0
        %567 = vmatpush1.msra.mxu0 0.0
        %568 = vmatprep.subr.mxu0 0.0
        %569 = vmatpush1.msra.mxu0 0.0
        %570 = vmatprep.mubr.f32.mxu0 0.0
        %571 = vmatmul.mubr.f32.gmra.mrb[0].mxu0 %v504
        %v572 = vpop.f32.mrb[0].mxu0
        %v573 = vadd.f32 0.0, %v572
        %v574 = vpop.f32.mrb[0].mxu0
        %575 = vdwg.mxu0
        %576 = vmatprep.subr.mxu0 0.0
        %577 = vmatpush1.msra.mxu0 %v491
        %578 = vmatprep.subr.mxu0 0.0
        %579 = vmatpush1.msra.mxu0 %v492
        %580 = vmatprep.subr.mxu0 0.0
        %581 = vmatpush1.msra.mxu0 %v493
        %582 = vmatprep.subr.mxu0 0.0
        %583 = vmatpush1.msra.mxu0 %v494
        %584 = vmatprep.subr.mxu0 0.0
        %585 = vmatpush1.msra.mxu0 0.0
        %586 = vmatprep.subr.mxu0 0.0
        %587 = vmatpush1.msra.mxu0 0.0
        %588 = vmatprep.subr.mxu0 0.0
        %589 = vmatpush1.msra.mxu0 0.0
        %590 = vmatprep.subr.mxu0 0.0
        %591 = vmatpush1.msra.mxu0 0.0
        %592 = vmatprep.subr.mxu0 0.0
        %593 = vmatpush1.msra.mxu0 0.0
        %594 = vmatprep.subr.mxu0 0.0
        %595 = vmatpush1.msra.mxu0 0.0
        %596 = vmatprep.subr.mxu0 0.0
        %597 = vmatpush1.msra.mxu0 0.0
        %598 = vmatprep.subr.mxu0 0.0
        %599 = vmatpush1.msra.mxu0 0.0
        %600 = vmatprep.subr.mxu0 0.0
        %601 = vmatpush1.msra.mxu0 0.0
        %602 = vmatprep.subr.mxu0 0.0
        %603 = vmatpush1.msra.mxu0 0.0
        %604 = vmatprep.subr.mxu0 0.0
        %605 = vmatpush1.msra.mxu0 0.0
        %606 = vmatprep.subr.mxu0 0.0
        %607 = vmatpush1.msra.mxu0 0.0
        %608 = vmatprep.subr.mxu0 0.0
        %609 = vmatpush1.msra.mxu0 0.0
        %610 = vmatprep.subr.mxu0 0.0
        %611 = vmatpush1.msra.mxu0 0.0
        %612 = vmatprep.subr.mxu0 0.0
        %613 = vmatpush1.msra.mxu0 0.0
        %614 = vmatprep.subr.mxu0 0.0
        %615 = vmatpush1.msra.mxu0 0.0
        %616 = vmatprep.subr.mxu0 0.0
        %617 = vmatpush1.msra.mxu0 0.0
        %618 = vmatprep.subr.mxu0 0.0
        %619 = vmatpush1.msra.mxu0 0.0
        %620 = vmatprep.subr.mxu0 0.0
        %621 = vmatpush1.msra.mxu0 0.0
        %622 = vmatprep.subr.mxu0 0.0
        %623 = vmatpush1.msra.mxu0 0.0
        %624 = vmatprep.subr.mxu0 0.0
        %625 = vmatpush1.msra.mxu0 0.0
        %626 = vmatprep.subr.mxu0 0.0
        %627 = vmatpush1.msra.mxu0 0.0
        %628 = vmatprep.subr.mxu0 0.0
        %629 = vmatpush1.msra.mxu0 0.0
        %630 = vmatprep.subr.mxu0 0.0
        %631 = vmatpush1.msra.mxu0 0.0
        %632 = vmatprep.subr.mxu0 0.0
        %633 = vmatpush1.msra.mxu0 0.0
        %634 = vmatprep.subr.mxu0 0.0
        %635 = vmatpush1.msra.mxu0 0.0
        %636 = vmatprep.subr.mxu0 0.0
        %637 = vmatpush1.msra.mxu0 0.0
        %638 = vmatprep.subr.mxu0 0.0
        %639 = vmatpush1.msra.mxu0 0.0
        %640 = vmatprep.mubr.f32.mxu0 0.0
        %641 = vmatmul.mubr.f32.gmra.mrb[0].mxu0 %v504
        %v642 = vpop.f32.mrb[0].mxu0
        %v643 = vadd.f32 0.0, %v642
        %v644 = vpop.f32.mrb[0].mxu0
        %645 = vdwg.mxu0
        %646 = vmatprep.subr.mxu0 0.0
        %647 = vmatpush1.msra.mxu0 %v495
        %648 = vmatprep.subr.mxu0 0.0
        %649 = vmatpush1.msra.mxu0 %v496
        %650 = vmatprep.subr.mxu0 0.0
        %651 = vmatpush1.msra.mxu0 %v497
        %652 = vmatprep.subr.mxu0 0.0
        %653 = vmatpush1.msra.mxu0 %v498
        %654 = vmatprep.subr.mxu0 0.0
        %655 = vmatpush1.msra.mxu0 0.0
        %656 = vmatprep.subr.mxu0 0.0
        %657 = vmatpush1.msra.mxu0 0.0
        %658 = vmatprep.subr.mxu0 0.0
        %659 = vmatpush1.msra.mxu0 0.0
        %660 = vmatprep.subr.mxu0 0.0
        %661 = vmatpush1.msra.mxu0 0.0
        %662 = vmatprep.subr.mxu0 0.0
        %663 = vmatpush1.msra.mxu0 0.0
        %664 = vmatprep.subr.mxu0 0.0
        %665 = vmatpush1.msra.mxu0 0.0
        %666 = vmatprep.subr.mxu0 0.0
        %667 = vmatpush1.msra.mxu0 0.0
        %668 = vmatprep.subr.mxu0 0.0
        %669 = vmatpush1.msra.mxu0 0.0
        %670 = vmatprep.subr.mxu0 0.0
        %671 = vmatpush1.msra.mxu0 0.0
        %672 = vmatprep.subr.mxu0 0.0
        %673 = vmatpush1.msra.mxu0 0.0
        %674 = vmatprep.subr.mxu0 0.0
        %675 = vmatpush1.msra.mxu0 0.0
        %676 = vmatprep.subr.mxu0 0.0
        %677 = vmatpush1.msra.mxu0 0.0
        %678 = vmatprep.subr.mxu0 0.0
        %679 = vmatpush1.msra.mxu0 0.0
        %680 = vmatprep.subr.mxu0 0.0
        %681 = vmatpush1.msra.mxu0 0.0
        %682 = vmatprep.subr.mxu0 0.0
        %683 = vmatpush1.msra.mxu0 0.0
        %684 = vmatprep.subr.mxu0 0.0
        %685 = vmatpush1.msra.mxu0 0.0
        %686 = vmatprep.subr.mxu0 0.0
        %687 = vmatpush1.msra.mxu0 0.0
        %688 = vmatprep.subr.mxu0 0.0
        %689 = vmatpush1.msra.mxu0 0.0
        %690 = vmatprep.subr.mxu0 0.0
        %691 = vmatpush1.msra.mxu0 0.0
        %692 = vmatprep.subr.mxu0 0.0
        %693 = vmatpush1.msra.mxu0 0.0
        %694 = vmatprep.subr.mxu0 0.0
        %695 = vmatpush1.msra.mxu0 0.0
        %696 = vmatprep.subr.mxu0 0.0
        %697 = vmatpush1.msra.mxu0 0.0
        %698 = vmatprep.subr.mxu0 0.0
        %699 = vmatpush1.msra.mxu0 0.0
        %700 = vmatprep.subr.mxu0 0.0
        %701 = vmatpush1.msra.mxu0 0.0
        %702 = vmatprep.subr.mxu0 0.0
        %703 = vmatpush1.msra.mxu0 0.0
        %704 = vmatprep.subr.mxu0 0.0
        %705 = vmatpush1.msra.mxu0 0.0
        %706 = vmatprep.subr.mxu0 0.0
        %707 = vmatpush1.msra.mxu0 0.0
        %708 = vmatprep.subr.mxu0 0.0
        %709 = vmatpush1.msra.mxu0 0.0
        %710 = vmatprep.mubr.f32.mxu0 0.0
        %711 = vmatmul.mubr.f32.gmra.mrb[0].mxu0 %v504
        %v712 = vpop.f32.mrb[0].mxu0
        %v713 = vadd.f32 0.0, %v712
        %v714 = vpop.f32.mrb[0].mxu0
        %715 = vdwg.mxu0
        %716 = vmatprep.subr.mxu0 0.0
        %717 = vmatpush1.msra.mxu0 %v499
        %718 = vmatprep.subr.mxu0 0.0
        %719 = vmatpush1.msra.mxu0 %v500
        %720 = vmatprep.subr.mxu0 0.0
        %721 = vmatpush1.msra.mxu0 %v501
        %722 = vmatprep.subr.mxu0 0.0
        %723 = vmatpush1.msra.mxu0 %v502
        %724 = vmatprep.subr.mxu0 0.0
        %725 = vmatpush1.msra.mxu0 0.0
        %726 = vmatprep.subr.mxu0 0.0
        %727 = vmatpush1.msra.mxu0 0.0
        %728 = vmatprep.subr.mxu0 0.0
        %729 = vmatpush1.msra.mxu0 0.0
        %730 = vmatprep.subr.mxu0 0.0
        %731 = vmatpush1.msra.mxu0 0.0
        %732 = vmatprep.subr.mxu0 0.0
        %733 = vmatpush1.msra.mxu0 0.0
        %734 = vmatprep.subr.mxu0 0.0
        %735 = vmatpush1.msra.mxu0 0.0
        %736 = vmatprep.subr.mxu0 0.0
        %737 = vmatpush1.msra.mxu0 0.0
        %738 = vmatprep.subr.mxu0 0.0
        %739 = vmatpush1.msra.mxu0 0.0
        %740 = vmatprep.subr.mxu0 0.0
        %741 = vmatpush1.msra.mxu0 0.0
        %742 = vmatprep.subr.mxu0 0.0
        %743 = vmatpush1.msra.mxu0 0.0
        %744 = vmatprep.subr.mxu0 0.0
        %745 = vmatpush1.msra.mxu0 0.0
        %746 = vmatprep.subr.mxu0 0.0
        %747 = vmatpush1.msra.mxu0 0.0
        %748 = vmatprep.subr.mxu0 0.0
        %749 = vmatpush1.msra.mxu0 0.0
        %750 = vmatprep.subr.mxu0 0.0
        %751 = vmatpush1.msra.mxu0 0.0
        %752 = vmatprep.subr.mxu0 0.0
        %753 = vmatpush1.msra.mxu0 0.0
        %754 = vmatprep.subr.mxu0 0.0
        %755 = vmatpush1.msra.mxu0 0.0
        %756 = vmatprep.subr.mxu0 0.0
        %757 = vmatpush1.msra.mxu0 0.0
        %758 = vmatprep.subr.mxu0 0.0
        %759 = vmatpush1.msra.mxu0 0.0
        %760 = vmatprep.subr.mxu0 0.0
        %761 = vmatpush1.msra.mxu0 0.0
        %762 = vmatprep.subr.mxu0 0.0
        %763 = vmatpush1.msra.mxu0 0.0
        %764 = vmatprep.subr.mxu0 0.0
        %765 = vmatpush1.msra.mxu0 0.0
        %766 = vmatprep.subr.mxu0 0.0
        %767 = vmatpush1.msra.mxu0 0.0
        %768 = vmatprep.subr.mxu0 0.0
        %769 = vmatpush1.msra.mxu0 0.0
        %770 = vmatprep.subr.mxu0 0.0
        %771 = vmatpush1.msra.mxu0 0.0
        %772 = vmatprep.subr.mxu0 0.0
        %773 = vmatpush1.msra.mxu0 0.0
        %774 = vmatprep.subr.mxu0 0.0
        %775 = vmatpush1.msra.mxu0 0.0
        %776 = vmatprep.subr.mxu0 0.0
        %777 = vmatpush1.msra.mxu0 0.0
        %778 = vmatprep.subr.mxu0 0.0
        %779 = vmatpush1.msra.mxu0 0.0
        %780 = vmatprep.mubr.f32.mxu0 0.0
        %781 = vmatmul.mubr.f32.gmra.mrb[0].mxu0 %v504
        %v782 = vpop.f32.mrb[0].mxu0
        %v783 = vadd.f32 0.0, %v782
        %v784 = vpop.f32.mrb[0].mxu0
        %785 = vdwg.mxu0
        %787 = vrot.lane.b32.xlu0 %v573, 120
        %v788 = vpop.permute.xlu0 %787
        %vm789 = vcmask 64512
        %v790 = vsel %vm789, %v573, 0
        %v792 = vsel %vm789, %v788, 0
        %794 = vmatprep.subr.mxu0 0.0
        %795 = vmatpush1.xpose.msra.mxu0 %v792
        %796 = vmatprep.subr.mxu0 0.0
        %797 = vmatpush1.xpose.msra.mxu0 0.0
        %798 = vmatprep.subr.mxu0 0.0
        %799 = vmatpush1.xpose.msra.mxu0 0.0
        %800 = vmatprep.subr.mxu0 0.0
        %801 = vmatpush1.xpose.msra.mxu0 0.0
        %802 = vmatprep.subr.mxu0 0.0
        %803 = vmatpush1.xpose.msra.mxu0 0.0
        %804 = vmatprep.subr.mxu0 0.0
        %805 = vmatpush1.xpose.msra.mxu0 0.0
        %806 = vmatprep.subr.mxu0 0.0
        %807 = vmatpush1.xpose.msra.mxu0 0.0
        %808 = vmatprep.subr.mxu0 0.0
        %809 = vmatpush1.xpose.msra.mxu0 0.0
        %810 = vmatprep.subr.mxu0 0.0
        %811 = vmatpush1.xpose.msra.mxu0 0.0
        %812 = vmatprep.subr.mxu0 0.0
        %813 = vmatpush1.xpose.msra.mxu0 0.0
        %814 = vmatprep.subr.mxu0 0.0
        %815 = vmatpush1.xpose.msra.mxu0 0.0
        %816 = vmatprep.subr.mxu0 0.0
        %817 = vmatpush1.xpose.msra.mxu0 0.0
        %818 = vmatprep.subr.mxu0 0.0
        %819 = vmatpush1.xpose.msra.mxu0 0.0
        %820 = vmatprep.subr.mxu0 0.0
        %821 = vmatpush1.xpose.msra.mxu0 0.0
        %822 = vmatprep.subr.mxu0 0.0
        %823 = vmatpush1.xpose.msra.mxu0 0.0
        %824 = vmatprep.subr.mxu0 0.0
        %825 = vmatpush1.xpose.msra.mxu0 0.0
        %826 = vmatprep.subr.mxu0 0.0
        %827 = vmatpush1.xpose.msra.mxu0 0.0
        %828 = vmatprep.subr.mxu0 0.0
        %829 = vmatpush1.xpose.msra.mxu0 0.0
        %830 = vmatprep.subr.mxu0 0.0
        %831 = vmatpush1.xpose.msra.mxu0 0.0
        %832 = vmatprep.subr.mxu0 0.0
        %833 = vmatpush1.xpose.msra.mxu0 0.0
        %834 = vmatprep.subr.mxu0 0.0
        %835 = vmatpush1.xpose.msra.mxu0 0.0
        %836 = vmatprep.subr.mxu0 0.0
        %837 = vmatpush1.xpose.msra.mxu0 0.0
        %838 = vmatprep.subr.mxu0 0.0
        %839 = vmatpush1.xpose.msra.mxu0 0.0
        %840 = vmatprep.subr.mxu0 0.0
        %841 = vmatpush1.xpose.msra.mxu0 0.0
        %842 = vmatprep.subr.mxu0 0.0
        %843 = vmatpush1.xpose.msra.mxu0 0.0
        %844 = vmatprep.subr.mxu0 0.0
        %845 = vmatpush1.xpose.msra.mxu0 0.0
        %846 = vmatprep.subr.mxu0 0.0
        %847 = vmatpush1.xpose.msra.mxu0 0.0
        %848 = vmatprep.subr.mxu0 0.0
        %849 = vmatpush1.xpose.msra.mxu0 0.0
        %850 = vmatprep.subr.mxu0 0.0
        %851 = vmatpush1.xpose.msra.mxu0 0.0
        %852 = vmatprep.subr.mxu0 0.0
        %853 = vmatpush1.xpose.msra.mxu0 0.0
        %854 = vmatprep.subr.mxu0 0.0
        %855 = vmatpush1.xpose.msra.mxu0 0.0
        %856 = vmatprep.subr.mxu0 0.0
        %857 = vmatpush1.xpose.msra.mxu0 0.0
        %858 = vmatprep.mubr.f32.mxu0 0.0
        %859 = vmatmul.mubr.f32.gmra.mrb[0].mxu0 %v790
        %v860 = vpop.f32.mrb[0].mxu0
        %v861 = vadd.f32 %v461, %v860
        %v862 = vpop.f32.mrb[0].mxu0
        %863 = vdwg.mxu0
        %865 = vrot.lane.b32.xlu0 %v643, 120
        %v866 = vpop.permute.xlu0 %865
        %v867 = vsel %vm789, %v643, 0
        %v869 = vsel %vm789, %v866, 0
        %871 = vmatprep.subr.mxu0 0.0
        %872 = vmatpush1.xpose.msra.mxu0 %v869
        %873 = vmatprep.subr.mxu0 0.0
        %874 = vmatpush1.xpose.msra.mxu0 0.0
        %875 = vmatprep.subr.mxu0 0.0
        %876 = vmatpush1.xpose.msra.mxu0 0.0
        %877 = vmatprep.subr.mxu0 0.0
        %878 = vmatpush1.xpose.msra.mxu0 0.0
        %879 = vmatprep.subr.mxu0 0.0
        %880 = vmatpush1.xpose.msra.mxu0 0.0
        %881 = vmatprep.subr.mxu0 0.0
        %882 = vmatpush1.xpose.msra.mxu0 0.0
        %883 = vmatprep.subr.mxu0 0.0
        %884 = vmatpush1.xpose.msra.mxu0 0.0
        %885 = vmatprep.subr.mxu0 0.0
        %886 = vmatpush1.xpose.msra.mxu0 0.0
        %887 = vmatprep.subr.mxu0 0.0
        %888 = vmatpush1.xpose.msra.mxu0 0.0
        %889 = vmatprep.subr.mxu0 0.0
        %890 = vmatpush1.xpose.msra.mxu0 0.0
        %891 = vmatprep.subr.mxu0 0.0
        %892 = vmatpush1.xpose.msra.mxu0 0.0
        %893 = vmatprep.subr.mxu0 0.0
        %894 = vmatpush1.xpose.msra.mxu0 0.0
        %895 = vmatprep.subr.mxu0 0.0
        %896 = vmatpush1.xpose.msra.mxu0 0.0
        %897 = vmatprep.subr.mxu0 0.0
        %898 = vmatpush1.xpose.msra.mxu0 0.0
        %899 = vmatprep.subr.mxu0 0.0
        %900 = vmatpush1.xpose.msra.mxu0 0.0
        %901 = vmatprep.subr.mxu0 0.0
        %902 = vmatpush1.xpose.msra.mxu0 0.0
        %903 = vmatprep.subr.mxu0 0.0
        %904 = vmatpush1.xpose.msra.mxu0 0.0
        %905 = vmatprep.subr.mxu0 0.0
        %906 = vmatpush1.xpose.msra.mxu0 0.0
        %907 = vmatprep.subr.mxu0 0.0
        %908 = vmatpush1.xpose.msra.mxu0 0.0
        %909 = vmatprep.subr.mxu0 0.0
        %910 = vmatpush1.xpose.msra.mxu0 0.0
        %911 = vmatprep.subr.mxu0 0.0
        %912 = vmatpush1.xpose.msra.mxu0 0.0
        %913 = vmatprep.subr.mxu0 0.0
        %914 = vmatpush1.xpose.msra.mxu0 0.0
        %915 = vmatprep.subr.mxu0 0.0
        %916 = vmatpush1.xpose.msra.mxu0 0.0
        %917 = vmatprep.subr.mxu0 0.0
        %918 = vmatpush1.xpose.msra.mxu0 0.0
        %919 = vmatprep.subr.mxu0 0.0
        %920 = vmatpush1.xpose.msra.mxu0 0.0
        %921 = vmatprep.subr.mxu0 0.0
        %922 = vmatpush1.xpose.msra.mxu0 0.0
        %923 = vmatprep.subr.mxu0 0.0
        %924 = vmatpush1.xpose.msra.mxu0 0.0
        %925 = vmatprep.subr.mxu0 0.0
        %926 = vmatpush1.xpose.msra.mxu0 0.0
        %927 = vmatprep.subr.mxu0 0.0
        %928 = vmatpush1.xpose.msra.mxu0 0.0
        %929 = vmatprep.subr.mxu0 0.0
        %930 = vmatpush1.xpose.msra.mxu0 0.0
        %931 = vmatprep.subr.mxu0 0.0
        %932 = vmatpush1.xpose.msra.mxu0 0.0
        %933 = vmatprep.subr.mxu0 0.0
        %934 = vmatpush1.xpose.msra.mxu0 0.0
        %935 = vmatprep.mubr.f32.mxu0 0.0
        %936 = vmatmul.mubr.f32.gmra.mrb[0].mxu0 %v867
        %v937 = vpop.f32.mrb[0].mxu0
        %v938 = vadd.f32 %v461, %v937
        %v939 = vpop.f32.mrb[0].mxu0
        %940 = vdwg.mxu0
        %942 = vrot.lane.b32.xlu0 %v713, 120
        %v943 = vpop.permute.xlu0 %942
        %v944 = vsel %vm789, %v713, 0
        %v946 = vsel %vm789, %v943, 0
        %948 = vmatprep.subr.mxu0 0.0
        %949 = vmatpush1.xpose.msra.mxu0 %v946
        %950 = vmatprep.subr.mxu0 0.0
        %951 = vmatpush1.xpose.msra.mxu0 0.0
        %952 = vmatprep.subr.mxu0 0.0
        %953 = vmatpush1.xpose.msra.mxu0 0.0
        %954 = vmatprep.subr.mxu0 0.0
        %955 = vmatpush1.xpose.msra.mxu0 0.0
        %956 = vmatprep.subr.mxu0 0.0
        %957 = vmatpush1.xpose.msra.mxu0 0.0
        %958 = vmatprep.subr.mxu0 0.0
        %959 = vmatpush1.xpose.msra.mxu0 0.0
        %960 = vmatprep.subr.mxu0 0.0
        %961 = vmatpush1.xpose.msra.mxu0 0.0
        %962 = vmatprep.subr.mxu0 0.0
        %963 = vmatpush1.xpose.msra.mxu0 0.0
        %964 = vmatprep.subr.mxu0 0.0
        %965 = vmatpush1.xpose.msra.mxu0 0.0
        %966 = vmatprep.subr.mxu0 0.0
        %967 = vmatpush1.xpose.msra.mxu0 0.0
        %968 = vmatprep.subr.mxu0 0.0
        %969 = vmatpush1.xpose.msra.mxu0 0.0
        %970 = vmatprep.subr.mxu0 0.0
        %971 = vmatpush1.xpose.msra.mxu0 0.0
        %972 = vmatprep.subr.mxu0 0.0
        %973 = vmatpush1.xpose.msra.mxu0 0.0
        %974 = vmatprep.subr.mxu0 0.0
        %975 = vmatpush1.xpose.msra.mxu0 0.0
        %976 = vmatprep.subr.mxu0 0.0
        %977 = vmatpush1.xpose.msra.mxu0 0.0
        %978 = vmatprep.subr.mxu0 0.0
        %979 = vmatpush1.xpose.msra.mxu0 0.0
        %980 = vmatprep.subr.mxu0 0.0
        %981 = vmatpush1.xpose.msra.mxu0 0.0
        %982 = vmatprep.subr.mxu0 0.0
        %983 = vmatpush1.xpose.msra.mxu0 0.0
        %984 = vmatprep.subr.mxu0 0.0
        %985 = vmatpush1.xpose.msra.mxu0 0.0
        %986 = vmatprep.subr.mxu0 0.0
        %987 = vmatpush1.xpose.msra.mxu0 0.0
        %988 = vmatprep.subr.mxu0 0.0
        %989 = vmatpush1.xpose.msra.mxu0 0.0
        %990 = vmatprep.subr.mxu0 0.0
        %991 = vmatpush1.xpose.msra.mxu0 0.0
        %992 = vmatprep.subr.mxu0 0.0
        %993 = vmatpush1.xpose.msra.mxu0 0.0
        %994 = vmatprep.subr.mxu0 0.0
        %995 = vmatpush1.xpose.msra.mxu0 0.0
        %996 = vmatprep.subr.mxu0 0.0
        %997 = vmatpush1.xpose.msra.mxu0 0.0
        %998 = vmatprep.subr.mxu0 0.0
        %999 = vmatpush1.xpose.msra.mxu0 0.0
        %1000 = vmatprep.subr.mxu0 0.0
        %1001 = vmatpush1.xpose.msra.mxu0 0.0
        %1002 = vmatprep.subr.mxu0 0.0
        %1003 = vmatpush1.xpose.msra.mxu0 0.0
        %1004 = vmatprep.subr.mxu0 0.0
        %1005 = vmatpush1.xpose.msra.mxu0 0.0
        %1006 = vmatprep.subr.mxu0 0.0
        %1007 = vmatpush1.xpose.msra.mxu0 0.0
        %1008 = vmatprep.subr.mxu0 0.0
        %1009 = vmatpush1.xpose.msra.mxu0 0.0
        %1010 = vmatprep.subr.mxu0 0.0
        %1011 = vmatpush1.xpose.msra.mxu0 0.0
        %1012 = vmatprep.mubr.f32.mxu0 0.0
        %1013 = vmatmul.mubr.f32.gmra.mrb[0].mxu0 %v944
        %v1014 = vpop.f32.mrb[0].mxu0
        %v1015 = vadd.f32 %v461, %v1014
        %v1016 = vpop.f32.mrb[0].mxu0
        %1017 = vdwg.mxu0
        %1019 = vrot.lane.b32.xlu0 %v783, 120
        %v1020 = vpop.permute.xlu0 %1019
        %v1021 = vsel %vm789, %v783, 0
        %v1023 = vsel %vm789, %v1020, 0
        %1025 = vmatprep.subr.mxu0 0.0
        %1026 = vmatpush1.xpose.msra.mxu0 %v1023
        %1027 = vmatprep.subr.mxu0 0.0
        %1028 = vmatpush1.xpose.msra.mxu0 0.0
        %1029 = vmatprep.subr.mxu0 0.0
        %1030 = vmatpush1.xpose.msra.mxu0 0.0
        %1031 = vmatprep.subr.mxu0 0.0
        %1032 = vmatpush1.xpose.msra.mxu0 0.0
        %1033 = vmatprep.subr.mxu0 0.0
        %1034 = vmatpush1.xpose.msra.mxu0 0.0
        %1035 = vmatprep.subr.mxu0 0.0
        %1036 = vmatpush1.xpose.msra.mxu0 0.0
        %1037 = vmatprep.subr.mxu0 0.0
        %1038 = vmatpush1.xpose.msra.mxu0 0.0
        %1039 = vmatprep.subr.mxu0 0.0
        %1040 = vmatpush1.xpose.msra.mxu0 0.0
        %1041 = vmatprep.subr.mxu0 0.0
        %1042 = vmatpush1.xpose.msra.mxu0 0.0
        %1043 = vmatprep.subr.mxu0 0.0
        %1044 = vmatpush1.xpose.msra.mxu0 0.0
        %1045 = vmatprep.subr.mxu0 0.0
        %1046 = vmatpush1.xpose.msra.mxu0 0.0
        %1047 = vmatprep.subr.mxu0 0.0
        %1048 = vmatpush1.xpose.msra.mxu0 0.0
        %1049 = vmatprep.subr.mxu0 0.0
        %1050 = vmatpush1.xpose.msra.mxu0 0.0
        %1051 = vmatprep.subr.mxu0 0.0
        %1052 = vmatpush1.xpose.msra.mxu0 0.0
        %1053 = vmatprep.subr.mxu0 0.0
        %1054 = vmatpush1.xpose.msra.mxu0 0.0
        %1055 = vmatprep.subr.mxu0 0.0
        %1056 = vmatpush1.xpose.msra.mxu0 0.0
        %1057 = vmatprep.subr.mxu0 0.0
        %1058 = vmatpush1.xpose.msra.mxu0 0.0
        %1059 = vmatprep.subr.mxu0 0.0
        %1060 = vmatpush1.xpose.msra.mxu0 0.0
        %1061 = vmatprep.subr.mxu0 0.0
        %1062 = vmatpush1.xpose.msra.mxu0 0.0
        %1063 = vmatprep.subr.mxu0 0.0
        %1064 = vmatpush1.xpose.msra.mxu0 0.0
        %1065 = vmatprep.subr.mxu0 0.0
        %1066 = vmatpush1.xpose.msra.mxu0 0.0
        %1067 = vmatprep.subr.mxu0 0.0
        %1068 = vmatpush1.xpose.msra.mxu0 0.0
        %1069 = vmatprep.subr.mxu0 0.0
        %1070 = vmatpush1.xpose.msra.mxu0 0.0
        %1071 = vmatprep.subr.mxu0 0.0
        %1072 = vmatpush1.xpose.msra.mxu0 0.0
        %1073 = vmatprep.subr.mxu0 0.0
        %1074 = vmatpush1.xpose.msra.mxu0 0.0
        %1075 = vmatprep.subr.mxu0 0.0
        %1076 = vmatpush1.xpose.msra.mxu0 0.0
        %1077 = vmatprep.subr.mxu0 0.0
        %1078 = vmatpush1.xpose.msra.mxu0 0.0
        %1079 = vmatprep.subr.mxu0 0.0
        %1080 = vmatpush1.xpose.msra.mxu0 0.0
        %1081 = vmatprep.subr.mxu0 0.0
        %1082 = vmatpush1.xpose.msra.mxu0 0.0
        %1083 = vmatprep.subr.mxu0 0.0
        %1084 = vmatpush1.xpose.msra.mxu0 0.0
        %1085 = vmatprep.subr.mxu0 0.0
        %1086 = vmatpush1.xpose.msra.mxu0 0.0
        %1087 = vmatprep.subr.mxu0 0.0
        %1088 = vmatpush1.xpose.msra.mxu0 0.0
        %1089 = vmatprep.mubr.f32.mxu0 0.0
        %1090 = vmatmul.mubr.f32.gmra.mrb[0].mxu0 %v1021
        %v1091 = vpop.f32.mrb[0].mxu0
        %v1092 = vadd.f32 %v461, %v1091
        %v1093 = vpop.f32.mrb[0].mxu0
        %1094 = vdwg.mxu0
        %v1095 = vsel %vm789, %v861, -inf
        %1096 = vmax.xlane.f32.xlu0 %v1095
        %v1097 = vpop.xlane.xlu0 %1096
        %v1098 = vsel %vm789, %v938, -inf
        %1099 = vmax.xlane.f32.xlu0 %v1098
        %v1100 = vpop.xlane.xlu0 %1099
        %v1101 = vsel %vm789, %v1015, -inf
        %1102 = vmax.xlane.f32.xlu0 %v1101
        %v1103 = vpop.xlane.xlu0 %1102
        %v1104 = vsel %vm789, %v1092, -inf
        %1105 = vmax.xlane.f32.xlu0 %v1104
        %v1106 = vpop.xlane.xlu0 %1105
        %v1107 = vsub.f32 %v861, %v1097
        %v1108 = vsub.f32 %v938, %v1100
        %v1109 = vsub.f32 %v1015, %v1103
        %v1110 = vsub.f32 %v1092, %v1106
        %v1111 = vmul.f32 %v1107, 1.442695
        %v1112 = vpow.pop %v1111
        %v1113 = vmul.f32 %v1108, 1.442695
        %v1114 = vpow.pop %v1113
        %v1115 = vmul.f32 %v1109, 1.442695
        %v1116 = vpow.pop %v1115
        %v1117 = vmul.f32 %v1110, 1.442695
        %v1118 = vpow.pop %v1117
        %v1119 = vsel %vm789, %v1112, 0.0
        %1120 = vadd.xlane.f32.xlu0 %v1119
        %v1121 = vpop.xlane.xlu0 %1120
        %v1122 = vsel %vm789, %v1114, 0.0
        %1123 = vadd.xlane.f32.xlu0 %v1122
        %v1124 = vpop.xlane.xlu0 %1123
        %v1125 = vsel %vm789, %v1116, 0.0
        %1126 = vadd.xlane.f32.xlu0 %v1125
        %v1127 = vpop.xlane.xlu0 %1126
        %v1128 = vsel %vm789, %v1118, 0.0
        %1129 = vadd.xlane.f32.xlu0 %v1128
        %v1130 = vpop.xlane.xlu0 %1129
        %v1131 = vrcp.pop %v1121
        %v1132 = vmul.f32 %v1112, %v1131
        %v1133 = vrcp.pop %v1124
        %v1134 = vmul.f32 %v1114, %v1133
        %v1135 = vrcp.pop %v1127
        %v1136 = vmul.f32 %v1116, %v1135
        %v1137 = vrcp.pop %v1130
        %v1138 = vmul.f32 %v1118, %v1137
        %1139 = vrot.lane.b32.xlu0 %v573, 112
        %v1140 = vpop.permute.xlu0 %1139
        %v1143 = vsel %vm789, %v1132, 0
        %1145 = vmatprep.subr.mxu0 0.0
        %1146 = vmatpush1.msra.mxu0 %v1140
        %1147 = vmatprep.subr.mxu0 0.0
        %1148 = vmatpush1.msra.mxu0 0.0
        %1149 = vmatprep.subr.mxu0 0.0
        %1150 = vmatpush1.msra.mxu0 0.0
        %1151 = vmatprep.subr.mxu0 0.0
        %1152 = vmatpush1.msra.mxu0 0.0
        %1153 = vmatprep.subr.mxu0 0.0
        %1154 = vmatpush1.msra.mxu0 0.0
        %1155 = vmatprep.subr.mxu0 0.0
        %1156 = vmatpush1.msra.mxu0 0.0
        %1157 = vmatprep.subr.mxu0 0.0
        %1158 = vmatpush1.msra.mxu0 0.0
        %1159 = vmatprep.subr.mxu0 0.0
        %1160 = vmatpush1.msra.mxu0 0.0
        %1161 = vmatprep.subr.mxu0 0.0
        %1162 = vmatpush1.msra.mxu0 0.0
        %1163 = vmatprep.subr.mxu0 0.0
        %1164 = vmatpush1.msra.mxu0 0.0
        %1165 = vmatprep.subr.mxu0 0.0
        %1166 = vmatpush1.msra.mxu0 0.0
        %1167 = vmatprep.subr.mxu0 0.0
        %1168 = vmatpush1.msra.mxu0 0.0
        %1169 = vmatprep.subr.mxu0 0.0
        %1170 = vmatpush1.msra.mxu0 0.0
        %1171 = vmatprep.subr.mxu0 0.0
        %1172 = vmatpush1.msra.mxu0 0.0
        %1173 = vmatprep.subr.mxu0 0.0
        %1174 = vmatpush1.msra.mxu0 0.0
        %1175 = vmatprep.subr.mxu0 0.0
        %1176 = vmatpush1.msra.mxu0 0.0
        %1177 = vmatprep.subr.mxu0 0.0
        %1178 = vmatpush1.msra.mxu0 0.0
        %1179 = vmatprep.subr.mxu0 0.0
        %1180 = vmatpush1.msra.mxu0 0.0
        %1181 = vmatprep.subr.mxu0 0.0
        %1182 = vmatpush1.msra.mxu0 0.0
        %1183 = vmatprep.subr.mxu0 0.0
        %1184 = vmatpush1.msra.mxu0 0.0
        %1185 = vmatprep.subr.mxu0 0.0
        %1186 = vmatpush1.msra.mxu0 0.0
        %1187 = vmatprep.subr.mxu0 0.0
        %1188 = vmatpush1.msra.mxu0 0.0
        %1189 = vmatprep.subr.mxu0 0.0
        %1190 = vmatpush1.msra.mxu0 0.0
        %1191 = vmatprep.subr.mxu0 0.0
        %1192 = vmatpush1.msra.mxu0 0.0
        %1193 = vmatprep.subr.mxu0 0.0
        %1194 = vmatpush1.msra.mxu0 0.0
        %1195 = vmatprep.subr.mxu0 0.0
        %1196 = vmatpush1.msra.mxu0 0.0
        %1197 = vmatprep.subr.mxu0 0.0
        %1198 = vmatpush1.msra.mxu0 0.0
        %1199 = vmatprep.subr.mxu0 0.0
        %1200 = vmatpush1.msra.mxu0 0.0
        %1201 = vmatprep.subr.mxu0 0.0
        %1202 = vmatpush1.msra.mxu0 0.0
        %1203 = vmatprep.subr.mxu0 0.0
        %1204 = vmatpush1.msra.mxu0 0.0
        %1205 = vmatprep.subr.mxu0 0.0
        %1206 = vmatpush1.msra.mxu0 0.0
        %1207 = vmatprep.subr.mxu0 0.0
        %1208 = vmatpush1.msra.mxu0 0.0
        %1209 = vmatprep.mubr.f32.mxu0 0.0
        %1210 = vmatmul.mubr.f32.gmra.mrb[0].mxu0 %v1143
        %v1211 = vpop.f32.mrb[0].mxu0
        %v1212 = vadd.f32 0.0, %v1211
        %v1213 = vpop.f32.mrb[0].mxu0
        %1214 = vdwg.mxu0
        %1215 = vrot.lane.b32.xlu0 %v643, 112
        %v1216 = vpop.permute.xlu0 %1215
        %v1219 = vsel %vm789, %v1134, 0
        %1221 = vmatprep.subr.mxu0 0.0
        %1222 = vmatpush1.msra.mxu0 %v1216
        %1223 = vmatprep.subr.mxu0 0.0
        %1224 = vmatpush1.msra.mxu0 0.0
        %1225 = vmatprep.subr.mxu0 0.0
        %1226 = vmatpush1.msra.mxu0 0.0
        %1227 = vmatprep.subr.mxu0 0.0
        %1228 = vmatpush1.msra.mxu0 0.0
        %1229 = vmatprep.subr.mxu0 0.0
        %1230 = vmatpush1.msra.mxu0 0.0
        %1231 = vmatprep.subr.mxu0 0.0
        %1232 = vmatpush1.msra.mxu0 0.0
        %1233 = vmatprep.subr.mxu0 0.0
        %1234 = vmatpush1.msra.mxu0 0.0
        %1235 = vmatprep.subr.mxu0 0.0
        %1236 = vmatpush1.msra.mxu0 0.0
        %1237 = vmatprep.subr.mxu0 0.0
        %1238 = vmatpush1.msra.mxu0 0.0
        %1239 = vmatprep.subr.mxu0 0.0
        %1240 = vmatpush1.msra.mxu0 0.0
        %1241 = vmatprep.subr.mxu0 0.0
        %1242 = vmatpush1.msra.mxu0 0.0
        %1243 = vmatprep.subr.mxu0 0.0
        %1244 = vmatpush1.msra.mxu0 0.0
        %1245 = vmatprep.subr.mxu0 0.0
        %1246 = vmatpush1.msra.mxu0 0.0
        %1247 = vmatprep.subr.mxu0 0.0
        %1248 = vmatpush1.msra.mxu0 0.0
        %1249 = vmatprep.subr.mxu0 0.0
        %1250 = vmatpush1.msra.mxu0 0.0
        %1251 = vmatprep.subr.mxu0 0.0
        %1252 = vmatpush1.msra.mxu0 0.0
        %1253 = vmatprep.subr.mxu0 0.0
        %1254 = vmatpush1.msra.mxu0 0.0
        %1255 = vmatprep.subr.mxu0 0.0
        %1256 = vmatpush1.msra.mxu0 0.0
        %1257 = vmatprep.subr.mxu0 0.0
        %1258 = vmatpush1.msra.mxu0 0.0
        %1259 = vmatprep.subr.mxu0 0.0
        %1260 = vmatpush1.msra.mxu0 0.0
        %1261 = vmatprep.subr.mxu0 0.0
        %1262 = vmatpush1.msra.mxu0 0.0
        %1263 = vmatprep.subr.mxu0 0.0
        %1264 = vmatpush1.msra.mxu0 0.0
        %1265 = vmatprep.subr.mxu0 0.0
        %1266 = vmatpush1.msra.mxu0 0.0
        %1267 = vmatprep.subr.mxu0 0.0
        %1268 = vmatpush1.msra.mxu0 0.0
        %1269 = vmatprep.subr.mxu0 0.0
        %1270 = vmatpush1.msra.mxu0 0.0
        %1271 = vmatprep.subr.mxu0 0.0
        %1272 = vmatpush1.msra.mxu0 0.0
        %1273 = vmatprep.subr.mxu0 0.0
        %1274 = vmatpush1.msra.mxu0 0.0
        %1275 = vmatprep.subr.mxu0 0.0
        %1276 = vmatpush1.msra.mxu0 0.0
        %1277 = vmatprep.subr.mxu0 0.0
        %1278 = vmatpush1.msra.mxu0 0.0
        %1279 = vmatprep.subr.mxu0 0.0
        %1280 = vmatpush1.msra.mxu0 0.0
        %1281 = vmatprep.subr.mxu0 0.0
        %1282 = vmatpush1.msra.mxu0 0.0
        %1283 = vmatprep.subr.mxu0 0.0
        %1284 = vmatpush1.msra.mxu0 0.0
        %1285 = vmatprep.mubr.f32.mxu0 0.0
        %1286 = vmatmul.mubr.f32.gmra.mrb[0].mxu0 %v1219
        %v1287 = vpop.f32.mrb[0].mxu0
        %v1288 = vadd.f32 0.0, %v1287
        %v1289 = vpop.f32.mrb[0].mxu0
        %1290 = vdwg.mxu0
        %1291 = vrot.lane.b32.xlu0 %v713, 112
        %v1292 = vpop.permute.xlu0 %1291
        %v1295 = vsel %vm789, %v1136, 0
        %1297 = vmatprep.subr.mxu0 0.0
        %1298 = vmatpush1.msra.mxu0 %v1292
        %1299 = vmatprep.subr.mxu0 0.0
        %1300 = vmatpush1.msra.mxu0 0.0
        %1301 = vmatprep.subr.mxu0 0.0
        %1302 = vmatpush1.msra.mxu0 0.0
        %1303 = vmatprep.subr.mxu0 0.0
        %1304 = vmatpush1.msra.mxu0 0.0
        %1305 = vmatprep.subr.mxu0 0.0
        %1306 = vmatpush1.msra.mxu0 0.0
        %1307 = vmatprep.subr.mxu0 0.0
        %1308 = vmatpush1.msra.mxu0 0.0
        %1309 = vmatprep.subr.mxu0 0.0
        %1310 = vmatpush1.msra.mxu0 0.0
        %1311 = vmatprep.subr.mxu0 0.0
        %1312 = vmatpush1.msra.mxu0 0.0
        %1313 = vmatprep.subr.mxu0 0.0
        %1314 = vmatpush1.msra.mxu0 0.0
        %1315 = vmatprep.subr.mxu0 0.0
        %1316 = vmatpush1.msra.mxu0 0.0
        %1317 = vmatprep.subr.mxu0 0.0
        %1318 = vmatpush1.msra.mxu0 0.0
        %1319 = vmatprep.subr.mxu0 0.0
        %1320 = vmatpush1.msra.mxu0 0.0
        %1321 = vmatprep.subr.mxu0 0.0
        %1322 = vmatpush1.msra.mxu0 0.0
        %1323 = vmatprep.subr.mxu0 0.0
        %1324 = vmatpush1.msra.mxu0 0.0
        %1325 = vmatprep.subr.mxu0 0.0
        %1326 = vmatpush1.msra.mxu0 0.0
        %1327 = vmatprep.subr.mxu0 0.0
        %1328 = vmatpush1.msra.mxu0 0.0
        %1329 = vmatprep.subr.mxu0 0.0
        %1330 = vmatpush1.msra.mxu0 0.0
        %1331 = vmatprep.subr.mxu0 0.0
        %1332 = vmatpush1.msra.mxu0 0.0
        %1333 = vmatprep.subr.mxu0 0.0
        %1334 = vmatpush1.msra.mxu0 0.0
        %1335 = vmatprep.subr.mxu0 0.0
        %1336 = vmatpush1.msra.mxu0 0.0
        %1337 = vmatprep.subr.mxu0 0.0
        %1338 = vmatpush1.msra.mxu0 0.0
        %1339 = vmatprep.subr.mxu0 0.0
        %1340 = vmatpush1.msra.mxu0 0.0
        %1341 = vmatprep.subr.mxu0 0.0
        %1342 = vmatpush1.msra.mxu0 0.0
        %1343 = vmatprep.subr.mxu0 0.0
        %1344 = vmatpush1.msra.mxu0 0.0
        %1345 = vmatprep.subr.mxu0 0.0
        %1346 = vmatpush1.msra.mxu0 0.0
        %1347 = vmatprep.subr.mxu0 0.0
        %1348 = vmatpush1.msra.mxu0 0.0
        %1349 = vmatprep.subr.mxu0 0.0
        %1350 = vmatpush1.msra.mxu0 0.0
        %1351 = vmatprep.subr.mxu0 0.0
        %1352 = vmatpush1.msra.mxu0 0.0
        %1353 = vmatprep.subr.mxu0 0.0
        %1354 = vmatpush1.msra.mxu0 0.0
        %1355 = vmatprep.subr.mxu0 0.0
        %1356 = vmatpush1.msra.mxu0 0.0
        %1357 = vmatprep.subr.mxu0 0.0
        %1358 = vmatpush1.msra.mxu0 0.0
        %1359 = vmatprep.subr.mxu0 0.0
        %1360 = vmatpush1.msra.mxu0 0.0
        %1361 = vmatprep.mubr.f32.mxu0 0.0
        %1362 = vmatmul.mubr.f32.gmra.mrb[0].mxu0 %v1295
        %v1363 = vpop.f32.mrb[0].mxu0
        %v1364 = vadd.f32 0.0, %v1363
        %v1365 = vpop.f32.mrb[0].mxu0
        %1366 = vdwg.mxu0
        %1367 = vrot.lane.b32.xlu0 %v783, 112
        %v1368 = vpop.permute.xlu0 %1367
        %v1371 = vsel %vm789, %v1138, 0
        %1373 = vmatprep.subr.mxu0 0.0
        %1374 = vmatpush1.msra.mxu0 %v1368
        %1375 = vmatprep.subr.mxu0 0.0
        %1376 = vmatpush1.msra.mxu0 0.0
        %1377 = vmatprep.subr.mxu0 0.0
        %1378 = vmatpush1.msra.mxu0 0.0
        %1379 = vmatprep.subr.mxu0 0.0
        %1380 = vmatpush1.msra.mxu0 0.0
        %1381 = vmatprep.subr.mxu0 0.0
        %1382 = vmatpush1.msra.mxu0 0.0
        %1383 = vmatprep.subr.mxu0 0.0
        %1384 = vmatpush1.msra.mxu0 0.0
        %1385 = vmatprep.subr.mxu0 0.0
        %1386 = vmatpush1.msra.mxu0 0.0
        %1387 = vmatprep.subr.mxu0 0.0
        %1388 = vmatpush1.msra.mxu0 0.0
        %1389 = vmatprep.subr.mxu0 0.0
        %1390 = vmatpush1.msra.mxu0 0.0
        %1391 = vmatprep.subr.mxu0 0.0
        %1392 = vmatpush1.msra.mxu0 0.0
        %1393 = vmatprep.subr.mxu0 0.0
        %1394 = vmatpush1.msra.mxu0 0.0
        %1395 = vmatprep.subr.mxu0 0.0
        %1396 = vmatpush1.msra.mxu0 0.0
        %1397 = vmatprep.subr.mxu0 0.0
        %1398 = vmatpush1.msra.mxu0 0.0
        %1399 = vmatprep.subr.mxu0 0.0
        %1400 = vmatpush1.msra.mxu0 0.0
        %1401 = vmatprep.subr.mxu0 0.0
        %1402 = vmatpush1.msra.mxu0 0.0
        %1403 = vmatprep.subr.mxu0 0.0
        %1404 = vmatpush1.msra.mxu0 0.0
        %1405 = vmatprep.subr.mxu0 0.0
        %1406 = vmatpush1.msra.mxu0 0.0
        %1407 = vmatprep.subr.mxu0 0.0
        %1408 = vmatpush1.msra.mxu0 0.0
        %1409 = vmatprep.subr.mxu0 0.0
        %1410 = vmatpush1.msra.mxu0 0.0
        %1411 = vmatprep.subr.mxu0 0.0
        %1412 = vmatpush1.msra.mxu0 0.0
        %1413 = vmatprep.subr.mxu0 0.0
        %1414 = vmatpush1.msra.mxu0 0.0
        %1415 = vmatprep.subr.mxu0 0.0
        %1416 = vmatpush1.msra.mxu0 0.0
        %1417 = vmatprep.subr.mxu0 0.0
        %1418 = vmatpush1.msra.mxu0 0.0
        %1419 = vmatprep.subr.mxu0 0.0
        %1420 = vmatpush1.msra.mxu0 0.0
        %1421 = vmatprep.subr.mxu0 0.0
        %1422 = vmatpush1.msra.mxu0 0.0
        %1423 = vmatprep.subr.mxu0 0.0
        %1424 = vmatpush1.msra.mxu0 0.0
        %1425 = vmatprep.subr.mxu0 0.0
        %1426 = vmatpush1.msra.mxu0 0.0
        %1427 = vmatprep.subr.mxu0 0.0
        %1428 = vmatpush1.msra.mxu0 0.0
        %1429 = vmatprep.subr.mxu0 0.0
        %1430 = vmatpush1.msra.mxu0 0.0
        %1431 = vmatprep.subr.mxu0 0.0
        %1432 = vmatpush1.msra.mxu0 0.0
        %1433 = vmatprep.subr.mxu0 0.0
        %1434 = vmatpush1.msra.mxu0 0.0
        %1435 = vmatprep.subr.mxu0 0.0
        %1436 = vmatpush1.msra.mxu0 0.0
        %1437 = vmatprep.mubr.f32.mxu0 0.0
        %1438 = vmatmul.mubr.f32.gmra.mrb[0].mxu0 %v1371
        %v1439 = vpop.f32.mrb[0].mxu0
        %v1440 = vadd.f32 0.0, %v1439
        %v1441 = vpop.f32.mrb[0].mxu0
        %1442 = vdwg.mxu0
        %v1443 = vld [vmem:[%s4] sm:$0xff]
        %v1444 = vld [vmem:[%s4 + $0x8] sm:$0xff]
        %v1445 = vld [vmem:[%s4 + $0x10] sm:$0xff]
        %v1446 = vld [vmem:[%s4 + $0x18] sm:$0xff]
        %v1448 = vsel %vm789, %v1212, 0
        %1450 = vmatprep.subr.mxu0 0.0
        %1451 = vmatpush1.msra.mxu0 %v1443
        %1452 = vmatprep.subr.mxu0 0.0
        %1453 = vmatpush1.msra.mxu0 0.0
        %1454 = vmatprep.subr.mxu0 0.0
        %1455 = vmatpush1.msra.mxu0 0.0
        %1456 = vmatprep.subr.mxu0 0.0
        %1457 = vmatpush1.msra.mxu0 0.0
        %1458 = vmatprep.subr.mxu0 0.0
        %1459 = vmatpush1.msra.mxu0 0.0
        %1460 = vmatprep.subr.mxu0 0.0
        %1461 = vmatpush1.msra.mxu0 0.0
        %1462 = vmatprep.subr.mxu0 0.0
        %1463 = vmatpush1.msra.mxu0 0.0
        %1464 = vmatprep.subr.mxu0 0.0
        %1465 = vmatpush1.msra.mxu0 0.0
        %1466 = vmatprep.subr.mxu0 0.0
        %1467 = vmatpush1.msra.mxu0 0.0
        %1468 = vmatprep.subr.mxu0 0.0
        %1469 = vmatpush1.msra.mxu0 0.0
        %1470 = vmatprep.subr.mxu0 0.0
        %1471 = vmatpush1.msra.mxu0 0.0
        %1472 = vmatprep.subr.mxu0 0.0
        %1473 = vmatpush1.msra.mxu0 0.0
        %1474 = vmatprep.subr.mxu0 0.0
        %1475 = vmatpush1.msra.mxu0 0.0
        %1476 = vmatprep.subr.mxu0 0.0
        %1477 = vmatpush1.msra.mxu0 0.0
        %1478 = vmatprep.subr.mxu0 0.0
        %1479 = vmatpush1.msra.mxu0 0.0
        %1480 = vmatprep.subr.mxu0 0.0
        %1481 = vmatpush1.msra.mxu0 0.0
        %1482 = vmatprep.subr.mxu0 0.0
        %1483 = vmatpush1.msra.mxu0 0.0
        %1484 = vmatprep.subr.mxu0 0.0
        %1485 = vmatpush1.msra.mxu0 0.0
        %1486 = vmatprep.subr.mxu0 0.0
        %1487 = vmatpush1.msra.mxu0 0.0
        %1488 = vmatprep.subr.mxu0 0.0
        %1489 = vmatpush1.msra.mxu0 0.0
        %1490 = vmatprep.subr.mxu0 0.0
        %1491 = vmatpush1.msra.mxu0 0.0
        %1492 = vmatprep.subr.mxu0 0.0
        %1493 = vmatpush1.msra.mxu0 0.0
        %1494 = vmatprep.subr.mxu0 0.0
        %1495 = vmatpush1.msra.mxu0 0.0
        %1496 = vmatprep.subr.mxu0 0.0
        %1497 = vmatpush1.msra.mxu0 0.0
        %1498 = vmatprep.subr.mxu0 0.0
        %1499 = vmatpush1.msra.mxu0 0.0
        %1500 = vmatprep.subr.mxu0 0.0
        %1501 = vmatpush1.msra.mxu0 0.0
        %1502 = vmatprep.subr.mxu0 0.0
        %1503 = vmatpush1.msra.mxu0 0.0
        %1504 = vmatprep.subr.mxu0 0.0
        %1505 = vmatpush1.msra.mxu0 0.0
        %1506 = vmatprep.subr.mxu0 0.0
        %1507 = vmatpush1.msra.mxu0 0.0
        %1508 = vmatprep.subr.mxu0 0.0
        %1509 = vmatpush1.msra.mxu0 0.0
        %1510 = vmatprep.subr.mxu0 0.0
        %1511 = vmatpush1.msra.mxu0 0.0
        %1512 = vmatprep.subr.mxu0 0.0
        %1513 = vmatpush1.msra.mxu0 0.0
        %1514 = vmatprep.mubr.f32.mxu0 0.0
        %1515 = vmatmul.mubr.f32.gmra.mrb[0].mxu0 %v1448
        %v1516 = vpop.f32.mrb[0].mxu0
        %v1517 = vadd.f32 0.0, %v1516
        %v1518 = vpop.f32.mrb[0].mxu0
        %1519 = vdwg.mxu0
        %v1521 = vsel %vm789, %v1288, 0
        %1523 = vmatprep.subr.mxu0 0.0
        %1524 = vmatpush1.msra.mxu0 %v1444
        %1525 = vmatprep.subr.mxu0 0.0
        %1526 = vmatpush1.msra.mxu0 0.0
        %1527 = vmatprep.subr.mxu0 0.0
        %1528 = vmatpush1.msra.mxu0 0.0
        %1529 = vmatprep.subr.mxu0 0.0
        %1530 = vmatpush1.msra.mxu0 0.0
        %1531 = vmatprep.subr.mxu0 0.0
        %1532 = vmatpush1.msra.mxu0 0.0
        %1533 = vmatprep.subr.mxu0 0.0
        %1534 = vmatpush1.msra.mxu0 0.0
        %1535 = vmatprep.subr.mxu0 0.0
        %1536 = vmatpush1.msra.mxu0 0.0
        %1537 = vmatprep.subr.mxu0 0.0
        %1538 = vmatpush1.msra.mxu0 0.0
        %1539 = vmatprep.subr.mxu0 0.0
        %1540 = vmatpush1.msra.mxu0 0.0
        %1541 = vmatprep.subr.mxu0 0.0
        %1542 = vmatpush1.msra.mxu0 0.0
        %1543 = vmatprep.subr.mxu0 0.0
        %1544 = vmatpush1.msra.mxu0 0.0
        %1545 = vmatprep.subr.mxu0 0.0
        %1546 = vmatpush1.msra.mxu0 0.0
        %1547 = vmatprep.subr.mxu0 0.0
        %1548 = vmatpush1.msra.mxu0 0.0
        %1549 = vmatprep.subr.mxu0 0.0
        %1550 = vmatpush1.msra.mxu0 0.0
        %1551 = vmatprep.subr.mxu0 0.0
        %1552 = vmatpush1.msra.mxu0 0.0
        %1553 = vmatprep.subr.mxu0 0.0
        %1554 = vmatpush1.msra.mxu0 0.0
        %1555 = vmatprep.subr.mxu0 0.0
        %1556 = vmatpush1.msra.mxu0 0.0
        %1557 = vmatprep.subr.mxu0 0.0
        %1558 = vmatpush1.msra.mxu0 0.0
        %1559 = vmatprep.subr.mxu0 0.0
        %1560 = vmatpush1.msra.mxu0 0.0
        %1561 = vmatprep.subr.mxu0 0.0
        %1562 = vmatpush1.msra.mxu0 0.0
        %1563 = vmatprep.subr.mxu0 0.0
        %1564 = vmatpush1.msra.mxu0 0.0
        %1565 = vmatprep.subr.mxu0 0.0
        %1566 = vmatpush1.msra.mxu0 0.0
        %1567 = vmatprep.subr.mxu0 0.0
        %1568 = vmatpush1.msra.mxu0 0.0
        %1569 = vmatprep.subr.mxu0 0.0
        %1570 = vmatpush1.msra.mxu0 0.0
        %1571 = vmatprep.subr.mxu0 0.0
        %1572 = vmatpush1.msra.mxu0 0.0
        %1573 = vmatprep.subr.mxu0 0.0
        %1574 = vmatpush1.msra.mxu0 0.0
        %1575 = vmatprep.subr.mxu0 0.0
        %1576 = vmatpush1.msra.mxu0 0.0
        %1577 = vmatprep.subr.mxu0 0.0
        %1578 = vmatpush1.msra.mxu0 0.0
        %1579 = vmatprep.subr.mxu0 0.0
        %1580 = vmatpush1.msra.mxu0 0.0
        %1581 = vmatprep.subr.mxu0 0.0
        %1582 = vmatpush1.msra.mxu0 0.0
        %1583 = vmatprep.subr.mxu0 0.0
        %1584 = vmatpush1.msra.mxu0 0.0
        %1585 = vmatprep.subr.mxu0 0.0
        %1586 = vmatpush1.msra.mxu0 0.0
        %1587 = vmatprep.mubr.f32.mxu0 0.0
        %1588 = vmatmul.mubr.f32.gmra.mrb[0].mxu0 %v1521
        %v1589 = vpop.f32.mrb[0].mxu0
        %v1590 = vadd.f32 0.0, %v1589
        %v1591 = vpop.f32.mrb[0].mxu0
        %1592 = vdwg.mxu0
        %v1594 = vsel %vm789, %v1364, 0
        %1596 = vmatprep.subr.mxu0 0.0
        %1597 = vmatpush1.msra.mxu0 %v1445
        %1598 = vmatprep.subr.mxu0 0.0
        %1599 = vmatpush1.msra.mxu0 0.0
        %1600 = vmatprep.subr.mxu0 0.0
        %1601 = vmatpush1.msra.mxu0 0.0
        %1602 = vmatprep.subr.mxu0 0.0
        %1603 = vmatpush1.msra.mxu0 0.0
        %1604 = vmatprep.subr.mxu0 0.0
        %1605 = vmatpush1.msra.mxu0 0.0
        %1606 = vmatprep.subr.mxu0 0.0
        %1607 = vmatpush1.msra.mxu0 0.0
        %1608 = vmatprep.subr.mxu0 0.0
        %1609 = vmatpush1.msra.mxu0 0.0
        %1610 = vmatprep.subr.mxu0 0.0
        %1611 = vmatpush1.msra.mxu0 0.0
        %1612 = vmatprep.subr.mxu0 0.0
        %1613 = vmatpush1.msra.mxu0 0.0
        %1614 = vmatprep.subr.mxu0 0.0
        %1615 = vmatpush1.msra.mxu0 0.0
        %1616 = vmatprep.subr.mxu0 0.0
        %1617 = vmatpush1.msra.mxu0 0.0
        %1618 = vmatprep.subr.mxu0 0.0
        %1619 = vmatpush1.msra.mxu0 0.0
        %1620 = vmatprep.subr.mxu0 0.0
        %1621 = vmatpush1.msra.mxu0 0.0
        %1622 = vmatprep.subr.mxu0 0.0
        %1623 = vmatpush1.msra.mxu0 0.0
        %1624 = vmatprep.subr.mxu0 0.0
        %1625 = vmatpush1.msra.mxu0 0.0
        %1626 = vmatprep.subr.mxu0 0.0
        %1627 = vmatpush1.msra.mxu0 0.0
        %1628 = vmatprep.subr.mxu0 0.0
        %1629 = vmatpush1.msra.mxu0 0.0
        %1630 = vmatprep.subr.mxu0 0.0
        %1631 = vmatpush1.msra.mxu0 0.0
        %1632 = vmatprep.subr.mxu0 0.0
        %1633 = vmatpush1.msra.mxu0 0.0
        %1634 = vmatprep.subr.mxu0 0.0
        %1635 = vmatpush1.msra.mxu0 0.0
        %1636 = vmatprep.subr.mxu0 0.0
        %1637 = vmatpush1.msra.mxu0 0.0
        %1638 = vmatprep.subr.mxu0 0.0
        %1639 = vmatpush1.msra.mxu0 0.0
        %1640 = vmatprep.subr.mxu0 0.0
        %1641 = vmatpush1.msra.mxu0 0.0
        %1642 = vmatprep.subr.mxu0 0.0
        %1643 = vmatpush1.msra.mxu0 0.0
        %1644 = vmatprep.subr.mxu0 0.0
        %1645 = vmatpush1.msra.mxu0 0.0
        %1646 = vmatprep.subr.mxu0 0.0
        %1647 = vmatpush1.msra.mxu0 0.0
        %1648 = vmatprep.subr.mxu0 0.0
        %1649 = vmatpush1.msra.mxu0 0.0
        %1650 = vmatprep.subr.mxu0 0.0
        %1651 = vmatpush1.msra.mxu0 0.0
        %1652 = vmatprep.subr.mxu0 0.0
        %1653 = vmatpush1.msra.mxu0 0.0
        %1654 = vmatprep.subr.mxu0 0.0
        %1655 = vmatpush1.msra.mxu0 0.0
        %1656 = vmatprep.subr.mxu0 0.0
        %1657 = vmatpush1.msra.mxu0 0.0
        %1658 = vmatprep.subr.mxu0 0.0
        %1659 = vmatpush1.msra.mxu0 0.0
        %1660 = vmatprep.mubr.f32.mxu0 0.0
        %1661 = vmatmul.mubr.f32.gmra.mrb[0].mxu0 %v1594
        %v1662 = vpop.f32.mrb[0].mxu0
        %v1663 = vadd.f32 0.0, %v1662
        %v1664 = vpop.f32.mrb[0].mxu0
        %1665 = vdwg.mxu0
        %v1667 = vsel %vm789, %v1440, 0
        %1669 = vmatprep.subr.mxu0 0.0
        %1670 = vmatpush1.msra.mxu0 %v1446
        %1671 = vmatprep.subr.mxu0 0.0
        %1672 = vmatpush1.msra.mxu0 0.0
        %1673 = vmatprep.subr.mxu0 0.0
        %1674 = vmatpush1.msra.mxu0 0.0
        %1675 = vmatprep.subr.mxu0 0.0
        %1676 = vmatpush1.msra.mxu0 0.0
        %1677 = vmatprep.subr.mxu0 0.0
        %1678 = vmatpush1.msra.mxu0 0.0
        %1679 = vmatprep.subr.mxu0 0.0
        %1680 = vmatpush1.msra.mxu0 0.0
        %1681 = vmatprep.subr.mxu0 0.0
        %1682 = vmatpush1.msra.mxu0 0.0
        %1683 = vmatprep.subr.mxu0 0.0
        %1684 = vmatpush1.msra.mxu0 0.0
        %1685 = vmatprep.subr.mxu0 0.0
        %1686 = vmatpush1.msra.mxu0 0.0
        %1687 = vmatprep.subr.mxu0 0.0
        %1688 = vmatpush1.msra.mxu0 0.0
        %1689 = vmatprep.subr.mxu0 0.0
        %1690 = vmatpush1.msra.mxu0 0.0
        %1691 = vmatprep.subr.mxu0 0.0
        %1692 = vmatpush1.msra.mxu0 0.0
        %1693 = vmatprep.subr.mxu0 0.0
        %1694 = vmatpush1.msra.mxu0 0.0
        %1695 = vmatprep.subr.mxu0 0.0
        %1696 = vmatpush1.msra.mxu0 0.0
        %1697 = vmatprep.subr.mxu0 0.0
        %1698 = vmatpush1.msra.mxu0 0.0
        %1699 = vmatprep.subr.mxu0 0.0
        %1700 = vmatpush1.msra.mxu0 0.0
        %1701 = vmatprep.subr.mxu0 0.0
        %1702 = vmatpush1.msra.mxu0 0.0
        %1703 = vmatprep.subr.mxu0 0.0
        %1704 = vmatpush1.msra.mxu0 0.0
        %1705 = vmatprep.subr.mxu0 0.0
        %1706 = vmatpush1.msra.mxu0 0.0
        %1707 = vmatprep.subr.mxu0 0.0
        %1708 = vmatpush1.msra.mxu0 0.0
        %1709 = vmatprep.subr.mxu0 0.0
        %1710 = vmatpush1.msra.mxu0 0.0
        %1711 = vmatprep.subr.mxu0 0.0
        %1712 = vmatpush1.msra.mxu0 0.0
        %1713 = vmatprep.subr.mxu0 0.0
        %1714 = vmatpush1.msra.mxu0 0.0
        %1715 = vmatprep.subr.mxu0 0.0
        %1716 = vmatpush1.msra.mxu0 0.0
        %1717 = vmatprep.subr.mxu0 0.0
        %1718 = vmatpush1.msra.mxu0 0.0
        %1719 = vmatprep.subr.mxu0 0.0
        %1720 = vmatpush1.msra.mxu0 0.0
        %1721 = vmatprep.subr.mxu0 0.0
        %1722 = vmatpush1.msra.mxu0 0.0
        %1723 = vmatprep.subr.mxu0 0.0
        %1724 = vmatpush1.msra.mxu0 0.0
        %1725 = vmatprep.subr.mxu0 0.0
        %1726 = vmatpush1.msra.mxu0 0.0
        %1727 = vmatprep.subr.mxu0 0.0
        %1728 = vmatpush1.msra.mxu0 0.0
        %1729 = vmatprep.subr.mxu0 0.0
        %1730 = vmatpush1.msra.mxu0 0.0
        %1731 = vmatprep.subr.mxu0 0.0
        %1732 = vmatpush1.msra.mxu0 0.0
        %1733 = vmatprep.mubr.f32.mxu0 0.0
        %1734 = vmatmul.mubr.f32.gmra.mrb[0].mxu0 %v1667
        %v1735 = vpop.f32.mrb[0].mxu0
        %v1736 = vadd.f32 0.0, %v1735
        %v1737 = vpop.f32.mrb[0].mxu0
        %1738 = vdwg.mxu0
        %v1739 = vsel %vm462, %v1517, 0.0
        %v1740 = vsel %vm462, %v1590, 0.0
        %v1741 = vadd.f32 %v1739, %v1740
        %v1742 = vsel %vm462, %v1663, 0.0
        %v1743 = vadd.f32 %v1741, %v1742
        %v1744 = vsel %vm462, %v1736, 0.0
        %v1745 = vadd.f32 %v1743, %v1744
        %v1746 = vadd.f32 %v447, %v1745
        %v1747 = vlaneseq
        %v1748 = vshrl.u32 %v1747, 7
        %v1749 = vsub.s32 2, %v1748
        %v1750 = vrot.slane %v351, %v1749
        %v1751 = vadd.f32 %v1746, %v1750
        %v1752 = vsel %vm462, %v1751, 0.0
        %1753 = vadd.xlane.f32.xlu0 %v1752
        %v1754 = vpop.xlane.xlu0 %1753
        %v1755 = vmul.f32 %v1754, %v466
        %v1756 = vsub.f32 %v1751, %v1755
        %v1757 = vmul.f32 %v1756, %v1756
        %v1758 = vsel %vm462, %v1757, 0.0
        %1759 = vadd.xlane.f32.xlu0 %v1758
        %v1760 = vpop.xlane.xlu0 %1759
        %v1761 = vmul.f32 %v1760, %v466
        %v1762 = vadd.f32 %v1761, 1e-05
        %v1763 = vrsqrt.pop %v1762
        %v1764 = vmul.f32 %v1756, %v1763
        %v1765 = vlaneseq
        %v1766 = vshrl.u32 %v1765, 7
        %v1767 = vsub.s32 3, %v1766
        %v1768 = vrot.slane %v351, %v1767
        %v1769 = vmul.f32 %v1764, %v1768
        %v1770 = vlaneseq
        %v1771 = vshrl.u32 %v1770, 7
        %v1772 = vsub.s32 4, %v1771
        %v1773 = vrot.slane %v351, %v1772
        %v1774 = vadd.f32 %v1769, %v1773
        %v1775 = vld [vmem:[%s5] sm:$0xff]
        %v1776 = vld [vmem:[%s5 + $0x8] sm:$0xff]
        %v1777 = vld [vmem:[%s5 + $0x10] sm:$0xff]
        %v1778 = vld [vmem:[%s5 + $0x18] sm:$0xff]
        %v1779 = vlaneseq
        %v1780 = vshrl.u32 %v1779, 7
        %v1781 = vsub.s32 0, %v1780
        %v1782 = vrot.slane %v353, %v1781
        %v1784 = vsel %vm462, %v1774, 0
        %1786 = vmatprep.subr.mxu0 0.0
        %1787 = vmatpush1.msra.mxu0 %v1775
        %1788 = vmatprep.subr.mxu0 0.0
        %1789 = vmatpush1.msra.mxu0 %v1776
        %1790 = vmatprep.subr.mxu0 0.0
        %1791 = vmatpush1.msra.mxu0 %v1777
        %1792 = vmatprep.subr.mxu0 0.0
        %1793 = vmatpush1.msra.mxu0 %v1778
        %1794 = vmatprep.subr.mxu0 0.0
        %1795 = vmatpush1.msra.mxu0 0.0
        %1796 = vmatprep.subr.mxu0 0.0
        %1797 = vmatpush1.msra.mxu0 0.0
        %1798 = vmatprep.subr.mxu0 0.0
        %1799 = vmatpush1.msra.mxu0 0.0
        %1800 = vmatprep.subr.mxu0 0.0
        %1801 = vmatpush1.msra.mxu0 0.0
        %1802 = vmatprep.subr.mxu0 0.0
        %1803 = vmatpush1.msra.mxu0 0.0
        %1804 = vmatprep.subr.mxu0 0.0
        %1805 = vmatpush1.msra.mxu0 0.0
        %1806 = vmatprep.subr.mxu0 0.0
        %1807 = vmatpush1.msra.mxu0 0.0
        %1808 = vmatprep.subr.mxu0 0.0
        %1809 = vmatpush1.msra.mxu0 0.0
        %1810 = vmatprep.subr.mxu0 0.0
        %1811 = vmatpush1.msra.mxu0 0.0
        %1812 = vmatprep.subr.mxu0 0.0
        %1813 = vmatpush1.msra.mxu0 0.0
        %1814 = vmatprep.subr.mxu0 0.0
        %1815 = vmatpush1.msra.mxu0 0.0
        %1816 = vmatprep.subr.mxu0 0.0
        %1817 = vmatpush1.msra.mxu0 0.0
        %1818 = vmatprep.subr.mxu0 0.0
        %1819 = vmatpush1.msra.mxu0 0.0
        %1820 = vmatprep.subr.mxu0 0.0
        %1821 = vmatpush1.msra.mxu0 0.0
        %1822 = vmatprep.subr.mxu0 0.0
        %1823 = vmatpush1.msra.mxu0 0.0
        %1824 = vmatprep.subr.mxu0 0.0
        %1825 = vmatpush1.msra.mxu0 0.0
        %1826 = vmatprep.subr.mxu0 0.0
        %1827 = vmatpush1.msra.mxu0 0.0
        %1828 = vmatprep.subr.mxu0 0.0
        %1829 = vmatpush1.msra.mxu0 0.0
        %1830 = vmatprep.subr.mxu0 0.0
        %1831 = vmatpush1.msra.mxu0 0.0
        %1832 = vmatprep.subr.mxu0 0.0
        %1833 = vmatpush1.msra.mxu0 0.0
        %1834 = vmatprep.subr.mxu0 0.0
        %1835 = vmatpush1.msra.mxu0 0.0
        %1836 = vmatprep.subr.mxu0 0.0
        %1837 = vmatpush1.msra.mxu0 0.0
        %1838 = vmatprep.subr.mxu0 0.0
        %1839 = vmatpush1.msra.mxu0 0.0
        %1840 = vmatprep.subr.mxu0 0.0
        %1841 = vmatpush1.msra.mxu0 0.0
        %1842 = vmatprep.subr.mxu0 0.0
        %1843 = vmatpush1.msra.mxu0 0.0
        %1844 = vmatprep.subr.mxu0 0.0
        %1845 = vmatpush1.msra.mxu0 0.0
        %1846 = vmatprep.subr.mxu0 0.0
        %1847 = vmatpush1.msra.mxu0 0.0
        %1848 = vmatprep.subr.mxu0 0.0
        %1849 = vmatpush1.msra.mxu0 0.0
        %1850 = vmatprep.mubr.f32.mxu0 0.0
        %1851 = vmatmul.mubr.f32.gmra.mrb[0].mxu0 %v1784
        %v1852 = vpop.f32.mrb[0].mxu0
        %v1853 = vadd.f32 %v1782, %v1852
        %v1854 = vpop.f32.mrb[0].mxu0
        %1855 = vdwg.mxu0
        %v1856 = vmul.f32 %v1853, 0.5
        %v1857 = vmul.f32 %v1853, 0.044715
        %v1858 = vmul.f32 %v1857, %v1853
        %v1859 = vmul.f32 %v1858, %v1853
        %v1860 = vadd.f32 %v1853, %v1859
        %v1861 = vmul.f32 %v1860, 0.7978846
        %v1862 = vtanh.pop %v1861
        %v1863 = vadd.f32 %v1862, 1.0
        %v1864 = vmul.f32 %v1856, %v1863
        %v1865 = vld [vmem:[%s5 + $0x20] sm:$0xff]
        %v1866 = vld [vmem:[%s5 + $0x28] sm:$0xff]
        %v1867 = vld [vmem:[%s5 + $0x30] sm:$0xff]
        %v1868 = vld [vmem:[%s5 + $0x38] sm:$0xff]
        %1869 = vmatprep.subr.mxu0 0.0
        %1870 = vmatpush1.xpose.msra.mxu0 %v1865
        %1871 = vmatprep.subr.mxu0 0.0
        %1872 = vmatpush1.xpose.msra.mxu0 %v1866
        %1873 = vmatprep.subr.mxu0 0.0
        %1874 = vmatpush1.xpose.msra.mxu0 %v1867
        %1875 = vmatprep.subr.mxu0 0.0
        %1876 = vmatpush1.xpose.msra.mxu0 %v1868
        %1877 = vmatprep.subr.mxu0 0.0
        %1878 = vmatpush1.xpose.msra.mxu0 0.0
        %1879 = vmatprep.subr.mxu0 0.0
        %1880 = vmatpush1.xpose.msra.mxu0 0.0
        %1881 = vmatprep.subr.mxu0 0.0
        %1882 = vmatpush1.xpose.msra.mxu0 0.0
        %1883 = vmatprep.subr.mxu0 0.0
        %1884 = vmatpush1.xpose.msra.mxu0 0.0
        %1885 = vmatprep.subr.mxu0 0.0
        %1886 = vmatpush1.xpose.msra.mxu0 0.0
        %1887 = vmatprep.subr.mxu0 0.0
        %1888 = vmatpush1.xpose.msra.mxu0 0.0
        %1889 = vmatprep.subr.mxu0 0.0
        %1890 = vmatpush1.xpose.msra.mxu0 0.0
        %1891 = vmatprep.subr.mxu0 0.0
        %1892 = vmatpush1.xpose.msra.mxu0 0.0
        %1893 = vmatprep.subr.mxu0 0.0
        %1894 = vmatpush1.xpose.msra.mxu0 0.0
        %1895 = vmatprep.subr.mxu0 0.0
        %1896 = vmatpush1.xpose.msra.mxu0 0.0
        %1897 = vmatprep.subr.mxu0 0.0
        %1898 = vmatpush1.xpose.msra.mxu0 0.0
        %1899 = vmatprep.subr.mxu0 0.0
        %1900 = vmatpush1.xpose.msra.mxu0 0.0
        %1901 = vmatprep.subr.mxu0 0.0
        %1902 = vmatpush1.xpose.msra.mxu0 0.0
        %1903 = vmatprep.subr.mxu0 0.0
        %1904 = vmatpush1.xpose.msra.mxu0 0.0
        %1905 = vmatprep.subr.mxu0 0.0
        %1906 = vmatpush1.xpose.msra.mxu0 0.0
        %1907 = vmatprep.subr.mxu0 0.0
        %1908 = vmatpush1.xpose.msra.mxu0 0.0
        %1909 = vmatprep.subr.mxu0 0.0
        %1910 = vmatpush1.xpose.msra.mxu0 0.0
        %1911 = vmatprep.subr.mxu0 0.0
        %1912 = vmatpush1.xpose.msra.mxu0 0.0
        %1913 = vmatprep.subr.mxu0 0.0
        %1914 = vmatpush1.xpose.msra.mxu0 0.0
        %1915 = vmatprep.subr.mxu0 0.0
        %1916 = vmatpush1.xpose.msra.mxu0 0.0
        %1917 = vmatprep.subr.mxu0 0.0
        %1918 = vmatpush1.xpose.msra.mxu0 0.0
        %1919 = vmatprep.subr.mxu0 0.0
        %1920 = vmatpush1.xpose.msra.mxu0 0.0
        %1921 = vmatprep.subr.mxu0 0.0
        %1922 = vmatpush1.xpose.msra.mxu0 0.0
        %1923 = vmatprep.subr.mxu0 0.0
        %1924 = vmatpush1.xpose.msra.mxu0 0.0
        %1925 = vmatprep.subr.mxu0 0.0
        %1926 = vmatpush1.xpose.msra.mxu0 0.0
        %1927 = vmatprep.subr.mxu0 0.0
        %1928 = vmatpush1.xpose.msra.mxu0 0.0
        %1929 = vmatprep.subr.mxu0 0.0
        %1930 = vmatpush1.xpose.msra.mxu0 0.0
        %1931 = vmatprep.subr.mxu0 0.0
        %1932 = vmatpush1.xpose.msra.mxu0 0.0
        %1933 = vmatprep.mubr.f32.mxu0 0.0
        %1934 = vmatmul.mubr.f32.gmra.mrb[0].mxu0 %v1864
        %v1935 = vpop.f32.mrb[0].mxu0
        %v1936 = vadd.f32 0.0, %v1935
        %v1937 = vpop.f32.mrb[0].mxu0
        %1938 = vdwg.mxu0
        %v1939 = vadd.f32 %v1751, %v1936
        %v1940 = vlaneseq
        %v1941 = vshrl.u32 %v1940, 7
        %v1942 = vsub.s32 5, %v1941
        %v1943 = vrot.slane %v351, %v1942
        %v1944 = vadd.f32 %v1939, %v1943
        %v1945 = vsel %vm462, %v1944, 0.0
        %1946 = vadd.xlane.f32.xlu0 %v1945
        %v1947 = vpop.xlane.xlu0 %1946
        %v1948 = vmul.f32 %v1947, %v466
        %v1949 = vsub.f32 %v1944, %v1948
        %v1950 = vmul.f32 %v1949, %v1949
        %v1951 = vsel %vm462, %v1950, 0.0
        %1952 = vadd.xlane.f32.xlu0 %v1951
        %v1953 = vpop.xlane.xlu0 %1952
        %v1954 = vmul.f32 %v1953, %v466
        %v1955 = vadd.f32 %v1954, 1e-05
        %v1956 = vrsqrt.pop %v1955
        %v1957 = vmul.f32 %v1949, %v1956
        %v1958 = vlaneseq
        %v1959 = vshrl.u32 %v1958, 7
        %v1960 = vsub.s32 6, %v1959
        %v1961 = vrot.slane %v351, %v1960
        %v1962 = vmul.f32 %v1957, %v1961
        %v1963 = vlaneseq
        %v1964 = vshrl.u32 %v1963, 7
        %v1965 = vsub.s32 7, %v1964
        %v1966 = vrot.slane %v351, %v1965
        %v1967 = vadd.f32 %v1962, %v1966
        %s1968 = scalar_lea.vmem %s3, 128
        %v1969 = vld [vmem:[%s1968] sm:$0xff]
        %v1970 = vld [vmem:[%s1968 + $0x8] sm:$0xff]
        %v1971 = vld [vmem:[%s1968 + $0x10] sm:$0xff]
        %v1972 = vld [vmem:[%s1968 + $0x18] sm:$0xff]
        %v1973 = vld [vmem:[%s1968 + $0x20] sm:$0xff]
        %v1974 = vld [vmem:[%s1968 + $0x28] sm:$0xff]
        %v1975 = vld [vmem:[%s1968 + $0x30] sm:$0xff]
        %v1976 = vld [vmem:[%s1968 + $0x38] sm:$0xff]
        %v1977 = vld [vmem:[%s1968 + $0x40] sm:$0xff]
        %v1978 = vld [vmem:[%s1968 + $0x48] sm:$0xff]
        %v1979 = vld [vmem:[%s1968 + $0x50] sm:$0xff]
        %v1980 = vld [vmem:[%s1968 + $0x58] sm:$0xff]
        %v1981 = vld [vmem:[%s1968 + $0x60] sm:$0xff]
        %v1982 = vld [vmem:[%s1968 + $0x68] sm:$0xff]
        %v1983 = vld [vmem:[%s1968 + $0x70] sm:$0xff]
        %v1984 = vld [vmem:[%s1968 + $0x78] sm:$0xff]
        %v1986 = vsel %vm462, %v1967, 0
        %1988 = vmatprep.subr.mxu0 0.0
        %1989 = vmatpush1.msra.mxu0 %v1969
        %1990 = vmatprep.subr.mxu0 0.0
        %1991 = vmatpush1.msra.mxu0 %v1970
        %1992 = vmatprep.subr.mxu0 0.0
        %1993 = vmatpush1.msra.mxu0 %v1971
        %1994 = vmatprep.subr.mxu0 0.0
        %1995 = vmatpush1.msra.mxu0 %v1972
        %1996 = vmatprep.subr.mxu0 0.0
        %1997 = vmatpush1.msra.mxu0 0.0
        %1998 = vmatprep.subr.mxu0 0.0
        %1999 = vmatpush1.msra.mxu0 0.0
        %2000 = vmatprep.subr.mxu0 0.0
        %2001 = vmatpush1.msra.mxu0 0.0
        %2002 = vmatprep.subr.mxu0 0.0
        %2003 = vmatpush1.msra.mxu0 0.0
        %2004 = vmatprep.subr.mxu0 0.0
        %2005 = vmatpush1.msra.mxu0 0.0
        %2006 = vmatprep.subr.mxu0 0.0
        %2007 = vmatpush1.msra.mxu0 0.0
        %2008 = vmatprep.subr.mxu0 0.0
        %2009 = vmatpush1.msra.mxu0 0.0
        %2010 = vmatprep.subr.mxu0 0.0
        %2011 = vmatpush1.msra.mxu0 0.0
        %2012 = vmatprep.subr.mxu0 0.0
        %2013 = vmatpush1.msra.mxu0 0.0
        %2014 = vmatprep.subr.mxu0 0.0
        %2015 = vmatpush1.msra.mxu0 0.0
        %2016 = vmatprep.subr.mxu0 0.0
        %2017 = vmatpush1.msra.mxu0 0.0
        %2018 = vmatprep.subr.mxu0 0.0
        %2019 = vmatpush1.msra.mxu0 0.0
        %2020 = vmatprep.subr.mxu0 0.0
        %2021 = vmatpush1.msra.mxu0 0.0
        %2022 = vmatprep.subr.mxu0 0.0
        %2023 = vmatpush1.msra.mxu0 0.0
        %2024 = vmatprep.subr.mxu0 0.0
        %2025 = vmatpush1.msra.mxu0 0.0
        %2026 = vmatprep.subr.mxu0 0.0
        %2027 = vmatpush1.msra.mxu0 0.0
        %2028 = vmatprep.subr.mxu0 0.0
        %2029 = vmatpush1.msra.mxu0 0.0
        %2030 = vmatprep.subr.mxu0 0.0
        %2031 = vmatpush1.msra.mxu0 0.0
        %2032 = vmatprep.subr.mxu0 0.0
        %2033 = vmatpush1.msra.mxu0 0.0
        %2034 = vmatprep.subr.mxu0 0.0
        %2035 = vmatpush1.msra.mxu0 0.0
        %2036 = vmatprep.subr.mxu0 0.0
        %2037 = vmatpush1.msra.mxu0 0.0
        %2038 = vmatprep.subr.mxu0 0.0
        %2039 = vmatpush1.msra.mxu0 0.0
        %2040 = vmatprep.subr.mxu0 0.0
        %2041 = vmatpush1.msra.mxu0 0.0
        %2042 = vmatprep.subr.mxu0 0.0
        %2043 = vmatpush1.msra.mxu0 0.0
        %2044 = vmatprep.subr.mxu0 0.0
        %2045 = vmatpush1.msra.mxu0 0.0
        %2046 = vmatprep.subr.mxu0 0.0
        %2047 = vmatpush1.msra.mxu0 0.0
        %2048 = vmatprep.subr.mxu0 0.0
        %2049 = vmatpush1.msra.mxu0 0.0
        %2050 = vmatprep.subr.mxu0 0.0
        %2051 = vmatpush1.msra.mxu0 0.0
        %2052 = vmatprep.mubr.f32.mxu0 0.0
        %2053 = vmatmul.mubr.f32.gmra.mrb[0].mxu0 %v1986
        %v2054 = vpop.f32.mrb[0].mxu0
        %v2055 = vadd.f32 0.0, %v2054
        %v2056 = vpop.f32.mrb[0].mxu0
        %2057 = vdwg.mxu0
        %2058 = vmatprep.subr.mxu0 0.0
        %2059 = vmatpush1.msra.mxu0 %v1973
        %2060 = vmatprep.subr.mxu0 0.0
        %2061 = vmatpush1.msra.mxu0 %v1974
        %2062 = vmatprep.subr.mxu0 0.0
        %2063 = vmatpush1.msra.mxu0 %v1975
        %2064 = vmatprep.subr.mxu0 0.0
        %2065 = vmatpush1.msra.mxu0 %v1976
        %2066 = vmatprep.subr.mxu0 0.0
        %2067 = vmatpush1.msra.mxu0 0.0
        %2068 = vmatprep.subr.mxu0 0.0
        %2069 = vmatpush1.msra.mxu0 0.0
        %2070 = vmatprep.subr.mxu0 0.0
        %2071 = vmatpush1.msra.mxu0 0.0
        %2072 = vmatprep.subr.mxu0 0.0
        %2073 = vmatpush1.msra.mxu0 0.0
        %2074 = vmatprep.subr.mxu0 0.0
        %2075 = vmatpush1.msra.mxu0 0.0
        %2076 = vmatprep.subr.mxu0 0.0
        %2077 = vmatpush1.msra.mxu0 0.0
        %2078 = vmatprep.subr.mxu0 0.0
        %2079 = vmatpush1.msra.mxu0 0.0
        %2080 = vmatprep.subr.mxu0 0.0
        %2081 = vmatpush1.msra.mxu0 0.0
        %2082 = vmatprep.subr.mxu0 0.0
        %2083 = vmatpush1.msra.mxu0 0.0
        %2084 = vmatprep.subr.mxu0 0.0
        %2085 = vmatpush1.msra.mxu0 0.0
        %2086 = vmatprep.subr.mxu0 0.0
        %2087 = vmatpush1.msra.mxu0 0.0
        %2088 = vmatprep.subr.mxu0 0.0
        %2089 = vmatpush1.msra.mxu0 0.0
        %2090 = vmatprep.subr.mxu0 0.0
        %2091 = vmatpush1.msra.mxu0 0.0
        %2092 = vmatprep.subr.mxu0 0.0
        %2093 = vmatpush1.msra.mxu0 0.0
        %2094 = vmatprep.subr.mxu0 0.0
        %2095 = vmatpush1.msra.mxu0 0.0
        %2096 = vmatprep.subr.mxu0 0.0
        %2097 = vmatpush1.msra.mxu0 0.0
        %2098 = vmatprep.subr.mxu0 0.0
        %2099 = vmatpush1.msra.mxu0 0.0
        %2100 = vmatprep.subr.mxu0 0.0
        %2101 = vmatpush1.msra.mxu0 0.0
        %2102 = vmatprep.subr.mxu0 0.0
        %2103 = vmatpush1.msra.mxu0 0.0
        %2104 = vmatprep.subr.mxu0 0.0
        %2105 = vmatpush1.msra.mxu0 0.0
        %2106 = vmatprep.subr.mxu0 0.0
        %2107 = vmatpush1.msra.mxu0 0.0
        %2108 = vmatprep.subr.mxu0 0.0
        %2109 = vmatpush1.msra.mxu0 0.0
        %2110 = vmatprep.subr.mxu0 0.0
        %2111 = vmatpush1.msra.mxu0 0.0
        %2112 = vmatprep.subr.mxu0 0.0
        %2113 = vmatpush1.msra.mxu0 0.0
        %2114 = vmatprep.subr.mxu0 0.0
        %2115 = vmatpush1.msra.mxu0 0.0
        %2116 = vmatprep.subr.mxu0 0.0
        %2117 = vmatpush1.msra.mxu0 0.0
        %2118 = vmatprep.subr.mxu0 0.0
        %2119 = vmatpush1.msra.mxu0 0.0
        %2120 = vmatprep.subr.mxu0 0.0
        %2121 = vmatpush1.msra.mxu0 0.0
        %2122 = vmatprep.mubr.f32.mxu0 0.0
        %2123 = vmatmul.mubr.f32.gmra.mrb[0].mxu0 %v1986
        %v2124 = vpop.f32.mrb[0].mxu0
        %v2125 = vadd.f32 0.0, %v2124
        %v2126 = vpop.f32.mrb[0].mxu0
        %2127 = vdwg.mxu0
        %2128 = vmatprep.subr.mxu0 0.0
        %2129 = vmatpush1.msra.mxu0 %v1977
        %2130 = vmatprep.subr.mxu0 0.0
        %2131 = vmatpush1.msra.mxu0 %v1978
        %2132 = vmatprep.subr.mxu0 0.0
        %2133 = vmatpush1.msra.mxu0 %v1979
        %2134 = vmatprep.subr.mxu0 0.0
        %2135 = vmatpush1.msra.mxu0 %v1980
        %2136 = vmatprep.subr.mxu0 0.0
        %2137 = vmatpush1.msra.mxu0 0.0
        %2138 = vmatprep.subr.mxu0 0.0
        %2139 = vmatpush1.msra.mxu0 0.0
        %2140 = vmatprep.subr.mxu0 0.0
        %2141 = vmatpush1.msra.mxu0 0.0
        %2142 = vmatprep.subr.mxu0 0.0
        %2143 = vmatpush1.msra.mxu0 0.0
        %2144 = vmatprep.subr.mxu0 0.0
        %2145 = vmatpush1.msra.mxu0 0.0
        %2146 = vmatprep.subr.mxu0 0.0
        %2147 = vmatpush1.msra.mxu0 0.0
        %2148 = vmatprep.subr.mxu0 0.0
        %2149 = vmatpush1.msra.mxu0 0.0
        %2150 = vmatprep.subr.mxu0 0.0
        %2151 = vmatpush1.msra.mxu0 0.0
        %2152 = vmatprep.subr.mxu0 0.0
        %2153 = vmatpush1.msra.mxu0 0.0
        %2154 = vmatprep.subr.mxu0 0.0
        %2155 = vmatpush1.msra.mxu0 0.0
        %2156 = vmatprep.subr.mxu0 0.0
        %2157 = vmatpush1.msra.mxu0 0.0
        %2158 = vmatprep.subr.mxu0 0.0
        %2159 = vmatpush1.msra.mxu0 0.0
        %2160 = vmatprep.subr.mxu0 0.0
        %2161 = vmatpush1.msra.mxu0 0.0
        %2162 = vmatprep.subr.mxu0 0.0
        %2163 = vmatpush1.msra.mxu0 0.0
        %2164 = vmatprep.subr.mxu0 0.0
        %2165 = vmatpush1.msra.mxu0 0.0
        %2166 = vmatprep.subr.mxu0 0.0
        %2167 = vmatpush1.msra.mxu0 0.0
        %2168 = vmatprep.subr.mxu0 0.0
        %2169 = vmatpush1.msra.mxu0 0.0
        %2170 = vmatprep.subr.mxu0 0.0
        %2171 = vmatpush1.msra.mxu0 0.0
        %2172 = vmatprep.subr.mxu0 0.0
        %2173 = vmatpush1.msra.mxu0 0.0
        %2174 = vmatprep.subr.mxu0 0.0
        %2175 = vmatpush1.msra.mxu0 0.0
        %2176 = vmatprep.subr.mxu0 0.0
        %2177 = vmatpush1.msra.mxu0 0.0
        %2178 = vmatprep.subr.mxu0 0.0
        %2179 = vmatpush1.msra.mxu0 0.0
        %2180 = vmatprep.subr.mxu0 0.0
        %2181 = vmatpush1.msra.mxu0 0.0
        %2182 = vmatprep.subr.mxu0 0.0
        %2183 = vmatpush1.msra.mxu0 0.0
        %2184 = vmatprep.subr.mxu0 0.0
        %2185 = vmatpush1.msra.mxu0 0.0
        %2186 = vmatprep.subr.mxu0 0.0
        %2187 = vmatpush1.msra.mxu0 0.0
        %2188 = vmatprep.subr.mxu0 0.0
        %2189 = vmatpush1.msra.mxu0 0.0
        %2190 = vmatprep.subr.mxu0 0.0
        %2191 = vmatpush1.msra.mxu0 0.0
        %2192 = vmatprep.mubr.f32.mxu0 0.0
        %2193 = vmatmul.mubr.f32.gmra.mrb[0].mxu0 %v1986
        %v2194 = vpop.f32.mrb[0].mxu0
        %v2195 = vadd.f32 0.0, %v2194
        %v2196 = vpop.f32.mrb[0].mxu0
        %2197 = vdwg.mxu0
        %2198 = vmatprep.subr.mxu0 0.0
        %2199 = vmatpush1.msra.mxu0 %v1981
        %2200 = vmatprep.subr.mxu0 0.0
        %2201 = vmatpush1.msra.mxu0 %v1982
        %2202 = vmatprep.subr.mxu0 0.0
        %2203 = vmatpush1.msra.mxu0 %v1983
        %2204 = vmatprep.subr.mxu0 0.0
        %2205 = vmatpush1.msra.mxu0 %v1984
        %2206 = vmatprep.subr.mxu0 0.0
        %2207 = vmatpush1.msra.mxu0 0.0
        %2208 = vmatprep.subr.mxu0 0.0
        %2209 = vmatpush1.msra.mxu0 0.0
        %2210 = vmatprep.subr.mxu0 0.0
        %2211 = vmatpush1.msra.mxu0 0.0
        %2212 = vmatprep.subr.mxu0 0.0
        %2213 = vmatpush1.msra.mxu0 0.0
        %2214 = vmatprep.subr.mxu0 0.0
        %2215 = vmatpush1.msra.mxu0 0.0
        %2216 = vmatprep.subr.mxu0 0.0
        %2217 = vmatpush1.msra.mxu0 0.0
        %2218 = vmatprep.subr.mxu0 0.0
        %2219 = vmatpush1.msra.mxu0 0.0
        %2220 = vmatprep.subr.mxu0 0.0
        %2221 = vmatpush1.msra.mxu0 0.0
        %2222 = vmatprep.subr.mxu0 0.0
        %2223 = vmatpush1.msra.mxu0 0.0
        %2224 = vmatprep.subr.mxu0 0.0
        %2225 = vmatpush1.msra.mxu0 0.0
        %2226 = vmatprep.subr.mxu0 0.0
        %2227 = vmatpush1.msra.mxu0 0.0
        %2228 = vmatprep.subr.mxu0 0.0
        %2229 = vmatpush1.msra.mxu0 0.0
        %2230 = vmatprep.subr.mxu0 0.0
        %2231 = vmatpush1.msra.mxu0 0.0
        %2232 = vmatprep.subr.mxu0 0.0
        %2233 = vmatpush1.msra.mxu0 0.0
        %2234 = vmatprep.subr.mxu0 0.0
        %2235 = vmatpush1.msra.mxu0 0.0
        %2236 = vmatprep.subr.mxu0 0.0
        %2237 = vmatpush1.msra.mxu0 0.0
        %2238 = vmatprep.subr.mxu0 0.0
        %2239 = vmatpush1.msra.mxu0 0.0
        %2240 = vmatprep.subr.mxu0 0.0
        %2241 = vmatpush1.msra.mxu0 0.0
        %2242 = vmatprep.subr.mxu0 0.0
        %2243 = vmatpush1.msra.mxu0 0.0
        %2244 = vmatprep.subr.mxu0 0.0
        %2245 = vmatpush1.msra.mxu0 0.0
        %2246 = vmatprep.subr.mxu0 0.0
        %2247 = vmatpush1.msra.mxu0 0.0
        %2248 = vmatprep.subr.mxu0 0.0
        %2249 = vmatpush1.msra.mxu0 0.0
        %2250 = vmatprep.subr.mxu0 0.0
        %2251 = vmatpush1.msra.mxu0 0.0
        %2252 = vmatprep.subr.mxu0 0.0
        %2253 = vmatpush1.msra.mxu0 0.0
        %2254 = vmatprep.subr.mxu0 0.0
        %2255 = vmatpush1.msra.mxu0 0.0
        %2256 = vmatprep.subr.mxu0 0.0
        %2257 = vmatpush1.msra.mxu0 0.0
        %2258 = vmatprep.subr.mxu0 0.0
        %2259 = vmatpush1.msra.mxu0 0.0
        %2260 = vmatprep.subr.mxu0 0.0
        %2261 = vmatpush1.msra.mxu0 0.0
        %2262 = vmatprep.mubr.f32.mxu0 0.0
        %2263 = vmatmul.mubr.f32.gmra.mrb[0].mxu0 %v1986
        %v2264 = vpop.f32.mrb[0].mxu0
        %v2265 = vadd.f32 0.0, %v2264
        %v2266 = vpop.f32.mrb[0].mxu0
        %2267 = vdwg.mxu0
        %2269 = vrot.lane.b32.xlu0 %v2055, 120
        %v2270 = vpop.permute.xlu0 %2269
        %v2271 = vsel %vm789, %v2055, 0
        %v2273 = vsel %vm789, %v2270, 0
        %2275 = vmatprep.subr.mxu0 0.0
        %2276 = vmatpush1.xpose.msra.mxu0 %v2273
        %2277 = vmatprep.subr.mxu0 0.0
        %2278 = vmatpush1.xpose.msra.mxu0 0.0
        %2279 = vmatprep.subr.mxu0 0.0
        %2280 = vmatpush1.xpose.msra.mxu0 0.0
        %2281 = vmatprep.subr.mxu0 0.0
        %2282 = vmatpush1.xpose.msra.mxu0 0.0
        %2283 = vmatprep.subr.mxu0 0.0
        %2284 = vmatpush1.xpose.msra.mxu0 0.0
        %2285 = vmatprep.subr.mxu0 0.0
        %2286 = vmatpush1.xpose.msra.mxu0 0.0
        %2287 = vmatprep.subr.mxu0 0.0
        %2288 = vmatpush1.xpose.msra.mxu0 0.0
        %2289 = vmatprep.subr.mxu0 0.0
        %2290 = vmatpush1.xpose.msra.mxu0 0.0
        %2291 = vmatprep.subr.mxu0 0.0
        %2292 = vmatpush1.xpose.msra.mxu0 0.0
        %2293 = vmatprep.subr.mxu0 0.0
        %2294 = vmatpush1.xpose.msra.mxu0 0.0
        %2295 = vmatprep.subr.mxu0 0.0
        %2296 = vmatpush1.xpose.msra.mxu0 0.0
        %2297 = vmatprep.subr.mxu0 0.0
        %2298 = vmatpush1.xpose.msra.mxu0 0.0
        %2299 = vmatprep.subr.mxu0 0.0
        %2300 = vmatpush1.xpose.msra.mxu0 0.0
        %2301 = vmatprep.subr.mxu0 0.0
        %2302 = vmatpush1.xpose.msra.mxu0 0.0
        %2303 = vmatprep.subr.mxu0 0.0
        %2304 = vmatpush1.xpose.msra.mxu0 0.0
        %2305 = vmatprep.subr.mxu0 0.0
        %2306 = vmatpush1.xpose.msra.mxu0 0.0
        %2307 = vmatprep.subr.mxu0 0.0
        %2308 = vmatpush1.xpose.msra.mxu0 0.0
        %2309 = vmatprep.subr.mxu0 0.0
        %2310 = vmatpush1.xpose.msra.mxu0 0.0
        %2311 = vmatprep.subr.mxu0 0.0
        %2312 = vmatpush1.xpose.msra.mxu0 0.0
        %2313 = vmatprep.subr.mxu0 0.0
        %2314 = vmatpush1.xpose.msra.mxu0 0.0
        %2315 = vmatprep.subr.mxu0 0.0
        %2316 = vmatpush1.xpose.msra.mxu0 0.0
        %2317 = vmatprep.subr.mxu0 0.0
        %2318 = vmatpush1.xpose.msra.mxu0 0.0
        %2319 = vmatprep.subr.mxu0 0.0
        %2320 = vmatpush1.xpose.msra.mxu0 0.0
        %2321 = vmatprep.subr.mxu0 0.0
        %2322 = vmatpush1.xpose.msra.mxu0 0.0
        %2323 = vmatprep.subr.mxu0 0.0
        %2324 = vmatpush1.xpose.msra.mxu0 0.0
        %2325 = vmatprep.subr.mxu0 0.0
        %2326 = vmatpush1.xpose.msra.mxu0 0.0
        %2327 = vmatprep.subr.mxu0 0.0
        %2328 = vmatpush1.xpose.msra.mxu0 0.0
        %2329 = vmatprep.subr.mxu0 0.0
        %2330 = vmatpush1.xpose.msra.mxu0 0.0
        %2331 = vmatprep.subr.mxu0 0.0
        %2332 = vmatpush1.xpose.msra.mxu0 0.0
        %2333 = vmatprep.subr.mxu0 0.0
        %2334 = vmatpush1.xpose.msra.mxu0 0.0
        %2335 = vmatprep.subr.mxu0 0.0
        %2336 = vmatpush1.xpose.msra.mxu0 0.0
        %2337 = vmatprep.subr.mxu0 0.0
        %2338 = vmatpush1.xpose.msra.mxu0 0.0
        %2339 = vmatprep.mubr.f32.mxu0 0.0
        %2340 = vmatmul.mubr.f32.gmra.mrb[0].mxu0 %v2271
        %v2341 = vpop.f32.mrb[0].mxu0
        %v2342 = vadd.f32 %v461, %v2341
        %v2343 = vpop.f32.mrb[0].mxu0
        %2344 = vdwg.mxu0
        %2346 = vrot.lane.b32.xlu0 %v2125, 120
        %v2347 = vpop.permute.xlu0 %2346
        %v2348 = vsel %vm789, %v2125, 0
        %v2350 = vsel %vm789, %v2347, 0
        %2352 = vmatprep.subr.mxu0 0.0
        %2353 = vmatpush1.xpose.msra.mxu0 %v2350
        %2354 = vmatprep.subr.mxu0 0.0
        %2355 = vmatpush1.xpose.msra.mxu0 0.0
        %2356 = vmatprep.subr.mxu0 0.0
        %2357 = vmatpush1.xpose.msra.mxu0 0.0
        %2358 = vmatprep.subr.mxu0 0.0
        %2359 = vmatpush1.xpose.msra.mxu0 0.0
        %2360 = vmatprep.subr.mxu0 0.0
        %2361 = vmatpush1.xpose.msra.mxu0 0.0
        %2362 = vmatprep.subr.mxu0 0.0
        %2363 = vmatpush1.xpose.msra.mxu0 0.0
        %2364 = vmatprep.subr.mxu0 0.0
        %2365 = vmatpush1.xpose.msra.mxu0 0.0
        %2366 = vmatprep.subr.mxu0 0.0
        %2367 = vmatpush1.xpose.msra.mxu0 0.0
        %2368 = vmatprep.subr.mxu0 0.0
        %2369 = vmatpush1.xpose.msra.mxu0 0.0
        %2370 = vmatprep.subr.mxu0 0.0
        %2371 = vmatpush1.xpose.msra.mxu0 0.0
        %2372 = vmatprep.subr.mxu0 0.0
        %2373 = vmatpush1.xpose.msra.mxu0 0.0
        %2374 = vmatprep.subr.mxu0 0.0
        %2375 = vmatpush1.xpose.msra.mxu0 0.0
        %2376 = vmatprep.subr.mxu0 0.0
        %2377 = vmatpush1.xpose.msra.mxu0 0.0
        %2378 = vmatprep.subr.mxu0 0.0
        %2379 = vmatpush1.xpose.msra.mxu0 0.0
        %2380 = vmatprep.subr.mxu0 0.0
        %2381 = vmatpush1.xpose.msra.mxu0 0.0
        %2382 = vmatprep.subr.mxu0 0.0
        %2383 = vmatpush1.xpose.msra.mxu0 0.0
        %2384 = vmatprep.subr.mxu0 0.0
        %2385 = vmatpush1.xpose.msra.mxu0 0.0
        %2386 = vmatprep.subr.mxu0 0.0
        %2387 = vmatpush1.xpose.msra.mxu0 0.0
        %2388 = vmatprep.subr.mxu0 0.0
        %2389 = vmatpush1.xpose.msra.mxu0 0.0
        %2390 = vmatprep.subr.mxu0 0.0
        %2391 = vmatpush1.xpose.msra.mxu0 0.0
        %2392 = vmatprep.subr.mxu0 0.0
        %2393 = vmatpush1.xpose.msra.mxu0 0.0
        %2394 = vmatprep.subr.mxu0 0.0
        %2395 = vmatpush1.xpose.msra.mxu0 0.0
        %2396 = vmatprep.subr.mxu0 0.0
        %2397 = vmatpush1.xpose.msra.mxu0 0.0
        %2398 = vmatprep.subr.mxu0 0.0
        %2399 = vmatpush1.xpose.msra.mxu0 0.0
        %2400 = vmatprep.subr.mxu0 0.0
        %2401 = vmatpush1.xpose.msra.mxu0 0.0
        %2402 = vmatprep.subr.mxu0 0.0
        %2403 = vmatpush1.xpose.msra.mxu0 0.0
        %2404 = vmatprep.subr.mxu0 0.0
        %2405 = vmatpush1.xpose.msra.mxu0 0.0
        %2406 = vmatprep.subr.mxu0 0.0
        %2407 = vmatpush1.xpose.msra.mxu0 0.0
        %2408 = vmatprep.subr.mxu0 0.0
        %2409 = vmatpush1.xpose.msra.mxu0 0.0
        %2410 = vmatprep.subr.mxu0 0.0
        %2411 = vmatpush1.xpose.msra.mxu0 0.0
        %2412 = vmatprep.subr.mxu0 0.0
        %2413 = vmatpush1.xpose.msra.mxu0 0.0
        %2414 = vmatprep.subr.mxu0 0.0
        %2415 = vmatpush1.xpose.msra.mxu0 0.0
        %2416 = vmatprep.mubr.f32.mxu0 0.0
        %2417 = vmatmul.mubr.f32.gmra.mrb[0].mxu0 %v2348
        %v2418 = vpop.f32.mrb[0].mxu0
        %v2419 = vadd.f32 %v461, %v2418
        %v2420 = vpop.f32.mrb[0].mxu0
        %2421 = vdwg.mxu0
        %2423 = vrot.lane.b32.xlu0 %v2195, 120
        %v2424 = vpop.permute.xlu0 %2423
        %v2425 = vsel %vm789, %v2195, 0
        %v2427 = vsel %vm789, %v2424, 0
        %2429 = vmatprep.subr.mxu0 0.0
        %2430 = vmatpush1.xpose.msra.mxu0 %v2427
        %2431 = vmatprep.subr.mxu0 0.0
        %2432 = vmatpush1.xpose.msra.mxu0 0.0
        %2433 = vmatprep.subr.mxu0 0.0
        %2434 = vmatpush1.xpose.msra.mxu0 0.0
        %2435 = vmatprep.subr.mxu0 0.0
        %2436 = vmatpush1.xpose.msra.mxu0 0.0
        %2437 = vmatprep.subr.mxu0 0.0
        %2438 = vmatpush1.xpose.msra.mxu0 0.0
        %2439 = vmatprep.subr.mxu0 0.0
        %2440 = vmatpush1.xpose.msra.mxu0 0.0
        %2441 = vmatprep.subr.mxu0 0.0
        %2442 = vmatpush1.xpose.msra.mxu0 0.0
        %2443 = vmatprep.subr.mxu0 0.0
        %2444 = vmatpush1.xpose.msra.mxu0 0.0
        %2445 = vmatprep.subr.mxu0 0.0
        %2446 = vmatpush1.xpose.msra.mxu0 0.0
        %2447 = vmatprep.subr.mxu0 0.0
        %2448 = vmatpush1.xpose.msra.mxu0 0.0
        %2449 = vmatprep.subr.mxu0 0.0
        %2450 = vmatpush1.xpose.msra.mxu0 0.0
        %2451 = vmatprep.subr.mxu0 0.0
        %2452 = vmatpush1.xpose.msra.mxu0 0.0
        %2453 = vmatprep.subr.mxu0 0.0
        %2454 = vmatpush1.xpose.msra.mxu0 0.0
        %2455 = vmatprep.subr.mxu0 0.0
        %2456 = vmatpush1.xpose.msra.mxu0 0.0
        %2457 = vmatprep.subr.mxu0 0.0
        %2458 = vmatpush1.xpose.msra.mxu0 0.0
        %2459 = vmatprep.subr.mxu0 0.0
        %2460 = vmatpush1.xpose.msra.mxu0 0.0
        %2461 = vmatprep.subr.mxu0 0.0
        %2462 = vmatpush1.xpose.msra.mxu0 0.0
        %2463 = vmatprep.subr.mxu0 0.0
        %2464 = vmatpush1.xpose.msra.mxu0 0.0
        %2465 = vmatprep.subr.mxu0 0.0
        %2466 = vmatpush1.xpose.msra.mxu0 0.0
        %2467 = vmatprep.subr.mxu0 0.0
        %2468 = vmatpush1.xpose.msra.mxu0 0.0
        %2469 = vmatprep.subr.mxu0 0.0
        %2470 = vmatpush1.xpose.msra.mxu0 0.0
        %2471 = vmatprep.subr.mxu0 0.0
        %2472 = vmatpush1.xpose.msra.mxu0 0.0
        %2473 = vmatprep.subr.mxu0 0.0
        %2474 = vmatpush1.xpose.msra.mxu0 0.0
        %2475 = vmatprep.subr.mxu0 0.0
        %2476 = vmatpush1.xpose.msra.mxu0 0.0
        %2477 = vmatprep.subr.mxu0 0.0
        %2478 = vmatpush1.xpose.msra.mxu0 0.0
        %2479 = vmatprep.subr.mxu0 0.0
        %2480 = vmatpush1.xpose.msra.mxu0 0.0
        %2481 = vmatprep.subr.mxu0 0.0
        %2482 = vmatpush1.xpose.msra.mxu0 0.0
        %2483 = vmatprep.subr.mxu0 0.0
        %2484 = vmatpush1.xpose.msra.mxu0 0.0
        %2485 = vmatprep.subr.mxu0 0.0
        %2486 = vmatpush1.xpose.msra.mxu0 0.0
        %2487 = vmatprep.subr.mxu0 0.0
        %2488 = vmatpush1.xpose.msra.mxu0 0.0
        %2489 = vmatprep.subr.mxu0 0.0
        %2490 = vmatpush1.xpose.msra.mxu0 0.0
        %2491 = vmatprep.subr.mxu0 0.0
        %2492 = vmatpush1.xpose.msra.mxu0 0.0
        %2493 = vmatprep.mubr.f32.mxu0 0.0
        %2494 = vmatmul.mubr.f32.gmra.mrb[0].mxu0 %v2425
        %v2495 = vpop.f32.mrb[0].mxu0
        %v2496 = vadd.f32 %v461, %v2495
        %v2497 = vpop.f32.mrb[0].mxu0
        %2498 = vdwg.mxu0
        %2500 = vrot.lane.b32.xlu0 %v2265, 120
        %v2501 = vpop.permute.xlu0 %2500
        %v2502 = vsel %vm789, %v2265, 0
        %v2504 = vsel %vm789, %v2501, 0
        %2506 = vmatprep.subr.mxu0 0.0
        %2507 = vmatpush1.xpose.msra.mxu0 %v2504
        %2508 = vmatprep.subr.mxu0 0.0
        %2509 = vmatpush1.xpose.msra.mxu0 0.0
        %2510 = vmatprep.subr.mxu0 0.0
        %2511 = vmatpush1.xpose.msra.mxu0 0.0
        %2512 = vmatprep.subr.mxu0 0.0
        %2513 = vmatpush1.xpose.msra.mxu0 0.0
        %2514 = vmatprep.subr.mxu0 0.0
        %2515 = vmatpush1.xpose.msra.mxu0 0.0
        %2516 = vmatprep.subr.mxu0 0.0
        %2517 = vmatpush1.xpose.msra.mxu0 0.0
        %2518 = vmatprep.subr.mxu0 0.0
        %2519 = vmatpush1.xpose.msra.mxu0 0.0
        %2520 = vmatprep.subr.mxu0 0.0
        %2521 = vmatpush1.xpose.msra.mxu0 0.0
        %2522 = vmatprep.subr.mxu0 0.0
        %2523 = vmatpush1.xpose.msra.mxu0 0.0
        %2524 = vmatprep.subr.mxu0 0.0
        %2525 = vmatpush1.xpose.msra.mxu0 0.0
        %2526 = vmatprep.subr.mxu0 0.0
        %2527 = vmatpush1.xpose.msra.mxu0 0.0
        %2528 = vmatprep.subr.mxu0 0.0
        %2529 = vmatpush1.xpose.msra.mxu0 0.0
        %2530 = vmatprep.subr.mxu0 0.0
        %2531 = vmatpush1.xpose.msra.mxu0 0.0
        %2532 = vmatprep.subr.mxu0 0.0
        %2533 = vmatpush1.xpose.msra.mxu0 0.0
        %2534 = vmatprep.subr.mxu0 0.0
        %2535 = vmatpush1.xpose.msra.mxu0 0.0
        %2536 = vmatprep.subr.mxu0 0.0
        %2537 = vmatpush1.xpose.msra.mxu0 0.0
        %2538 = vmatprep.subr.mxu0 0.0
        %2539 = vmatpush1.xpose.msra.mxu0 0.0
        %2540 = vmatprep.subr.mxu0 0.0
        %2541 = vmatpush1.xpose.msra.mxu0 0.0
        %2542 = vmatprep.subr.mxu0 0.0
        %2543 = vmatpush1.xpose.msra.mxu0 0.0
        %2544 = vmatprep.subr.mxu0 0.0
        %2545 = vmatpush1.xpose.msra.mxu0 0.0
        %2546 = vmatprep.subr.mxu0 0.0
        %2547 = vmatpush1.xpose.msra.mxu0 0.0
        %2548 = vmatprep.subr.mxu0 0.0
        %2549 = vmatpush1.xpose.msra.mxu0 0.0
        %2550 = vmatprep.subr.mxu0 0.0
        %2551 = vmatpush1.xpose.msra.mxu0 0.0
        %2552 = vmatprep.subr.mxu0 0.0
        %2553 = vmatpush1.xpose.msra.mxu0 0.0
        %2554 = vmatprep.subr.mxu0 0.0
        %2555 = vmatpush1.xpose.msra.mxu0 0.0
        %2556 = vmatprep.subr.mxu0 0.0
        %2557 = vmatpush1.xpose.msra.mxu0 0.0
        %2558 = vmatprep.subr.mxu0 0.0
        %2559 = vmatpush1.xpose.msra.mxu0 0.0
        %2560 = vmatprep.subr.mxu0 0.0
        %2561 = vmatpush1.xpose.msra.mxu0 0.0
        %2562 = vmatprep.subr.mxu0 0.0
        %2563 = vmatpush1.xpose.msra.mxu0 0.0
        %2564 = vmatprep.subr.mxu0 0.0
        %2565 = vmatpush1.xpose.msra.mxu0 0.0
        %2566 = vmatprep.subr.mxu0 0.0
        %2567 = vmatpush1.xpose.msra.mxu0 0.0
        %2568 = vmatprep.subr.mxu0 0.0
        %2569 = vmatpush1.xpose.msra.mxu0 0.0
        %2570 = vmatprep.mubr.f32.mxu0 0.0
        %2571 = vmatmul.mubr.f32.gmra.mrb[0].mxu0 %v2502
        %v2572 = vpop.f32.mrb[0].mxu0
        %v2573 = vadd.f32 %v461, %v2572
        %v2574 = vpop.f32.mrb[0].mxu0
        %2575 = vdwg.mxu0
        %v2576 = vsel %vm789, %v2342, -inf
        %2577 = vmax.xlane.f32.xlu0 %v2576
        %v2578 = vpop.xlane.xlu0 %2577
        %v2579 = vsel %vm789, %v2419, -inf
        %2580 = vmax.xlane.f32.xlu0 %v2579
        %v2581 = vpop.xlane.xlu0 %2580
        %v2582 = vsel %vm789, %v2496, -inf
        %2583 = vmax.xlane.f32.xlu0 %v2582
        %v2584 = vpop.xlane.xlu0 %2583
        %v2585 = vsel %vm789, %v2573, -inf
        %2586 = vmax.xlane.f32.xlu0 %v2585
        %v2587 = vpop.xlane.xlu0 %2586
        %v2588 = vsub.f32 %v2342, %v2578
        %v2589 = vsub.f32 %v2419, %v2581
        %v2590 = vsub.f32 %v2496, %v2584
        %v2591 = vsub.f32 %v2573, %v2587
        %v2592 = vmul.f32 %v2588, 1.442695
        %v2593 = vpow.pop %v2592
        %v2594 = vmul.f32 %v2589, 1.442695
        %v2595 = vpow.pop %v2594
        %v2596 = vmul.f32 %v2590, 1.442695
        %v2597 = vpow.pop %v2596
        %v2598 = vmul.f32 %v2591, 1.442695
        %v2599 = vpow.pop %v2598
        %v2600 = vsel %vm789, %v2593, 0.0
        %2601 = vadd.xlane.f32.xlu0 %v2600
        %v2602 = vpop.xlane.xlu0 %2601
        %v2603 = vsel %vm789, %v2595, 0.0
        %2604 = vadd.xlane.f32.xlu0 %v2603
        %v2605 = vpop.xlane.xlu0 %2604
        %v2606 = vsel %vm789, %v2597, 0.0
        %2607 = vadd.xlane.f32.xlu0 %v2606
        %v2608 = vpop.xlane.xlu0 %2607
        %v2609 = vsel %vm789, %v2599, 0.0
        %2610 = vadd.xlane.f32.xlu0 %v2609
        %v2611 = vpop.xlane.xlu0 %2610
        %v2612 = vrcp.pop %v2602
        %v2613 = vmul.f32 %v2593, %v2612
        %v2614 = vrcp.pop %v2605
        %v2615 = vmul.f32 %v2595, %v2614
        %v2616 = vrcp.pop %v2608
        %v2617 = vmul.f32 %v2597, %v2616
        %v2618 = vrcp.pop %v2611
        %v2619 = vmul.f32 %v2599, %v2618
        %2620 = vrot.lane.b32.xlu0 %v2055, 112
        %v2621 = vpop.permute.xlu0 %2620
        %v2624 = vsel %vm789, %v2613, 0
        %2626 = vmatprep.subr.mxu0 0.0
        %2627 = vmatpush1.msra.mxu0 %v2621
        %2628 = vmatprep.subr.mxu0 0.0
        %2629 = vmatpush1.msra.mxu0 0.0
        %2630 = vmatprep.subr.mxu0 0.0
        %2631 = vmatpush1.msra.mxu0 0.0
        %2632 = vmatprep.subr.mxu0 0.0
        %2633 = vmatpush1.msra.mxu0 0.0
        %2634 = vmatprep.subr.mxu0 0.0
        %2635 = vmatpush1.msra.mxu0 0.0
        %2636 = vmatprep.subr.mxu0 0.0
        %2637 = vmatpush1.msra.mxu0 0.0
        %2638 = vmatprep.subr.mxu0 0.0
        %2639 = vmatpush1.msra.mxu0 0.0
        %2640 = vmatprep.subr.mxu0 0.0
        %2641 = vmatpush1.msra.mxu0 0.0
        %2642 = vmatprep.subr.mxu0 0.0
        %2643 = vmatpush1.msra.mxu0 0.0
        %2644 = vmatprep.subr.mxu0 0.0
        %2645 = vmatpush1.msra.mxu0 0.0
        %2646 = vmatprep.subr.mxu0 0.0
        %2647 = vmatpush1.msra.mxu0 0.0
        %2648 = vmatprep.subr.mxu0 0.0
        %2649 = vmatpush1.msra.mxu0 0.0
        %2650 = vmatprep.subr.mxu0 0.0
        %2651 = vmatpush1.msra.mxu0 0.0
        %2652 = vmatprep.subr.mxu0 0.0
        %2653 = vmatpush1.msra.mxu0 0.0
        %2654 = vmatprep.subr.mxu0 0.0
        %2655 = vmatpush1.msra.mxu0 0.0
        %2656 = vmatprep.subr.mxu0 0.0
        %2657 = vmatpush1.msra.mxu0 0.0
        %2658 = vmatprep.subr.mxu0 0.0
        %2659 = vmatpush1.msra.mxu0 0.0
        %2660 = vmatprep.subr.mxu0 0.0
        %2661 = vmatpush1.msra.mxu0 0.0
        %2662 = vmatprep.subr.mxu0 0.0
        %2663 = vmatpush1.msra.mxu0 0.0
        %2664 = vmatprep.subr.mxu0 0.0
        %2665 = vmatpush1.msra.mxu0 0.0
        %2666 = vmatprep.subr.mxu0 0.0
        %2667 = vmatpush1.msra.mxu0 0.0
        %2668 = vmatprep.subr.mxu0 0.0
        %2669 = vmatpush1.msra.mxu0 0.0
        %2670 = vmatprep.subr.mxu0 0.0
        %2671 = vmatpush1.msra.mxu0 0.0
        %2672 = vmatprep.subr.mxu0 0.0
        %2673 = vmatpush1.msra.mxu0 0.0
        %2674 = vmatprep.subr.mxu0 0.0
        %2675 = vmatpush1.msra.mxu0 0.0
        %2676 = vmatprep.subr.mxu0 0.0
        %2677 = vmatpush1.msra.mxu0 0.0
        %2678 = vmatprep.subr.mxu0 0.0
        %2679 = vmatpush1.msra.mxu0 0.0
        %2680 = vmatprep.subr.mxu0 0.0
        %2681 = vmatpush1.msra.mxu0 0.0
        %2682 = vmatprep.subr.mxu0 0.0
        %2683 = vmatpush1.msra.mxu0 0.0
        %2684 = vmatprep.subr.mxu0 0.0
        %2685 = vmatpush1.msra.mxu0 0.0
        %2686 = vmatprep.subr.mxu0 0.0
        %2687 = vmatpush1.msra.mxu0 0.0
        %2688 = vmatprep.subr.mxu0 0.0
        %2689 = vmatpush1.msra.mxu0 0.0
        %2690 = vmatprep.mubr.f32.mxu0 0.0
        %2691 = vmatmul.mubr.f32.gmra.mrb[0].mxu0 %v2624
        %v2692 = vpop.f32.mrb[0].mxu0
        %v2693 = vadd.f32 0.0, %v2692
        %v2694 = vpop.f32.mrb[0].mxu0
        %2695 = vdwg.mxu0
        %2696 = vrot.lane.b32.xlu0 %v2125, 112
        %v2697 = vpop.permute.xlu0 %2696
        %v2700 = vsel %vm789, %v2615, 0
        %2702 = vmatprep.subr.mxu0 0.0
        %2703 = vmatpush1.msra.mxu0 %v2697
        %2704 = vmatprep.subr.mxu0 0.0
        %2705 = vmatpush1.msra.mxu0 0.0
        %2706 = vmatprep.subr.mxu0 0.0
        %2707 = vmatpush1.msra.mxu0 0.0
        %2708 = vmatprep.subr.mxu0 0.0
        %2709 = vmatpush1.msra.mxu0 0.0
        %2710 = vmatprep.subr.mxu0 0.0
        %2711 = vmatpush1.msra.mxu0 0.0
        %2712 = vmatprep.subr.mxu0 0.0
        %2713 = vmatpush1.msra.mxu0 0.0
        %2714 = vmatprep.subr.mxu0 0.0
        %2715 = vmatpush1.msra.mxu0 0.0
        %2716 = vmatprep.subr.mxu0 0.0
        %2717 = vmatpush1.msra.mxu0 0.0
        %2718 = vmatprep.subr.mxu0 0.0
        %2719 = vmatpush1.msra.mxu0 0.0
        %2720 = vmatprep.subr.mxu0 0.0
        %2721 = vmatpush1.msra.mxu0 0.0
        %2722 = vmatprep.subr.mxu0 0.0
        %2723 = vmatpush1.msra.mxu0 0.0
        %2724 = vmatprep.subr.mxu0 0.0
        %2725 = vmatpush1.msra.mxu0 0.0
        %2726 = vmatprep.subr.mxu0 0.0
        %2727 = vmatpush1.msra.mxu0 0.0
        %2728 = vmatprep.subr.mxu0 0.0
        %2729 = vmatpush1.msra.mxu0 0.0
        %2730 = vmatprep.subr.mxu0 0.0
        %2731 = vmatpush1.msra.mxu0 0.0
        %2732 = vmatprep.subr.mxu0 0.0
        %2733 = vmatpush1.msra.mxu0 0.0
        %2734 = vmatprep.subr.mxu0 0.0
        %2735 = vmatpush1.msra.mxu0 0.0
        %2736 = vmatprep.subr.mxu0 0.0
        %2737 = vmatpush1.msra.mxu0 0.0
        %2738 = vmatprep.subr.mxu0 0.0
        %2739 = vmatpush1.msra.mxu0 0.0
        %2740 = vmatprep.subr.mxu0 0.0
        %2741 = vmatpush1.msra.mxu0 0.0
        %2742 = vmatprep.subr.mxu0 0.0
        %2743 = vmatpush1.msra.mxu0 0.0
        %2744 = vmatprep.subr.mxu0 0.0
        %2745 = vmatpush1.msra.mxu0 0.0
        %2746 = vmatprep.subr.mxu0 0.0
        %2747 = vmatpush1.msra.mxu0 0.0
        %2748 = vmatprep.subr.mxu0 0.0
        %2749 = vmatpush1.msra.mxu0 0.0
        %2750 = vmatprep.subr.mxu0 0.0
        %2751 = vmatpush1.msra.mxu0 0.0
        %2752 = vmatprep.subr.mxu0 0.0
        %2753 = vmatpush1.msra.mxu0 0.0
        %2754 = vmatprep.subr.mxu0 0.0
        %2755 = vmatpush1.msra.mxu0 0.0
        %2756 = vmatprep.subr.mxu0 0.0
        %2757 = vmatpush1.msra.mxu0 0.0
        %2758 = vmatprep.subr.mxu0 0.0
        %2759 = vmatpush1.msra.mxu0 0.0
        %2760 = vmatprep.subr.mxu0 0.0
        %2761 = vmatpush1.msra.mxu0 0.0
        %2762 = vmatprep.subr.mxu0 0.0
        %2763 = vmatpush1.msra.mxu0 0.0
        %2764 = vmatprep.subr.mxu0 0.0
        %2765 = vmatpush1.msra.mxu0 0.0
        %2766 = vmatprep.mubr.f32.mxu0 0.0
        %2767 = vmatmul.mubr.f32.gmra.mrb[0].mxu0 %v2700
        %v2768 = vpop.f32.mrb[0].mxu0
        %v2769 = vadd.f32 0.0, %v2768
        %v2770 = vpop.f32.mrb[0].mxu0
        %2771 = vdwg.mxu0
        %2772 = vrot.lane.b32.xlu0 %v2195, 112
        %v2773 = vpop.permute.xlu0 %2772
        %v2776 = vsel %vm789, %v2617, 0
        %2778 = vmatprep.subr.mxu0 0.0
        %2779 = vmatpush1.msra.mxu0 %v2773
        %2780 = vmatprep.subr.mxu0 0.0
        %2781 = vmatpush1.msra.mxu0 0.0
        %2782 = vmatprep.subr.mxu0 0.0
        %2783 = vmatpush1.msra.mxu0 0.0
        %2784 = vmatprep.subr.mxu0 0.0
        %2785 = vmatpush1.msra.mxu0 0.0
        %2786 = vmatprep.subr.mxu0 0.0
        %2787 = vmatpush1.msra.mxu0 0.0
        %2788 = vmatprep.subr.mxu0 0.0
        %2789 = vmatpush1.msra.mxu0 0.0
        %2790 = vmatprep.subr.mxu0 0.0
        %2791 = vmatpush1.msra.mxu0 0.0
        %2792 = vmatprep.subr.mxu0 0.0
        %2793 = vmatpush1.msra.mxu0 0.0
        %2794 = vmatprep.subr.mxu0 0.0
        %2795 = vmatpush1.msra.mxu0 0.0
        %2796 = vmatprep.subr.mxu0 0.0
        %2797 = vmatpush1.msra.mxu0 0.0
        %2798 = vmatprep.subr.mxu0 0.0
        %2799 = vmatpush1.msra.mxu0 0.0
        %2800 = vmatprep.subr.mxu0 0.0
        %2801 = vmatpush1.msra.mxu0 0.0
        %2802 = vmatprep.subr.mxu0 0.0
        %2803 = vmatpush1.msra.mxu0 0.0
        %2804 = vmatprep.subr.mxu0 0.0
        %2805 = vmatpush1.msra.mxu0 0.0
        %2806 = vmatprep.subr.mxu0 0.0
        %2807 = vmatpush1.msra.mxu0 0.0
        %2808 = vmatprep.subr.mxu0 0.0
        %2809 = vmatpush1.msra.mxu0 0.0
        %2810 = vmatprep.subr.mxu0 0.0
        %2811 = vmatpush1.msra.mxu0 0.0
        %2812 = vmatprep.subr.mxu0 0.0
        %2813 = vmatpush1.msra.mxu0 0.0
        %2814 = vmatprep.subr.mxu0 0.0
        %2815 = vmatpush1.msra.mxu0 0.0
        %2816 = vmatprep.subr.mxu0 0.0
        %2817 = vmatpush1.msra.mxu0 0.0
        %2818 = vmatprep.subr.mxu0 0.0
        %2819 = vmatpush1.msra.mxu0 0.0
        %2820 = vmatprep.subr.mxu0 0.0
        %2821 = vmatpush1.msra.mxu0 0.0
        %2822 = vmatprep.subr.mxu0 0.0
        %2823 = vmatpush1.msra.mxu0 0.0
        %2824 = vmatprep.subr.mxu0 0.0
        %2825 = vmatpush1.msra.mxu0 0.0
        %2826 = vmatprep.subr.mxu0 0.0
        %2827 = vmatpush1.msra.mxu0 0.0
        %2828 = vmatprep.subr.mxu0 0.0
        %2829 = vmatpush1.msra.mxu0 0.0
        %2830 = vmatprep.subr.mxu0 0.0
        %2831 = vmatpush1.msra.mxu0 0.0
        %2832 = vmatprep.subr.mxu0 0.0
        %2833 = vmatpush1.msra.mxu0 0.0
        %2834 = vmatprep.subr.mxu0 0.0
        %2835 = vmatpush1.msra.mxu0 0.0
        %2836 = vmatprep.subr.mxu0 0.0
        %2837 = vmatpush1.msra.mxu0 0.0
        %2838 = vmatprep.subr.mxu0 0.0
        %2839 = vmatpush1.msra.mxu0 0.0
        %2840 = vmatprep.subr.mxu0 0.0
        %2841 = vmatpush1.msra.mxu0 0.0
        %2842 = vmatprep.mubr.f32.mxu0 0.0
        %2843 = vmatmul.mubr.f32.gmra.mrb[0].mxu0 %v2776
        %v2844 = vpop.f32.mrb[0].mxu0
        %v2845 = vadd.f32 0.0, %v2844
        %v2846 = vpop.f32.mrb[0].mxu0
        %2847 = vdwg.mxu0
        %2848 = vrot.lane.b32.xlu0 %v2265, 112
        %v2849 = vpop.permute.xlu0 %2848
        %v2852 = vsel %vm789, %v2619, 0
        %2854 = vmatprep.subr.mxu0 0.0
        %2855 = vmatpush1.msra.mxu0 %v2849
        %2856 = vmatprep.subr.mxu0 0.0
        %2857 = vmatpush1.msra.mxu0 0.0
        %2858 = vmatprep.subr.mxu0 0.0
        %2859 = vmatpush1.msra.mxu0 0.0
        %2860 = vmatprep.subr.mxu0 0.0
        %2861 = vmatpush1.msra.mxu0 0.0
        %2862 = vmatprep.subr.mxu0 0.0
        %2863 = vmatpush1.msra.mxu0 0.0
        %2864 = vmatprep.subr.mxu0 0.0
        %2865 = vmatpush1.msra.mxu0 0.0
        %2866 = vmatprep.subr.mxu0 0.0
        %2867 = vmatpush1.msra.mxu0 0.0
        %2868 = vmatprep.subr.mxu0 0.0
        %2869 = vmatpush1.msra.mxu0 0.0
        %2870 = vmatprep.subr.mxu0 0.0
        %2871 = vmatpush1.msra.mxu0 0.0
        %2872 = vmatprep.subr.mxu0 0.0
        %2873 = vmatpush1.msra.mxu0 0.0
        %2874 = vmatprep.subr.mxu0 0.0
        %2875 = vmatpush1.msra.mxu0 0.0
        %2876 = vmatprep.subr.mxu0 0.0
        %2877 = vmatpush1.msra.mxu0 0.0
        %2878 = vmatprep.subr.mxu0 0.0
        %2879 = vmatpush1.msra.mxu0 0.0
        %2880 = vmatprep.subr.mxu0 0.0
        %2881 = vmatpush1.msra.mxu0 0.0
        %2882 = vmatprep.subr.mxu0 0.0
        %2883 = vmatpush1.msra.mxu0 0.0
        %2884 = vmatprep.subr.mxu0 0.0
        %2885 = vmatpush1.msra.mxu0 0.0
        %2886 = vmatprep.subr.mxu0 0.0
        %2887 = vmatpush1.msra.mxu0 0.0
        %2888 = vmatprep.subr.mxu0 0.0
        %2889 = vmatpush1.msra.mxu0 0.0
        %2890 = vmatprep.subr.mxu0 0.0
        %2891 = vmatpush1.msra.mxu0 0.0
        %2892 = vmatprep.subr.mxu0 0.0
        %2893 = vmatpush1.msra.mxu0 0.0
        %2894 = vmatprep.subr.mxu0 0.0
        %2895 = vmatpush1.msra.mxu0 0.0
        %2896 = vmatprep.subr.mxu0 0.0
        %2897 = vmatpush1.msra.mxu0 0.0
        %2898 = vmatprep.subr.mxu0 0.0
        %2899 = vmatpush1.msra.mxu0 0.0
        %2900 = vmatprep.subr.mxu0 0.0
        %2901 = vmatpush1.msra.mxu0 0.0
        %2902 = vmatprep.subr.mxu0 0.0
        %2903 = vmatpush1.msra.mxu0 0.0
        %2904 = vmatprep.subr.mxu0 0.0
        %2905 = vmatpush1.msra.mxu0 0.0
        %2906 = vmatprep.subr.mxu0 0.0
        %2907 = vmatpush1.msra.mxu0 0.0
        %2908 = vmatprep.subr.mxu0 0.0
        %2909 = vmatpush1.msra.mxu0 0.0
        %2910 = vmatprep.subr.mxu0 0.0
        %2911 = vmatpush1.msra.mxu0 0.0
        %2912 = vmatprep.subr.mxu0 0.0
        %2913 = vmatpush1.msra.mxu0 0.0
        %2914 = vmatprep.subr.mxu0 0.0
        %2915 = vmatpush1.msra.mxu0 0.0
        %2916 = vmatprep.subr.mxu0 0.0
        %2917 = vmatpush1.msra.mxu0 0.0
        %2918 = vmatprep.mubr.f32.mxu0 0.0
        %2919 = vmatmul.mubr.f32.gmra.mrb[0].mxu0 %v2852
        %v2920 = vpop.f32.mrb[0].mxu0
        %v2921 = vadd.f32 0.0, %v2920
        %v2922 = vpop.f32.mrb[0].mxu0
        %2923 = vdwg.mxu0
        %s2924 = scalar_lea.vmem %s4, 32
        %v2925 = vld [vmem:[%s2924] sm:$0xff]
        %v2926 = vld [vmem:[%s2924 + $0x8] sm:$0xff]
        %v2927 = vld [vmem:[%s2924 + $0x10] sm:$0xff]
        %v2928 = vld [vmem:[%s2924 + $0x18] sm:$0xff]
        %v2930 = vsel %vm789, %v2693, 0
        %2932 = vmatprep.subr.mxu0 0.0
        %2933 = vmatpush1.msra.mxu0 %v2925
        %2934 = vmatprep.subr.mxu0 0.0
        %2935 = vmatpush1.msra.mxu0 0.0
        %2936 = vmatprep.subr.mxu0 0.0
        %2937 = vmatpush1.msra.mxu0 0.0
        %2938 = vmatprep.subr.mxu0 0.0
        %2939 = vmatpush1.msra.mxu0 0.0
        %2940 = vmatprep.subr.mxu0 0.0
        %2941 = vmatpush1.msra.mxu0 0.0
        %2942 = vmatprep.subr.mxu0 0.0
        %2943 = vmatpush1.msra.mxu0 0.0
        %2944 = vmatprep.subr.mxu0 0.0
        %2945 = vmatpush1.msra.mxu0 0.0
        %2946 = vmatprep.subr.mxu0 0.0
        %2947 = vmatpush1.msra.mxu0 0.0
        %2948 = vmatprep.subr.mxu0 0.0
        %2949 = vmatpush1.msra.mxu0 0.0
        %2950 = vmatprep.subr.mxu0 0.0
        %2951 = vmatpush1.msra.mxu0 0.0
        %2952 = vmatprep.subr.mxu0 0.0
        %2953 = vmatpush1.msra.mxu0 0.0
        %2954 = vmatprep.subr.mxu0 0.0
        %2955 = vmatpush1.msra.mxu0 0.0
        %2956 = vmatprep.subr.mxu0 0.0
        %2957 = vmatpush1.msra.mxu0 0.0
        %2958 = vmatprep.subr.mxu0 0.0
        %2959 = vmatpush1.msra.mxu0 0.0
        %2960 = vmatprep.subr.mxu0 0.0
        %2961 = vmatpush1.msra.mxu0 0.0
        %2962 = vmatprep.subr.mxu0 0.0
        %2963 = vmatpush1.msra.mxu0 0.0
        %2964 = vmatprep.subr.mxu0 0.0
        %2965 = vmatpush1.msra.mxu0 0.0
        %2966 = vmatprep.subr.mxu0 0.0
        %2967 = vmatpush1.msra.mxu0 0.0
        %2968 = vmatprep.subr.mxu0 0.0
        %2969 = vmatpush1.msra.mxu0 0.0
        %2970 = vmatprep.subr.mxu0 0.0
        %2971 = vmatpush1.msra.mxu0 0.0
        %2972 = vmatprep.subr.mxu0 0.0
        %2973 = vmatpush1.msra.mxu0 0.0
        %2974 = vmatprep.subr.mxu0 0.0
        %2975 = vmatpush1.msra.mxu0 0.0
        %2976 = vmatprep.subr.mxu0 0.0
        %2977 = vmatpush1.msra.mxu0 0.0
        %2978 = vmatprep.subr.mxu0 0.0
        %2979 = vmatpush1.msra.mxu0 0.0
        %2980 = vmatprep.subr.mxu0 0.0
        %2981 = vmatpush1.msra.mxu0 0.0
        %2982 = vmatprep.subr.mxu0 0.0
        %2983 = vmatpush1.msra.mxu0 0.0
        %2984 = vmatprep.subr.mxu0 0.0
        %2985 = vmatpush1.msra.mxu0 0.0
        %2986 = vmatprep.subr.mxu0 0.0
        %2987 = vmatpush1.msra.mxu0 0.0
        %2988 = vmatprep.subr.mxu0 0.0
        %2989 = vmatpush1.msra.mxu0 0.0
        %2990 = vmatprep.subr.mxu0 0.0
        %2991 = vmatpush1.msra.mxu0 0.0
        %2992 = vmatprep.subr.mxu0 0.0
        %2993 = vmatpush1.msra.mxu0 0.0
        %2994 = vmatprep.subr.mxu0 0.0
        %2995 = vmatpush1.msra.mxu0 0.0
        %2996 = vmatprep.mubr.f32.mxu0 0.0
        %2997 = vmatmul.mubr.f32.gmra.mrb[0].mxu0 %v2930
        %v2998 = vpop.f32.mrb[0].mxu0
        %v2999 = vadd.f32 0.0, %v2998
        %v3000 = vpop.f32.mrb[0].mxu0
        %3001 = vdwg.mxu0
        %v3003 = vsel %vm789, %v2769, 0
        %3005 = vmatprep.subr.mxu0 0.0
        %3006 = vmatpush1.msra.mxu0 %v2926
        %3007 = vmatprep.subr.mxu0 0.0
        %3008 = vmatpush1.msra.mxu0 0.0
        %3009 = vmatprep.subr.mxu0 0.0
        %3010 = vmatpush1.msra.mxu0 0.0
        %3011 = vmatprep.subr.mxu0 0.0
        %3012 = vmatpush1.msra.mxu0 0.0
        %3013 = vmatprep.subr.mxu0 0.0
        %3014 = vmatpush1.msra.mxu0 0.0
        %3015 = vmatprep.subr.mxu0 0.0
        %3016 = vmatpush1.msra.mxu0 0.0
        %3017 = vmatprep.subr.mxu0 0.0
        %3018 = vmatpush1.msra.mxu0 0.0
        %3019 = vmatprep.subr.mxu0 0.0
        %3020 = vmatpush1.msra.mxu0 0.0
        %3021 = vmatprep.subr.mxu0 0.0
        %3022 = vmatpush1.msra.mxu0 0.0
        %3023 = vmatprep.subr.mxu0 0.0
        %3024 = vmatpush1.msra.mxu0 0.0
        %3025 = vmatprep.subr.mxu0 0.0
        %3026 = vmatpush1.msra.mxu0 0.0
        %3027 = vmatprep.subr.mxu0 0.0
        %3028 = vmatpush1.msra.mxu0 0.0
        %3029 = vmatprep.subr.mxu0 0.0
        %3030 = vmatpush1.msra.mxu0 0.0
        %3031 = vmatprep.subr.mxu0 0.0
        %3032 = vmatpush1.msra.mxu0 0.0
        %3033 = vmatprep.subr.mxu0 0.0
        %3034 = vmatpush1.msra.mxu0 0.0
        %3035 = vmatprep.subr.mxu0 0.0
        %3036 = vmatpush1.msra.mxu0 0.0
        %3037 = vmatprep.subr.mxu0 0.0
        %3038 = vmatpush1.msra.mxu0 0.0
        %3039 = vmatprep.subr.mxu0 0.0
        %3040 = vmatpush1.msra.mxu0 0.0
        %3041 = vmatprep.subr.mxu0 0.0
        %3042 = vmatpush1.msra.mxu0 0.0
        %3043 = vmatprep.subr.mxu0 0.0
        %3044 = vmatpush1.msra.mxu0 0.0
        %3045 = vmatprep.subr.mxu0 0.0
        %3046 = vmatpush1.msra.mxu0 0.0
        %3047 = vmatprep.subr.mxu0 0.0
        %3048 = vmatpush1.msra.mxu0 0.0
        %3049 = vmatprep.subr.mxu0 0.0
        %3050 = vmatpush1.msra.mxu0 0.0
        %3051 = vmatprep.subr.mxu0 0.0
        %3052 = vmatpush1.msra.mxu0 0.0
        %3053 = vmatprep.subr.mxu0 0.0
        %3054 = vmatpush1.msra.mxu0 0.0
        %3055 = vmatprep.subr.mxu0 0.0
        %3056 = vmatpush1.msra.mxu0 0.0
        %3057 = vmatprep.subr.mxu0 0.0
        %3058 = vmatpush1.msra.mxu0 0.0
        %3059 = vmatprep.subr.mxu0 0.0
        %3060 = vmatpush1.msra.mxu0 0.0
        %3061 = vmatprep.subr.mxu0 0.0
        %3062 = vmatpush1.msra.mxu0 0.0
        %3063 = vmatprep.subr.mxu0 0.0
        %3064 = vmatpush1.msra.mxu0 0.0
        %3065 = vmatprep.subr.mxu0 0.0
        %3066 = vmatpush1.msra.mxu0 0.0
        %3067 = vmatprep.subr.mxu0 0.0
        %3068 = vmatpush1.msra.mxu0 0.0
        %3069 = vmatprep.mubr.f32.mxu0 0.0
        %3070 = vmatmul.mubr.f32.gmra.mrb[0].mxu0 %v3003
        %v3071 = vpop.f32.mrb[0].mxu0
        %v3072 = vadd.f32 0.0, %v3071
        %v3073 = vpop.f32.mrb[0].mxu0
        %3074 = vdwg.mxu0
        %v3076 = vsel %vm789, %v2845, 0
        %3078 = vmatprep.subr.mxu0 0.0
        %3079 = vmatpush1.msra.mxu0 %v2927
        %3080 = vmatprep.subr.mxu0 0.0
        %3081 = vmatpush1.msra.mxu0 0.0
        %3082 = vmatprep.subr.mxu0 0.0
        %3083 = vmatpush1.msra.mxu0 0.0
        %3084 = vmatprep.subr.mxu0 0.0
        %3085 = vmatpush1.msra.mxu0 0.0
        %3086 = vmatprep.subr.mxu0 0.0
        %3087 = vmatpush1.msra.mxu0 0.0
        %3088 = vmatprep.subr.mxu0 0.0
        %3089 = vmatpush1.msra.mxu0 0.0
        %3090 = vmatprep.subr.mxu0 0.0
        %3091 = vmatpush1.msra.mxu0 0.0
        %3092 = vmatprep.subr.mxu0 0.0
        %3093 = vmatpush1.msra.mxu0 0.0
        %3094 = vmatprep.subr.mxu0 0.0
        %3095 = vmatpush1.msra.mxu0 0.0
        %3096 = vmatprep.subr.mxu0 0.0
        %3097 = vmatpush1.msra.mxu0 0.0
        %3098 = vmatprep.subr.mxu0 0.0
        %3099 = vmatpush1.msra.mxu0 0.0
        %3100 = vmatprep.subr.mxu0 0.0
        %3101 = vmatpush1.msra.mxu0 0.0
        %3102 = vmatprep.subr.mxu0 0.0
        %3103 = vmatpush1.msra.mxu0 0.0
        %3104 = vmatprep.subr.mxu0 0.0
        %3105 = vmatpush1.msra.mxu0 0.0
        %3106 = vmatprep.subr.mxu0 0.0
        %3107 = vmatpush1.msra.mxu0 0.0
        %3108 = vmatprep.subr.mxu0 0.0
        %3109 = vmatpush1.msra.mxu0 0.0
        %3110 = vmatprep.subr.mxu0 0.0
        %3111 = vmatpush1.msra.mxu0 0.0
        %3112 = vmatprep.subr.mxu0 0.0
        %3113 = vmatpush1.msra.mxu0 0.0
        %3114 = vmatprep.subr.mxu0 0.0
        %3115 = vmatpush1.msra.mxu0 0.0
        %3116 = vmatprep.subr.mxu0 0.0
        %3117 = vmatpush1.msra.mxu0 0.0
        %3118 = vmatprep.subr.mxu0 0.0
        %3119 = vmatpush1.msra.mxu0 0.0
        %3120 = vmatprep.subr.mxu0 0.0
        %3121 = vmatpush1.msra.mxu0 0.0
        %3122 = vmatprep.subr.mxu0 0.0
        %3123 = vmatpush1.msra.mxu0 0.0
        %3124 = vmatprep.subr.mxu0 0.0
        %3125 = vmatpush1.msra.mxu0 0.0
        %3126 = vmatprep.subr.mxu0 0.0
        %3127 = vmatpush1.msra.mxu0 0.0
        %3128 = vmatprep.subr.mxu0 0.0
        %3129 = vmatpush1.msra.mxu0 0.0
        %3130 = vmatprep.subr.mxu0 0.0
        %3131 = vmatpush1.msra.mxu0 0.0
        %3132 = vmatprep.subr.mxu0 0.0
        %3133 = vmatpush1.msra.mxu0 0.0
        %3134 = vmatprep.subr.mxu0 0.0
        %3135 = vmatpush1.msra.mxu0 0.0
        %3136 = vmatprep.subr.mxu0 0.0
        %3137 = vmatpush1.msra.mxu0 0.0
        %3138 = vmatprep.subr.mxu0 0.0
        %3139 = vmatpush1.msra.mxu0 0.0
        %3140 = vmatprep.subr.mxu0 0.0
        %3141 = vmatpush1.msra.mxu0 0.0
        %3142 = vmatprep.mubr.f32.mxu0 0.0
        %3143 = vmatmul.mubr.f32.gmra.mrb[0].mxu0 %v3076
        %v3144 = vpop.f32.mrb[0].mxu0
        %v3145 = vadd.f32 0.0, %v3144
        %v3146 = vpop.f32.mrb[0].mxu0
        %3147 = vdwg.mxu0
        %v3149 = vsel %vm789, %v2921, 0
        %3151 = vmatprep.subr.mxu0 0.0
        %3152 = vmatpush1.msra.mxu0 %v2928
        %3153 = vmatprep.subr.mxu0 0.0
        %3154 = vmatpush1.msra.mxu0 0.0
        %3155 = vmatprep.subr.mxu0 0.0
        %3156 = vmatpush1.msra.mxu0 0.0
        %3157 = vmatprep.subr.mxu0 0.0
        %3158 = vmatpush1.msra.mxu0 0.0
        %3159 = vmatprep.subr.mxu0 0.0
        %3160 = vmatpush1.msra.mxu0 0.0
        %3161 = vmatprep.subr.mxu0 0.0
        %3162 = vmatpush1.msra.mxu0 0.0
        %3163 = vmatprep.subr.mxu0 0.0
        %3164 = vmatpush1.msra.mxu0 0.0
        %3165 = vmatprep.subr.mxu0 0.0
        %3166 = vmatpush1.msra.mxu0 0.0
        %3167 = vmatprep.subr.mxu0 0.0
        %3168 = vmatpush1.msra.mxu0 0.0
        %3169 = vmatprep.subr.mxu0 0.0
        %3170 = vmatpush1.msra.mxu0 0.0
        %3171 = vmatprep.subr.mxu0 0.0
        %3172 = vmatpush1.msra.mxu0 0.0
        %3173 = vmatprep.subr.mxu0 0.0
        %3174 = vmatpush1.msra.mxu0 0.0
        %3175 = vmatprep.subr.mxu0 0.0
        %3176 = vmatpush1.msra.mxu0 0.0
        %3177 = vmatprep.subr.mxu0 0.0
        %3178 = vmatpush1.msra.mxu0 0.0
        %3179 = vmatprep.subr.mxu0 0.0
        %3180 = vmatpush1.msra.mxu0 0.0
        %3181 = vmatprep.subr.mxu0 0.0
        %3182 = vmatpush1.msra.mxu0 0.0
        %3183 = vmatprep.subr.mxu0 0.0
        %3184 = vmatpush1.msra.mxu0 0.0
        %3185 = vmatprep.subr.mxu0 0.0
        %3186 = vmatpush1.msra.mxu0 0.0
        %3187 = vmatprep.subr.mxu0 0.0
        %3188 = vmatpush1.msra.mxu0 0.0
        %3189 = vmatprep.subr.mxu0 0.0
        %3190 = vmatpush1.msra.mxu0 0.0
        %3191 = vmatprep.subr.mxu0 0.0
        %3192 = vmatpush1.msra.mxu0 0.0
        %3193 = vmatprep.subr.mxu0 0.0
        %3194 = vmatpush1.msra.mxu0 0.0
        %3195 = vmatprep.subr.mxu0 0.0
        %3196 = vmatpush1.msra.mxu0 0.0
        %3197 = vmatprep.subr.mxu0 0.0
        %3198 = vmatpush1.msra.mxu0 0.0
        %3199 = vmatprep.subr.mxu0 0.0
        %3200 = vmatpush1.msra.mxu0 0.0
        %3201 = vmatprep.subr.mxu0 0.0
        %3202 = vmatpush1.msra.mxu0 0.0
        %3203 = vmatprep.subr.mxu0 0.0
        %3204 = vmatpush1.msra.mxu0 0.0
        %3205 = vmatprep.subr.mxu0 0.0
        %3206 = vmatpush1.msra.mxu0 0.0
        %3207 = vmatprep.subr.mxu0 0.0
        %3208 = vmatpush1.msra.mxu0 0.0
        %3209 = vmatprep.subr.mxu0 0.0
        %3210 = vmatpush1.msra.mxu0 0.0
        %3211 = vmatprep.subr.mxu0 0.0
        %3212 = vmatpush1.msra.mxu0 0.0
        %3213 = vmatprep.subr.mxu0 0.0
        %3214 = vmatpush1.msra.mxu0 0.0
        %3215 = vmatprep.mubr.f32.mxu0 0.0
        %3216 = vmatmul.mubr.f32.gmra.mrb[0].mxu0 %v3149
        %v3217 = vpop.f32.mrb[0].mxu0
        %v3218 = vadd.f32 0.0, %v3217
        %v3219 = vpop.f32.mrb[0].mxu0
        %3220 = vdwg.mxu0
        %v3221 = vsel %vm462, %v2999, 0.0
        %v3222 = vsel %vm462, %v3072, 0.0
        %v3223 = vadd.f32 %v3221, %v3222
        %v3224 = vsel %vm462, %v3145, 0.0
        %v3225 = vadd.f32 %v3223, %v3224
        %v3226 = vsel %vm462, %v3218, 0.0
        %v3227 = vadd.f32 %v3225, %v3226
        %v3228 = vadd.f32 %v1944, %v3227
        %v3229 = vlaneseq
        %v3230 = vshrl.u32 %v3229, 7
        %v3231 = vsub.s32 0, %v3230
        %v3232 = vrot.slane %v352, %v3231
        %v3233 = vadd.f32 %v3228, %v3232
        %v3234 = vsel %vm462, %v3233, 0.0
        %3235 = vadd.xlane.f32.xlu0 %v3234
        %v3236 = vpop.xlane.xlu0 %3235
        %v3237 = vmul.f32 %v3236, %v466
        %v3238 = vsub.f32 %v3233, %v3237
        %v3239 = vmul.f32 %v3238, %v3238
        %v3240 = vsel %vm462, %v3239, 0.0
        %3241 = vadd.xlane.f32.xlu0 %v3240
        %v3242 = vpop.xlane.xlu0 %3241
        %v3243 = vmul.f32 %v3242, %v466
        %v3244 = vadd.f32 %v3243, 1e-05
        %v3245 = vrsqrt.pop %v3244
        %v3246 = vmul.f32 %v3238, %v3245
        %v3247 = vlaneseq
        %v3248 = vshrl.u32 %v3247, 7
        %v3249 = vsub.s32 1, %v3248
        %v3250 = vrot.slane %v352, %v3249
        %v3251 = vmul.f32 %v3246, %v3250
        %v3252 = vlaneseq
        %v3253 = vshrl.u32 %v3252, 7
        %v3254 = vsub.s32 2, %v3253
        %v3255 = vrot.slane %v352, %v3254
        %v3256 = vadd.f32 %v3251, %v3255
        %s3257 = scalar_lea.vmem %s5, 64
        %v3258 = vld [vmem:[%s3257] sm:$0xff]
        %v3259 = vld [vmem:[%s3257 + $0x8] sm:$0xff]
        %v3260 = vld [vmem:[%s3257 + $0x10] sm:$0xff]
        %v3261 = vld [vmem:[%s3257 + $0x18] sm:$0xff]
        %v3262 = vlaneseq
        %v3263 = vshrl.u32 %v3262, 7
        %v3264 = vsub.s32 1, %v3263
        %v3265 = vrot.slane %v353, %v3264
        %v3267 = vsel %vm462, %v3256, 0
        %3269 = vmatprep.subr.mxu0 0.0
        %3270 = vmatpush1.msra.mxu0 %v3258
        %3271 = vmatprep.subr.mxu0 0.0
        %3272 = vmatpush1.msra.mxu0 %v3259
        %3273 = vmatprep.subr.mxu0 0.0
        %3274 = vmatpush1.msra.mxu0 %v3260
        %3275 = vmatprep.subr.mxu0 0.0
        %3276 = vmatpush1.msra.mxu0 %v3261
        %3277 = vmatprep.subr.mxu0 0.0
        %3278 = vmatpush1.msra.mxu0 0.0
        %3279 = vmatprep.subr.mxu0 0.0
        %3280 = vmatpush1.msra.mxu0 0.0
        %3281 = vmatprep.subr.mxu0 0.0
        %3282 = vmatpush1.msra.mxu0 0.0
        %3283 = vmatprep.subr.mxu0 0.0
        %3284 = vmatpush1.msra.mxu0 0.0
        %3285 = vmatprep.subr.mxu0 0.0
        %3286 = vmatpush1.msra.mxu0 0.0
        %3287 = vmatprep.subr.mxu0 0.0
        %3288 = vmatpush1.msra.mxu0 0.0
        %3289 = vmatprep.subr.mxu0 0.0
        %3290 = vmatpush1.msra.mxu0 0.0
        %3291 = vmatprep.subr.mxu0 0.0
        %3292 = vmatpush1.msra.mxu0 0.0
        %3293 = vmatprep.subr.mxu0 0.0
        %3294 = vmatpush1.msra.mxu0 0.0
        %3295 = vmatprep.subr.mxu0 0.0
        %3296 = vmatpush1.msra.mxu0 0.0
        %3297 = vmatprep.subr.mxu0 0.0
        %3298 = vmatpush1.msra.mxu0 0.0
        %3299 = vmatprep.subr.mxu0 0.0
        %3300 = vmatpush1.msra.mxu0 0.0
        %3301 = vmatprep.subr.mxu0 0.0
        %3302 = vmatpush1.msra.mxu0 0.0
        %3303 = vmatprep.subr.mxu0 0.0
        %3304 = vmatpush1.msra.mxu0 0.0
        %3305 = vmatprep.subr.mxu0 0.0
        %3306 = vmatpush1.msra.mxu0 0.0
        %3307 = vmatprep.subr.mxu0 0.0
        %3308 = vmatpush1.msra.mxu0 0.0
        %3309 = vmatprep.subr.mxu0 0.0
        %3310 = vmatpush1.msra.mxu0 0.0
        %3311 = vmatprep.subr.mxu0 0.0
        %3312 = vmatpush1.msra.mxu0 0.0
        %3313 = vmatprep.subr.mxu0 0.0
        %3314 = vmatpush1.msra.mxu0 0.0
        %3315 = vmatprep.subr.mxu0 0.0
        %3316 = vmatpush1.msra.mxu0 0.0
        %3317 = vmatprep.subr.mxu0 0.0
        %3318 = vmatpush1.msra.mxu0 0.0
        %3319 = vmatprep.subr.mxu0 0.0
        %3320 = vmatpush1.msra.mxu0 0.0
        %3321 = vmatprep.subr.mxu0 0.0
        %3322 = vmatpush1.msra.mxu0 0.0
        %3323 = vmatprep.subr.mxu0 0.0
        %3324 = vmatpush1.msra.mxu0 0.0
        %3325 = vmatprep.subr.mxu0 0.0
        %3326 = vmatpush1.msra.mxu0 0.0
        %3327 = vmatprep.subr.mxu0 0.0
        %3328 = vmatpush1.msra.mxu0 0.0
        %3329 = vmatprep.subr.mxu0 0.0
        %3330 = vmatpush1.msra.mxu0 0.0
        %3331 = vmatprep.subr.mxu0 0.0
        %3332 = vmatpush1.msra.mxu0 0.0
        %3333 = vmatprep.mubr.f32.mxu0 0.0
        %3334 = vmatmul.mubr.f32.gmra.mrb[0].mxu0 %v3267
        %v3335 = vpop.f32.mrb[0].mxu0
        %v3336 = vadd.f32 %v3265, %v3335
        %v3337 = vpop.f32.mrb[0].mxu0
        %3338 = vdwg.mxu0
        %v3339 = vmul.f32 %v3336, 0.5
        %v3340 = vmul.f32 %v3336, 0.044715
        %v3341 = vmul.f32 %v3340, %v3336
        %v3342 = vmul.f32 %v3341, %v3336
        %v3343 = vadd.f32 %v3336, %v3342
        %v3344 = vmul.f32 %v3343, 0.7978846
        %v3345 = vtanh.pop %v3344
        %v3346 = vadd.f32 %v3345, 1.0
        %v3347 = vmul.f32 %v3339, %v3346
        %v3348 = vld [vmem:[%s3257 + $0x20] sm:$0xff]
        %v3349 = vld [vmem:[%s3257 + $0x28] sm:$0xff]
        %v3350 = vld [vmem:[%s3257 + $0x30] sm:$0xff]
        %v3351 = vld [vmem:[%s3257 + $0x38] sm:$0xff]
        %3352 = vmatprep.subr.mxu0 0.0
        %3353 = vmatpush1.xpose.msra.mxu0 %v3348
        %3354 = vmatprep.subr.mxu0 0.0
        %3355 = vmatpush1.xpose.msra.mxu0 %v3349
        %3356 = vmatprep.subr.mxu0 0.0
        %3357 = vmatpush1.xpose.msra.mxu0 %v3350
        %3358 = vmatprep.subr.mxu0 0.0
        %3359 = vmatpush1.xpose.msra.mxu0 %v3351
        %3360 = vmatprep.subr.mxu0 0.0
        %3361 = vmatpush1.xpose.msra.mxu0 0.0
        %3362 = vmatprep.subr.mxu0 0.0
        %3363 = vmatpush1.xpose.msra.mxu0 0.0
        %3364 = vmatprep.subr.mxu0 0.0
        %3365 = vmatpush1.xpose.msra.mxu0 0.0
        %3366 = vmatprep.subr.mxu0 0.0
        %3367 = vmatpush1.xpose.msra.mxu0 0.0
        %3368 = vmatprep.subr.mxu0 0.0
        %3369 = vmatpush1.xpose.msra.mxu0 0.0
        %3370 = vmatprep.subr.mxu0 0.0
        %3371 = vmatpush1.xpose.msra.mxu0 0.0
        %3372 = vmatprep.subr.mxu0 0.0
        %3373 = vmatpush1.xpose.msra.mxu0 0.0
        %3374 = vmatprep.subr.mxu0 0.0
        %3375 = vmatpush1.xpose.msra.mxu0 0.0
        %3376 = vmatprep.subr.mxu0 0.0
        %3377 = vmatpush1.xpose.msra.mxu0 0.0
        %3378 = vmatprep.subr.mxu0 0.0
        %3379 = vmatpush1.xpose.msra.mxu0 0.0
        %3380 = vmatprep.subr.mxu0 0.0
        %3381 = vmatpush1.xpose.msra.mxu0 0.0
        %3382 = vmatprep.subr.mxu0 0.0
        %3383 = vmatpush1.xpose.msra.mxu0 0.0
        %3384 = vmatprep.subr.mxu0 0.0
        %3385 = vmatpush1.xpose.msra.mxu0 0.0
        %3386 = vmatprep.subr.mxu0 0.0
        %3387 = vmatpush1.xpose.msra.mxu0 0.0
        %3388 = vmatprep.subr.mxu0 0.0
        %3389 = vmatpush1.xpose.msra.mxu0 0.0
        %3390 = vmatprep.subr.mxu0 0.0
        %3391 = vmatpush1.xpose.msra.mxu0 0.0
        %3392 = vmatprep.subr.mxu0 0.0
        %3393 = vmatpush1.xpose.msra.mxu0 0.0
        %3394 = vmatprep.subr.mxu0 0.0
        %3395 = vmatpush1.xpose.msra.mxu0 0.0
        %3396 = vmatprep.subr.mxu0 0.0
        %3397 = vmatpush1.xpose.msra.mxu0 0.0
        %3398 = vmatprep.subr.mxu0 0.0
        %3399 = vmatpush1.xpose.msra.mxu0 0.0
        %3400 = vmatprep.subr.mxu0 0.0
        %3401 = vmatpush1.xpose.msra.mxu0 0.0
        %3402 = vmatprep.subr.mxu0 0.0
        %3403 = vmatpush1.xpose.msra.mxu0 0.0
        %3404 = vmatprep.subr.mxu0 0.0
        %3405 = vmatpush1.xpose.msra.mxu0 0.0
        %3406 = vmatprep.subr.mxu0 0.0
        %3407 = vmatpush1.xpose.msra.mxu0 0.0
        %3408 = vmatprep.subr.mxu0 0.0
        %3409 = vmatpush1.xpose.msra.mxu0 0.0
        %3410 = vmatprep.subr.mxu0 0.0
        %3411 = vmatpush1.xpose.msra.mxu0 0.0
        %3412 = vmatprep.subr.mxu0 0.0
        %3413 = vmatpush1.xpose.msra.mxu0 0.0
        %3414 = vmatprep.subr.mxu0 0.0
        %3415 = vmatpush1.xpose.msra.mxu0 0.0
        %3416 = vmatprep.mubr.f32.mxu0 0.0
        %3417 = vmatmul.mubr.f32.gmra.mrb[0].mxu0 %v3347
        %v3418 = vpop.f32.mrb[0].mxu0
        %v3419 = vadd.f32 0.0, %v3418
        %v3420 = vpop.f32.mrb[0].mxu0
        %3421 = vdwg.mxu0
        %v3422 = vadd.f32 %v3233, %v3419
        %v3423 = vlaneseq
        %v3424 = vshrl.u32 %v3423, 7
        %v3425 = vsub.s32 3, %v3424
        %v3426 = vrot.slane %v352, %v3425
        %v3427 = vadd.f32 %v3422, %v3426
        %v3428 = vsel %vm462, %v3427, 0.0
        %3429 = vadd.xlane.f32.xlu0 %v3428
        %v3430 = vpop.xlane.xlu0 %3429
        %v3431 = vmul.f32 %v3430, %v466
        %v3432 = vsub.f32 %v3427, %v3431
        %v3433 = vmul.f32 %v3432, %v3432
        %v3434 = vsel %vm462, %v3433, 0.0
        %3435 = vadd.xlane.f32.xlu0 %v3434
        %v3436 = vpop.xlane.xlu0 %3435
        %v3437 = vmul.f32 %v3436, %v466
        %v3438 = vadd.f32 %v3437, 1e-05
        %v3439 = vrsqrt.pop %v3438
        %v3440 = vmul.f32 %v3432, %v3439
        %v3441 = vlaneseq
        %v3442 = vshrl.u32 %v3441, 7
        %v3443 = vsub.s32 4, %v3442
        %v3444 = vrot.slane %v352, %v3443
        %v3445 = vmul.f32 %v3440, %v3444
        %v3446 = vlaneseq
        %v3447 = vshrl.u32 %v3446, 7
        %v3448 = vsub.s32 5, %v3447
        %v3449 = vrot.slane %v352, %v3448
        %v3450 = vadd.f32 %v3445, %v3449
        %v3452 = vsel %vm462, %v3450, 0
        %v3455 = vsel %vm462, %v354, 0
        %v3458 = vsel %vm462, %v355, 0
        %v3461 = vsel %vm462, %v356, 0
        %v3464 = vsel %vm462, %v357, 0
        %v3467 = vsel %vm462, %v358, 0
        %v3470 = vsel %vm462, %v359, 0
        %v3473 = vsel %vm462, %v360, 0
        %v3476 = vsel %vm462, %v361, 0
        %v3479 = vsel %vm462, %v362, 0
        %v3482 = vsel %vm462, %v363, 0
        %v3485 = vsel %vm462, %v364, 0
        %v3488 = vsel %vm462, %v365, 0
        %v3491 = vsel %vm462, %v366, 0
        %v3494 = vsel %vm462, %v367, 0
        %v3497 = vsel %vm462, %v368, 0
        %v3500 = vsel %vm462, %v369, 0
        %3502 = vmatprep.subr.mxu0 0.0
        %3503 = vmatpush1.xpose.msra.mxu0 %v3455
        %3504 = vmatprep.subr.mxu0 0.0
        %3505 = vmatpush1.xpose.msra.mxu0 %v3458
        %3506 = vmatprep.subr.mxu0 0.0
        %3507 = vmatpush1.xpose.msra.mxu0 %v3461
        %3508 = vmatprep.subr.mxu0 0.0
        %3509 = vmatpush1.xpose.msra.mxu0 %v3464
        %3510 = vmatprep.subr.mxu0 0.0
        %3511 = vmatpush1.xpose.msra.mxu0 %v3467
        %3512 = vmatprep.subr.mxu0 0.0
        %3513 = vmatpush1.xpose.msra.mxu0 %v3470
        %3514 = vmatprep.subr.mxu0 0.0
        %3515 = vmatpush1.xpose.msra.mxu0 %v3473
        %3516 = vmatprep.subr.mxu0 0.0
        %3517 = vmatpush1.xpose.msra.mxu0 %v3476
        %3518 = vmatprep.subr.mxu0 0.0
        %3519 = vmatpush1.xpose.msra.mxu0 %v3479
        %3520 = vmatprep.subr.mxu0 0.0
        %3521 = vmatpush1.xpose.msra.mxu0 %v3482
        %3522 = vmatprep.subr.mxu0 0.0
        %3523 = vmatpush1.xpose.msra.mxu0 %v3485
        %3524 = vmatprep.subr.mxu0 0.0
        %3525 = vmatpush1.xpose.msra.mxu0 %v3488
        %3526 = vmatprep.subr.mxu0 0.0
        %3527 = vmatpush1.xpose.msra.mxu0 %v3491
        %3528 = vmatprep.subr.mxu0 0.0
        %3529 = vmatpush1.xpose.msra.mxu0 %v3494
        %3530 = vmatprep.subr.mxu0 0.0
        %3531 = vmatpush1.xpose.msra.mxu0 %v3497
        %3532 = vmatprep.subr.mxu0 0.0
        %3533 = vmatpush1.xpose.msra.mxu0 %v3500
        %3534 = vmatprep.subr.mxu0 0.0
        %3535 = vmatpush1.xpose.msra.mxu0 0.0
        %3536 = vmatprep.subr.mxu0 0.0
        %3537 = vmatpush1.xpose.msra.mxu0 0.0
        %3538 = vmatprep.subr.mxu0 0.0
        %3539 = vmatpush1.xpose.msra.mxu0 0.0
        %3540 = vmatprep.subr.mxu0 0.0
        %3541 = vmatpush1.xpose.msra.mxu0 0.0
        %3542 = vmatprep.subr.mxu0 0.0
        %3543 = vmatpush1.xpose.msra.mxu0 0.0
        %3544 = vmatprep.subr.mxu0 0.0
        %3545 = vmatpush1.xpose.msra.mxu0 0.0
        %3546 = vmatprep.subr.mxu0 0.0
        %3547 = vmatpush1.xpose.msra.mxu0 0.0
        %3548 = vmatprep.subr.mxu0 0.0
        %3549 = vmatpush1.xpose.msra.mxu0 0.0
        %3550 = vmatprep.subr.mxu0 0.0
        %3551 = vmatpush1.xpose.msra.mxu0 0.0
        %3552 = vmatprep.subr.mxu0 0.0
        %3553 = vmatpush1.xpose.msra.mxu0 0.0
        %3554 = vmatprep.subr.mxu0 0.0
        %3555 = vmatpush1.xpose.msra.mxu0 0.0
        %3556 = vmatprep.subr.mxu0 0.0
        %3557 = vmatpush1.xpose.msra.mxu0 0.0
        %3558 = vmatprep.subr.mxu0 0.0
        %3559 = vmatpush1.xpose.msra.mxu0 0.0
        %3560 = vmatprep.subr.mxu0 0.0
        %3561 = vmatpush1.xpose.msra.mxu0 0.0
        %3562 = vmatprep.subr.mxu0 0.0
        %3563 = vmatpush1.xpose.msra.mxu0 0.0
        %3564 = vmatprep.subr.mxu0 0.0
        %3565 = vmatpush1.xpose.msra.mxu0 0.0
        %3566 = vmatprep.mubr.f32.mxu0 0.0
        %3567 = vmatmul.mubr.f32.gmra.mrb[0].mxu0 %v3452
        %v3568 = vpop.f32.mrb[0].mxu0
        %v3569 = vadd.f32 0.0, %v3568
        %v3570 = vpop.f32.mrb[0].mxu0
        %3571 = vdwg.mxu0
        %3572 = vst [vmem:[%s335] sm:$0xff] %v3569
        %vm3573 = vcmp.lt.s32.totalorder %v372, 64
        %v3574 = vsel %vm3573, 0.0, -1e+30
        %v3575 = vadd.f32 %v3569, %v3574
        %3576 = vmax.xlane.f32.xlu0 %v3575
        %v3577 = vpop.xlane.xlu0 %3576
        %v3578 = vsub.f32 %v3575, %v3577
        %v3579 = vmul.f32 %v3578, 1.442695
        %v3580 = vpow.pop %v3579
        %3581 = vadd.xlane.f32.xlu0 %v3580
        %v3582 = vpop.xlane.xlu0 %3581
        %v3583 = vlog2.pop %v3582
        %v3584 = vmul.f32 %v3583, 0.6931472
        %v3585 = vadd.f32 %v3584, %v3577
        %v3586 = vadd.s32 %v451, 1
        %vm3587 = vcmp.eq.s32.totalorder %v372, %v3586
        %v3588 = vsel %vm3587, 1, 0
        %v3589 = vcvt.s32.f32 %v3588
        %v3591 = vsel %vm789, %v3589, 0
        %3593 = vmatprep.subr.mxu0 0.0
        %3594 = vmatpush1.msra.mxu0 %v378
        %3595 = vmatprep.subr.mxu0 0.0
        %3596 = vmatpush1.msra.mxu0 0.0
        %3597 = vmatprep.subr.mxu0 0.0
        %3598 = vmatpush1.msra.mxu0 0.0
        %3599 = vmatprep.subr.mxu0 0.0
        %3600 = vmatpush1.msra.mxu0 0.0
        %3601 = vmatprep.subr.mxu0 0.0
        %3602 = vmatpush1.msra.mxu0 0.0
        %3603 = vmatprep.subr.mxu0 0.0
        %3604 = vmatpush1.msra.mxu0 0.0
        %3605 = vmatprep.subr.mxu0 0.0
        %3606 = vmatpush1.msra.mxu0 0.0
        %3607 = vmatprep.subr.mxu0 0.0
        %3608 = vmatpush1.msra.mxu0 0.0
        %3609 = vmatprep.subr.mxu0 0.0
        %3610 = vmatpush1.msra.mxu0 0.0
        %3611 = vmatprep.subr.mxu0 0.0
        %3612 = vmatpush1.msra.mxu0 0.0
        %3613 = vmatprep.subr.mxu0 0.0
        %3614 = vmatpush1.msra.mxu0 0.0
        %3615 = vmatprep.subr.mxu0 0.0
        %3616 = vmatpush1.msra.mxu0 0.0
        %3617 = vmatprep.subr.mxu0 0.0
        %3618 = vmatpush1.msra.mxu0 0.0
        %3619 = vmatprep.subr.mxu0 0.0
        %3620 = vmatpush1.msra.mxu0 0.0
        %3621 = vmatprep.subr.mxu0 0.0
        %3622 = vmatpush1.msra.mxu0 0.0
        %3623 = vmatprep.subr.mxu0 0.0
        %3624 = vmatpush1.msra.mxu0 0.0
        %3625 = vmatprep.subr.mxu0 0.0
        %3626 = vmatpush1.msra.mxu0 0.0
        %3627 = vmatprep.subr.mxu0 0.0
        %3628 = vmatpush1.msra.mxu0 0.0
        %3629 = vmatprep.subr.mxu0 0.0
        %3630 = vmatpush1.msra.mxu0 0.0
        %3631 = vmatprep.subr.mxu0 0.0
        %3632 = vmatpush1.msra.mxu0 0.0
        %3633 = vmatprep.subr.mxu0 0.0
        %3634 = vmatpush1.msra.mxu0 0.0
        %3635 = vmatprep.subr.mxu0 0.0
        %3636 = vmatpush1.msra.mxu0 0.0
        %3637 = vmatprep.subr.mxu0 0.0
        %3638 = vmatpush1.msra.mxu0 0.0
        %3639 = vmatprep.subr.mxu0 0.0
        %3640 = vmatpush1.msra.mxu0 0.0
        %3641 = vmatprep.subr.mxu0 0.0
        %3642 = vmatpush1.msra.mxu0 0.0
        %3643 = vmatprep.subr.mxu0 0.0
        %3644 = vmatpush1.msra.mxu0 0.0
        %3645 = vmatprep.subr.mxu0 0.0
        %3646 = vmatpush1.msra.mxu0 0.0
        %3647 = vmatprep.subr.mxu0 0.0
        %3648 = vmatpush1.msra.mxu0 0.0
        %3649 = vmatprep.subr.mxu0 0.0
        %3650 = vmatpush1.msra.mxu0 0.0
        %3651 = vmatprep.subr.mxu0 0.0
        %3652 = vmatpush1.msra.mxu0 0.0
        %3653 = vmatprep.subr.mxu0 0.0
        %3654 = vmatpush1.msra.mxu0 0.0
        %3655 = vmatprep.subr.mxu0 0.0
        %3656 = vmatpush1.msra.mxu0 0.0
        %3657 = vmatprep.mubr.f32.mxu0 0.0
        %3658 = vmatmul.mubr.f32.gmra.mrb[0].mxu0 %v3591
        %v3659 = vpop.f32.mrb[0].mxu0
        %v3660 = vadd.f32 0.0, %v3659
        %v3661 = vpop.f32.mrb[0].mxu0
        %3662 = vdwg.mxu0
        %vm3663 = vcmp.lt.s32.totalorder %v451, 7
        %v3664 = vsel %vm3663, 1, 0
        %v3665 = vcvt.s32.f32 %v3664
        %v3666 = vmul.f32 %v3585, %v3665
        %v3667 = vrot.slane %v3666, 4
        %v3668 = vadd.f32 %v3666, %v3667
        %v3669 = vrot.slane %v3668, 2
        %v3670 = vadd.f32 %v3668, %v3669
        %v3671 = vrot.slane %v3670, 1
        %v3672 = vadd.f32 %v3670, %v3671
        %v3673 = vmul.f32 %v3569, %v3660
        %3674 = vadd.xlane.f32.xlu0 %v3673
        %v3675 = vpop.xlane.xlu0 %3674
        %v3676 = vrot.slane %v3675, 4
        %v3677 = vadd.f32 %v3675, %v3676
        %v3678 = vrot.slane %v3677, 2
        %v3679 = vadd.f32 %v3677, %v3678
        %v3680 = vrot.slane %v3679, 1
        %v3681 = vadd.f32 %v3679, %v3680
        %v3682 = vsub.f32 %v3672, %v3681
        %v3683 = vmul.f32 %v3682, 0.071428575
        %3684 = vst [vmem:[%s350] sm:$0x1] %v3683
        %s3685 = sand.u32 %s210, 1
        %s3686 = scalar_lea.sflag [#allocation3], %s3685
        %s3687 = sand.u32 %s210, 1
        %s3688 = smul.addr %s3687, 8
        %s3689 = scalar_lea.vmem [#allocation2], %s3688
        %p3690 = scmp.lt.s32.totalorder %s24, 1
        %s3691 = scalar_select %p3690, %s24, 1
        %s3692 = scalar_lea.vmem %s9, %s3691
        // Predicated region
        $region53: #{forward.1} parent=51 // pred_check
          %p3693 = pneg %p220
        $region54: #{forward.1} parent=51 // pred_check_branch
          %3695 = sbr.rel (%p3693) target = $region56
        $region55: #{forward.1} parent=51 // pred_region
          %s3697 = ssub.s32 128, 128
          %3698 = vsyncadd %s3686, %s3697
          %s3699 = smul.addr %s24, 128
          %s3700 = scalar_lea.hbm %s8, %s3699
          %s3702 = sshll.u32 %s3689, 4
          %s3703 = int_to_ptr.vmem [resolvable:$true] %s3702
          %3705 = dma.vmem_to_hbm [thread:$0]  %s3703, 128, %s3700, %s3686
        $region56: #{forward.1} parent=51 // pred_fallthru
          _
        // Predicated region
        $region57: #{forward.1} parent=51 // pred_check
          %p3706 = pneg %p246
        $region58: #{forward.1} parent=51 // pred_check_branch
          %3708 = sbr.rel (%p3706) target = $region60
        $region59: #{forward.1} parent=51 // pred_region
          _
        $region60: #{forward.1} parent=51 // pred_fallthru
          _
      $region52: #{forward.1} parent=5 // pred_fallthru
        _
      %p3709 = scmp.le.s32.totalorder 2, %s19
      // Predicated region
      $region61: #{forward.1} parent=5 // pred_check
        %p3710 = pneg %p3709
      $region62: #{forward.1} parent=5 // pred_check_branch
        %3712 = sbr.rel (%p3710) target = $region64
      $region63: #{forward.1} parent=5 // pred_region
        %s3713 = ssub.s32 %s19, 2
        // Predicated region
        $region65: #{forward.1} parent=63 // pred_check
          %p3714 = pneg %p226
        $region66: #{forward.1} parent=63 // pred_check_branch
          %3716 = sbr.rel (%p3714) target = $region68
        $region67: #{forward.1} parent=63 // pred_region
          %s3717 = sand.u32 %s211, 1
          %s3718 = scalar_lea.sflag [#allocation3], %s3717
          %s3719 = sand.u32 %s211, 1
          %s3720 = smul.addr %s3719, 8
          %s3721 = scalar_lea.vmem [#allocation2], %s3720
          %3722 = dma.done %s3718, 128
        $region68: #{forward.1} parent=63 // pred_fallthru
          _
        // Predicated region
        $region69: #{forward.1} parent=63 // pred_check
          %p3723 = pneg %p252
        $region70: #{forward.1} parent=63 // pred_check_branch
          %3725 = sbr.rel (%p3723) target = $region72
        $region71: #{forward.1} parent=63 // pred_region
          %p3726 = scmp.lt.s32.totalorder %s25, 1
          %s3727 = scalar_select %p3726, %s25, 1
          %s3728 = scalar_lea.vmem %s9, %s3727
        $region72: #{forward.1} parent=63 // pred_fallthru
          _
      $region64: #{forward.1} parent=5 // pred_fallthru
        _
    $region6: #{forward.1} parent=1 // loop_footer
      %s23 = sadd.s32 1, %s19
    $region7: #{forward.1} parent=1 // loop_footer_branch
      %18 = sbr.rel target = $region3
    $region8: #{forward.1} parent=1 // loop_exit
      _
    %3729 = vsyncpa [#allocation3], 1
    %s3730 = scalar_lea.sflag [#allocation3], 1
    %3731 = vsyncpa %s3730, 1

</llo_original>
